<compile_context>
chip_gen: v7x
topology: tpu7x:2x2x1
jax: 0.10.0
libtpu: 0.0.40
codegen_flags: <defaults>
</compile_context>

<pallas_src>
import jax
import jax.numpy as jnp
from jax.experimental import pallas as pl
from jax.experimental.pallas import tpu as pltpu

# ----------------------------- model sizes (small, consistent) ---------------
B   = 2            # batch
CIN = 512          # VGG19 feature channels (hard-coded in ImgEncoder)
HS, WS = 2, 4      # spatial size of the backbone feature map
S   = HS * WS      # img_seq_size          (original: 196)
E   = 64           # embed_size            (original: 1024)
H   = 32           # LSTM hidden_size; 2*H must equal E
NL  = 2            # LSTM num_layers (bidirectional)
V   = 50           # qst_vocab_size
A   = 10           # ans_vocab_size
W_Q = 6            # question length in tokens
D1, D2 = 768, 640  # hidden dims hard-coded inside Attention
OUT_PAD = 128      # lane-dense padded width of the score output

# softmax(dim=2) over a singleton axis is identically 1, so the fc*_1a/1b/2a/2b/3a
# projections never influence the output.  Default: skip them (output-identical).
INCLUDE_DEAD_ATTENTION_FLOPS = False


def _sigmoid(z):
    # exp -> EUP, approximate reciprocal -> EUP; keeps the recurrence off the
    # exact VPU divide path.
    return pl.reciprocal(1.0 + jnp.exp(-z), approx=True)


# ----------------------------- the fused kernel -------------------------------
def _vqa_kernel(*refs):
    """refs layout:
       [0:7]          img2d, onehot_q, sel_q, seg, w_img, b_img, lookup
       [7:7+3*NL]     per layer: w_ih_cat (in,8H), w_hh_blockdiag (2H,8H), bias (1,8H)
       (optional)     segT + 16 attention projection refs (only if faithful FLOPs)
       then           w_fc_pad, b_fc_pad, score_ref (output), h_buf0, h_buf1 (scratch)
    """
    (img_ref, onehot_ref, sel_ref, seg_ref,
     wimg_ref, bimg_ref, lookup_ref) = refs[0:7]
    lstm_refs = refs[7:7 + 3 * NL]
    pos = 7 + 3 * NL
    if INCLUDE_DEAD_ATTENTION_FLOPS:
        segT_ref = refs[pos]
        att_refs = refs[pos + 1:pos + 17]
        pos += 17
    wfc_ref, bfc_ref, score_ref = refs[pos:pos + 3]
    h_bufs = refs[pos + 3:pos + 3 + NL]
    f32 = jnp.float32

    # -------- ImgEncoder: tanh(view(-1,512) @ W + b); dropout = identity ------
    img_e = jnp.tanh(jnp.dot(img_ref[...], wimg_ref[...],
                             preferred_element_type=f32) + bimg_ref[...])      # (B*S, E)

    # -------- QuestionEmbedding: (precomputed one-hot) @ lookup, then tanh ----
    xs = jnp.tanh(jnp.dot(onehot_ref[...], lookup_ref[...],
                          preferred_element_type=f32))                         # (W*B, E)

    # -------- 2-layer bidirectional LSTM, directions interleaved, unrolled ----
    # Weights arrive direction-fused: w_ih (in, 8H), block-diagonal w_hh (2H, 8H)
    # and bias = (b_ih + b_hh) per direction, (1, 8H).  Gate order is PyTorch's
    # i,f,g,o for the forward half (lanes 0:4H) and the backward half (4H:8H).
    for l in range(NL):
        w_ih, w_hh, b = lstm_refs[3 * l:3 * (l + 1)]
        w_hh_v = w_hh[...]
        gx = jnp.dot(xs, w_ih[...], preferred_element_type=f32) + b[...]       # (W*B, 8H)

        h_f = jnp.zeros((B, H), f32); c_f = jnp.zeros((B, H), f32)
        h_b = jnp.zeros((B, H), f32); c_b = jnp.zeros((B, H), f32)
        out_buf = h_bufs[l]
        for t in range(W_Q):                                   # static unroll
            tb = W_Q - 1 - t                                   # backward-direction time
            g = (jnp.concatenate([gx[t * B:(t + 1) * B, 0:4 * H],
                                  gx[tb * B:(tb + 1) * B, 4 * H:8 * H]], axis=1)
                 + jnp.dot(jnp.concatenate([h_f, h_b], axis=1), w_hh_v,
                           preferred_element_type=f32))                        # (B, 8H)
            sg = _sigmoid(g)                 # one EUP pass over the whole slab
            tg = jnp.tanh(g)                 # one EUP pass over the whole slab
            # forward direction: lanes [0:4H) -> i, f, g, o
            c_f = sg[:, H:2 * H] * c_f + sg[:, 0:H] * tg[:, 2 * H:3 * H]
            h_f = sg[:, 3 * H:4 * H] * jnp.tanh(c_f)
            # backward direction: lanes [4H:8H) -> i, f, g, o
            c_b = sg[:, 5 * H:6 * H] * c_b + sg[:, 4 * H:5 * H] * tg[:, 6 * H:7 * H]
            h_b = sg[:, 7 * H:8 * H] * jnp.tanh(c_b)
            # stores are lane-disjoint and off the recurrent data chain
            out_buf[t * B:(t + 1) * B, 0:H] = h_f
            out_buf[tb * B:(tb + 1) * B, H:2 * H] = h_b
        xs = out_buf[...]                                      # (W*B, 2H); dropout = id
    h2 = xs

    # pick h at t = qlen-1 per batch via the precomputed selection matrix
    qst_feat = jnp.dot(sel_ref[...], h2, preferred_element_type=f32)           # (B, 2H)==(B, E)

    # -------- Attention (2 hops) + classifier ---------------------------------
    if INCLUDE_DEAD_ATTENTION_FLOPS:
        bf16 = jnp.bfloat16
        img_bf = img_e.astype(bf16)

        def hop(q_in, w1a, b1a, w1b, b1b, w2a, w2b, w3, b3):
            q = jnp.dot(q_in.astype(bf16), w1a[...], preferred_element_type=f32) + b1a[...]
            q = jnp.dot(q.astype(bf16), w1b[...], preferred_element_type=f32) + b1b[...]
            im = jnp.dot(img_bf, w2a[...], preferred_element_type=f32)
            im = jnp.dot(im.astype(bf16), w2b[...], preferred_element_type=f32)
            hh = jnp.tanh(jnp.dot(segT_ref[...], q, preferred_element_type=f32) + im)
            he = jnp.dot(hh, w3[...], preferred_element_type=f32) + b3[...]    # (B*S, 1)
            m = jnp.max(he, axis=1, keepdims=True)            # softmax over singleton dim
            ex = jnp.exp(he - m)
            p = ex * pl.reciprocal(jnp.sum(ex, axis=1, keepdims=True), approx=True)  # == 1
            return jnp.dot(seg_ref[...], p * img_e, preferred_element_type=f32)       # (B, E)

        u1 = qst_feat + hop(qst_feat, *att_refs[0:8])
        u2 = u1 + hop(u1, *att_refs[8:16])
    else:
        # p1 == p2 == 1 (softmax over a singleton axis), so each hop adds sum_S(img_feat)
        img_sum = jnp.dot(seg_ref[...], img_e, preferred_element_type=f32)     # (B, E)
        u2 = qst_feat + 2.0 * img_sum

    score = jnp.dot(u2, wfc_ref[...], preferred_element_type=f32) + bfc_ref[...]
    score_ref[...] = score.astype(score_ref.dtype)                             # (B, 128)


# ----------------------------- wrapper ----------------------------------------
def _vqa_pallas(img2d, onehot, sel, seg, params):
    att = params["att"]
    f32 = jnp.float32

    # direction-fused LSTM weights: one (in, 8H) input-projection matmul, one
    # block-diagonal (2H, 8H) hidden matmul and one summed bias per layer.
    lstm_args = []
    for l in range(NL):
        fw, bw = params["lstm"][l]["fwd"], params["lstm"][l]["bwd"]
        w_ih = jnp.concatenate([fw["w_ih"], bw["w_ih"]], axis=1)               # (in, 8H)
        z = jnp.zeros((H, 4 * H), f32)
        w_hh = jnp.concatenate(
            [jnp.concatenate([fw["w_hh"], z], axis=1),
             jnp.concatenate([z, bw["w_hh"]], axis=1)], axis=0)                # (2H, 8H)
        bias = jnp.concatenate([fw["b_ih"] + fw["b_hh"],
                                bw["b_ih"] + bw["b_hh"]], axis=1)              # (1, 8H)
        lstm_args += [w_ih, w_hh, bias]

    # lane-dense classifier: pad (E, A)->(E, 128); output is sliced back to A.
    wfc = jnp.pad(att["w_fc"], ((0, 0), (0, OUT_PAD - A)))
    bfc = jnp.pad(att["b_fc"], ((0, 0), (0, OUT_PAD - A)))

    args = [img2d, onehot, sel, seg,
            params["img_fc_w"], params["img_fc_b"], params["lookup_w"]] + lstm_args
    if INCLUDE_DEAD_ATTENTION_FLOPS:
        args += [jnp.transpose(seg)]                                           # segT (B*S, B)
        for hp in ("1", "2"):
            args += [att[f"w{hp}_1a"].astype(jnp.bfloat16), att[f"b{hp}_1a"],
                     att[f"w{hp}_1b"].astype(jnp.bfloat16), att[f"b{hp}_1b"],
                     att[f"w{hp}_2a"].astype(jnp.bfloat16),
                     att[f"w{hp}_2b"].astype(jnp.bfloat16),
                     att[f"w{hp}_3a"], att[f"b{hp}_3a"]]
    args += [wfc, bfc]

    vmem = pl.BlockSpec(memory_space=pltpu.MemorySpace.VMEM)
    # actual footprint: ~0.8 MiB fast path / ~11 MiB with the dead-FLOPs path;
    # a tight scoped limit leaves headroom for surrounding XLA fusions.
    vmem_need = (16 if INCLUDE_DEAD_ATTENTION_FLOPS else 2) * 1024 * 1024
    score_pad = pl.pallas_call(
        _vqa_kernel,
        out_shape=jax.ShapeDtypeStruct((B, OUT_PAD), jnp.float32),
        in_specs=[vmem] * len(args),
        out_specs=vmem,
        scratch_shapes=[pltpu.VMEM((W_Q * B, 2 * H), jnp.float32)
                        for _ in range(NL)],                                   # per-layer h
        compiler_params=pltpu.CompilerParams(vmem_limit_bytes=vmem_need),
    )(*args)
    return score_pad[:, :A]


@jax.jit
def vqa_forward(img, qst, qlen, params):
    # ImgEncoder's literal `.view(-1, 512)` on the NCHW feature map (quirk kept).
    img2d = img.reshape(-1, CIN)                                               # (B*S, CIN)

    # time-major token ids (row r = t*B + b) -> one-hot with column 0 dropped,
    # exactly nn.Linear(vocab, E, bias=False) applied to one_hot[:, :, 1:]
    qst_tm = jnp.transpose(qst).reshape(W_Q * B)
    onehot = (jnp.arange(V, dtype=jnp.int32)[None, :]
              == (qst_tm - 1)[:, None]).astype(jnp.float32)                    # (W*B, V)

    # qst-feature gather: sel[b, (qlen[b]-1)*B + b] = 1
    rows = jnp.arange(B, dtype=jnp.int32)[:, None]
    cols = jnp.arange(W_Q * B, dtype=jnp.int32)[None, :]
    sel = (cols == (qlen.reshape(B, 1) - 1) * B + rows).astype(jnp.float32)    # (B, W*B)

    # per-batch spatial-sum selector over the (B*S, E) image slab
    r = jnp.arange(B * S, dtype=jnp.int32)[None, :]
    seg = ((r >= rows * S) & (r < (rows + 1) * S)).astype(jnp.float32)         # (B, B*S)

    return _vqa_pallas(img2d, onehot, sel, seg, params)


# ----------------------------- deterministic params ---------------------------
def _init(key, shape, scale=0.05):
    return scale * jax.random.normal(key, shape, jnp.float32)


def init_params(key):
    ks = iter(jax.random.split(key, 64))
    p = {}
    p["img_fc_w"] = _init(next(ks), (CIN, E))
    p["img_fc_b"] = _init(next(ks), (1, E))
    p["lookup_w"] = _init(next(ks), (V, E))            # Linear(V, E, bias=False)
    lstm = []
    for l in range(NL):
        in_dim = E if l == 0 else 2 * H
        layer = {}
        for d in ("fwd", "bwd"):
            # NOTE: stored (in, 4H)/(H, 4H); pretrained PyTorch LSTM weights are
            # (4H, in)/(4H, H) and MUST be transposed when loading a checkpoint.
            layer[d] = dict(
                w_ih=_init(next(ks), (in_dim, 4 * H)),
                w_hh=_init(next(ks), (H, 4 * H)),
                b_ih=_init(next(ks), (1, 4 * H)),
                b_hh=_init(next(ks), (1, 4 * H)),
            )
        lstm.append(layer)
    p["lstm"] = lstm
    att = {}
    for hp in ("1", "2"):
        att[f"w{hp}_1a"] = _init(next(ks), (E, D1))
        att[f"b{hp}_1a"] = _init(next(ks), (1, D1))
        att[f"w{hp}_1b"] = _init(next(ks), (D1, D2))
        att[f"b{hp}_1b"] = _init(next(ks), (1, D2))
        att[f"w{hp}_2a"] = _init(next(ks), (E, D1))
        att[f"w{hp}_2b"] = _init(next(ks), (D1, D2))
        att[f"w{hp}_3a"] = _init(next(ks), (D2, 1))
        att[f"b{hp}_3a"] = _init(next(ks), (1, 1))
    att["w_fc"] = _init(next(ks), (E, A))
    att["b_fc"] = _init(next(ks), (1, A))
    p["att"] = att
    return p


if __name__ == "__main__":
    key = jax.random.PRNGKey(0)
    pkey, ikey, qkey = jax.random.split(key, 3)
    params = init_params(pkey)

    img = jax.random.normal(ikey, (B, CIN, HS, WS), jnp.float32)         # NCHW backbone feats
    qst = jax.random.randint(qkey, (B, W_Q), 1, V + 1, dtype=jnp.int32)  # token ids in [1, V]
    qlen = jnp.array([4, 6], dtype=jnp.int32)

    out = vqa_forward(img, qst, qlen, params)
    out = jax.block_until_ready(out)
    assert out.shape == (B, A), out.shape
    print("KERNEL_OK")
</pallas_src>

<mosaic_0001>
module attributes {stable_mosaic.version = 11 : i64} {
  func.func @_vqa_kernel(%arg0: memref<16x512xf32, #tpu.memory_space<vmem>>, %arg1: memref<12x50xf32, #tpu.memory_space<vmem>>, %arg2: memref<2x12xf32, #tpu.memory_space<vmem>>, %arg3: memref<2x16xf32, #tpu.memory_space<vmem>>, %arg4: memref<512x64xf32, #tpu.memory_space<vmem>>, %arg5: memref<1x64xf32, #tpu.memory_space<vmem>>, %arg6: memref<50x64xf32, #tpu.memory_space<vmem>>, %arg7: memref<64x256xf32, #tpu.memory_space<vmem>>, %arg8: memref<64x256xf32, #tpu.memory_space<vmem>>, %arg9: memref<1x256xf32, #tpu.memory_space<vmem>>, %arg10: memref<64x256xf32, #tpu.memory_space<vmem>>, %arg11: memref<64x256xf32, #tpu.memory_space<vmem>>, %arg12: memref<1x256xf32, #tpu.memory_space<vmem>>, %arg13: memref<64x128xf32, #tpu.memory_space<vmem>>, %arg14: memref<1x128xf32, #tpu.memory_space<vmem>>, %arg15: memref<2x128xf32, #tpu.memory_space<vmem>>, %arg16: memref<12x64xf32, #tpu.memory_space<vmem>>, %arg17: memref<12x64xf32, #tpu.memory_space<vmem>>) attributes {dimension_semantics = [], scalar_prefetch = 0 : i64, scratch_operands = 2 : i64, tpu.core_type = #tpu.core_type<tc>} {
    %c0 = arith.constant 0 : index
    %c0_0 = arith.constant 0 : index
    %0 = vector.load %arg0[%c0, %c0_0] : memref<16x512xf32, #tpu.memory_space<vmem>>, vector<16x512xf32>
    %c0_1 = arith.constant 0 : index
    %c0_2 = arith.constant 0 : index
    %1 = vector.load %arg4[%c0_1, %c0_2] : memref<512x64xf32, #tpu.memory_space<vmem>>, vector<512x64xf32>
    %cst = arith.constant dense<0.000000e+00> : vector<16x64xf32>
    %2 = tpu.matmul %0, %1, %cst {dimension_numbers = #tpu.dot_dimension_numbers<[1], [0], [0], [1], [0, 0, 1, 1], [], []>} : vector<16x512xf32>, vector<512x64xf32>, vector<16x64xf32> -> vector<16x64xf32>
    %c0_3 = arith.constant 0 : index
    %c0_4 = arith.constant 0 : index
    %3 = vector.load %arg5[%c0_3, %c0_4] : memref<1x64xf32, #tpu.memory_space<vmem>>, vector<1x64xf32>
    %4 = vector.broadcast %3 : vector<1x64xf32> to vector<16x64xf32>
    %5 = arith.addf %2, %4 : vector<16x64xf32>
    %6 = math.tanh %5 : vector<16x64xf32>
    %c0_5 = arith.constant 0 : index
    %c0_6 = arith.constant 0 : index
    %7 = vector.load %arg1[%c0_5, %c0_6] : memref<12x50xf32, #tpu.memory_space<vmem>>, vector<12x50xf32>
    %c0_7 = arith.constant 0 : index
    %c0_8 = arith.constant 0 : index
    %8 = vector.load %arg6[%c0_7, %c0_8] : memref<50x64xf32, #tpu.memory_space<vmem>>, vector<50x64xf32>
    %cst_9 = arith.constant dense<0.000000e+00> : vector<12x64xf32>
    %9 = tpu.matmul %7, %8, %cst_9 {dimension_numbers = #tpu.dot_dimension_numbers<[1], [0], [0], [1], [0, 0, 1, 1], [], []>} : vector<12x50xf32>, vector<50x64xf32>, vector<12x64xf32> -> vector<12x64xf32>
    %10 = math.tanh %9 : vector<12x64xf32>
    %c0_10 = arith.constant 0 : index
    %c0_11 = arith.constant 0 : index
    %11 = vector.load %arg8[%c0_10, %c0_11] : memref<64x256xf32, #tpu.memory_space<vmem>>, vector<64x256xf32>
    %c0_12 = arith.constant 0 : index
    %c0_13 = arith.constant 0 : index
    %12 = vector.load %arg7[%c0_12, %c0_13] : memref<64x256xf32, #tpu.memory_space<vmem>>, vector<64x256xf32>
    %cst_14 = arith.constant dense<0.000000e+00> : vector<12x256xf32>
    %13 = tpu.matmul %10, %12, %cst_14 {dimension_numbers = #tpu.dot_dimension_numbers<[1], [0], [0], [1], [0, 0, 1, 1], [], []>} : vector<12x64xf32>, vector<64x256xf32>, vector<12x256xf32> -> vector<12x256xf32>
    %c0_15 = arith.constant 0 : index
    %c0_16 = arith.constant 0 : index
    %14 = vector.load %arg9[%c0_15, %c0_16] : memref<1x256xf32, #tpu.memory_space<vmem>>, vector<1x256xf32>
    %15 = vector.broadcast %14 : vector<1x256xf32> to vector<12x256xf32>
    %16 = arith.addf %13, %15 : vector<12x256xf32>
    %cst_17 = arith.constant 0.000000e+00 : f32
    %17 = vector.broadcast %cst_17 : f32 to vector<2x32xf32>
    %cst_18 = arith.constant 0.000000e+00 : f32
    %18 = vector.broadcast %cst_18 : f32 to vector<2x32xf32>
    %cst_19 = arith.constant 0.000000e+00 : f32
    %19 = vector.broadcast %cst_19 : f32 to vector<2x32xf32>
    %cst_20 = arith.constant 0.000000e+00 : f32
    %20 = vector.broadcast %cst_20 : f32 to vector<2x32xf32>
    %21 = vector.extract_strided_slice %16 {offsets = [0, 0], sizes = [2, 128], strides = [1, 1]} : vector<12x256xf32> to vector<2x128xf32>
    %22 = vector.extract_strided_slice %16 {offsets = [10, 128], sizes = [2, 128], strides = [1, 1]} : vector<12x256xf32> to vector<2x128xf32>
    %23 = tpu.concatenate %21, %22 in 1 : vector<2x128xf32>, vector<2x128xf32> -> vector<2x256xf32>
    %24 = tpu.concatenate %17, %19 in 1 : vector<2x32xf32>, vector<2x32xf32> -> vector<2x64xf32>
    %cst_21 = arith.constant dense<0.000000e+00> : vector<2x256xf32>
    %25 = tpu.matmul %24, %11, %cst_21 {dimension_numbers = #tpu.dot_dimension_numbers<[1], [0], [0], [1], [0, 0, 1, 1], [], []>} : vector<2x64xf32>, vector<64x256xf32>, vector<2x256xf32> -> vector<2x256xf32>
    %26 = arith.addf %23, %25 : vector<2x256xf32>
    %cst_22 = arith.constant 0.000000e+00 : f32
    %27 = vector.broadcast %cst_22 : f32 to vector<2x256xf32>
    %28 = arith.subf %27, %26 : vector<2x256xf32>
    %29 = math.exp %28 : vector<2x256xf32>
    %cst_23 = arith.constant 1.000000e+00 : f32
    %30 = vector.broadcast %cst_23 : f32 to vector<2x256xf32>
    %31 = arith.addf %30, %29 : vector<2x256xf32>
    %32 = tpu.reciprocal %31 {approx = true} : vector<2x256xf32> -> vector<2x256xf32>
    %33 = math.tanh %26 : vector<2x256xf32>
    %34 = vector.extract_strided_slice %32 {offsets = [0, 32], sizes = [2, 32], strides = [1, 1]} : vector<2x256xf32> to vector<2x32xf32>
    %35 = arith.mulf %34, %18 : vector<2x32xf32>
    %36 = vector.extract_strided_slice %32 {offsets = [0, 0], sizes = [2, 32], strides = [1, 1]} : vector<2x256xf32> to vector<2x32xf32>
    %37 = vector.extract_strided_slice %33 {offsets = [0, 64], sizes = [2, 32], strides = [1, 1]} : vector<2x256xf32> to vector<2x32xf32>
    %38 = arith.mulf %36, %37 : vector<2x32xf32>
    %39 = arith.addf %35, %38 : vector<2x32xf32>
    %40 = vector.extract_strided_slice %32 {offsets = [0, 96], sizes = [2, 32], strides = [1, 1]} : vector<2x256xf32> to vector<2x32xf32>
    %41 = math.tanh %39 : vector<2x32xf32>
    %42 = arith.mulf %40, %41 : vector<2x32xf32>
    %43 = vector.extract_strided_slice %32 {offsets = [0, 160], sizes = [2, 32], strides = [1, 1]} : vector<2x256xf32> to vector<2x32xf32>
    %44 = arith.mulf %43, %20 : vector<2x32xf32>
    %45 = vector.extract_strided_slice %32 {offsets = [0, 128], sizes = [2, 32], strides = [1, 1]} : vector<2x256xf32> to vector<2x32xf32>
    %46 = vector.extract_strided_slice %33 {offsets = [0, 192], sizes = [2, 32], strides = [1, 1]} : vector<2x256xf32> to vector<2x32xf32>
    %47 = arith.mulf %45, %46 : vector<2x32xf32>
    %48 = arith.addf %44, %47 : vector<2x32xf32>
    %49 = vector.extract_strided_slice %32 {offsets = [0, 224], sizes = [2, 32], strides = [1, 1]} : vector<2x256xf32> to vector<2x32xf32>
    %50 = math.tanh %48 : vector<2x32xf32>
    %51 = arith.mulf %49, %50 : vector<2x32xf32>
    %c0_24 = arith.constant 0 : index
    %c0_25 = arith.constant 0 : index
    %52 = vector.load %arg16[%c0_24, %c0_25] : memref<12x64xf32, #tpu.memory_space<vmem>>, vector<2x32xf32>
    tpu.vector_store %arg16[%c0_24, %c0_25], %42 {strides = array<i32>} : memref<12x64xf32, #tpu.memory_space<vmem>>, vector<2x32xf32>,
    %c10 = arith.constant 10 : index
    %c32 = arith.constant 32 : index
    %53 = vector.load %arg16[%c10, %c32] : memref<12x64xf32, #tpu.memory_space<vmem>>, vector<2x32xf32>
    tpu.vector_store %arg16[%c10, %c32], %51 {strides = array<i32>} : memref<12x64xf32, #tpu.memory_space<vmem>>, vector<2x32xf32>,
    %54 = vector.extract_strided_slice %16 {offsets = [2, 0], sizes = [2, 128], strides = [1, 1]} : vector<12x256xf32> to vector<2x128xf32>
    %55 = vector.extract_strided_slice %16 {offsets = [8, 128], sizes = [2, 128], strides = [1, 1]} : vector<12x256xf32> to vector<2x128xf32>
    %56 = tpu.concatenate %54, %55 in 1 : vector<2x128xf32>, vector<2x128xf32> -> vector<2x256xf32>
    %57 = tpu.concatenate %42, %51 in 1 : vector<2x32xf32>, vector<2x32xf32> -> vector<2x64xf32>
    %cst_26 = arith.constant dense<0.000000e+00> : vector<2x256xf32>
    %58 = tpu.matmul %57, %11, %cst_26 {dimension_numbers = #tpu.dot_dimension_numbers<[1], [0], [0], [1], [0, 0, 1, 1], [], []>} : vector<2x64xf32>, vector<64x256xf32>, vector<2x256xf32> -> vector<2x256xf32>
    %59 = arith.addf %56, %58 : vector<2x256xf32>
    %cst_27 = arith.constant 0.000000e+00 : f32
    %60 = vector.broadcast %cst_27 : f32 to vector<2x256xf32>
    %61 = arith.subf %60, %59 : vector<2x256xf32>
    %62 = math.exp %61 : vector<2x256xf32>
    %cst_28 = arith.constant 1.000000e+00 : f32
    %63 = vector.broadcast %cst_28 : f32 to vector<2x256xf32>
    %64 = arith.addf %63, %62 : vector<2x256xf32>
    %65 = tpu.reciprocal %64 {approx = true} : vector<2x256xf32> -> vector<2x256xf32>
    %66 = math.tanh %59 : vector<2x256xf32>
    %67 = vector.extract_strided_slice %65 {offsets = [0, 32], sizes = [2, 32], strides = [1, 1]} : vector<2x256xf32> to vector<2x32xf32>
    %68 = arith.mulf %67, %39 : vector<2x32xf32>
    %69 = vector.extract_strided_slice %65 {offsets = [0, 0], sizes = [2, 32], strides = [1, 1]} : vector<2x256xf32> to vector<2x32xf32>
    %70 = vector.extract_strided_slice %66 {offsets = [0, 64], sizes = [2, 32], strides = [1, 1]} : vector<2x256xf32> to vector<2x32xf32>
    %71 = arith.mulf %69, %70 : vector<2x32xf32>
    %72 = arith.addf %68, %71 : vector<2x32xf32>
    %73 = vector.extract_strided_slice %65 {offsets = [0, 96], sizes = [2, 32], strides = [1, 1]} : vector<2x256xf32> to vector<2x32xf32>
    %74 = math.tanh %72 : vector<2x32xf32>
    %75 = arith.mulf %73, %74 : vector<2x32xf32>
    %76 = vector.extract_strided_slice %65 {offsets = [0, 160], sizes = [2, 32], strides = [1, 1]} : vector<2x256xf32> to vector<2x32xf32>
    %77 = arith.mulf %76, %48 : vector<2x32xf32>
    %78 = vector.extract_strided_slice %65 {offsets = [0, 128], sizes = [2, 32], strides = [1, 1]} : vector<2x256xf32> to vector<2x32xf32>
    %79 = vector.extract_strided_slice %66 {offsets = [0, 192], sizes = [2, 32], strides = [1, 1]} : vector<2x256xf32> to vector<2x32xf32>
    %80 = arith.mulf %78, %79 : vector<2x32xf32>
    %81 = arith.addf %77, %80 : vector<2x32xf32>
    %82 = vector.extract_strided_slice %65 {offsets = [0, 224], sizes = [2, 32], strides = [1, 1]} : vector<2x256xf32> to vector<2x32xf32>
    %83 = math.tanh %81 : vector<2x32xf32>
    %84 = arith.mulf %82, %83 : vector<2x32xf32>
    %c2 = arith.constant 2 : index
    %c0_29 = arith.constant 0 : index
    %85 = vector.load %arg16[%c2, %c0_29] : memref<12x64xf32, #tpu.memory_space<vmem>>, vector<2x32xf32>
    tpu.vector_store %arg16[%c2, %c0_29], %75 {strides = array<i32>} : memref<12x64xf32, #tpu.memory_space<vmem>>, vector<2x32xf32>,
    %c8 = arith.constant 8 : index
    %c32_30 = arith.constant 32 : index
    %86 = vector.load %arg16[%c8, %c32_30] : memref<12x64xf32, #tpu.memory_space<vmem>>, vector<2x32xf32>
    tpu.vector_store %arg16[%c8, %c32_30], %84 {strides = array<i32>} : memref<12x64xf32, #tpu.memory_space<vmem>>, vector<2x32xf32>,
    %87 = vector.extract_strided_slice %16 {offsets = [4, 0], sizes = [2, 128], strides = [1, 1]} : vector<12x256xf32> to vector<2x128xf32>
    %88 = vector.extract_strided_slice %16 {offsets = [6, 128], sizes = [2, 128], strides = [1, 1]} : vector<12x256xf32> to vector<2x128xf32>
    %89 = tpu.concatenate %87, %88 in 1 : vector<2x128xf32>, vector<2x128xf32> -> vector<2x256xf32>
    %90 = tpu.concatenate %75, %84 in 1 : vector<2x32xf32>, vector<2x32xf32> -> vector<2x64xf32>
    %cst_31 = arith.constant dense<0.000000e+00> : vector<2x256xf32>
    %91 = tpu.matmul %90, %11, %cst_31 {dimension_numbers = #tpu.dot_dimension_numbers<[1], [0], [0], [1], [0, 0, 1, 1], [], []>} : vector<2x64xf32>, vector<64x256xf32>, vector<2x256xf32> -> vector<2x256xf32>
    %92 = arith.addf %89, %91 : vector<2x256xf32>
    %cst_32 = arith.constant 0.000000e+00 : f32
    %93 = vector.broadcast %cst_32 : f32 to vector<2x256xf32>
    %94 = arith.subf %93, %92 : vector<2x256xf32>
    %95 = math.exp %94 : vector<2x256xf32>
    %cst_33 = arith.constant 1.000000e+00 : f32
    %96 = vector.broadcast %cst_33 : f32 to vector<2x256xf32>
    %97 = arith.addf %96, %95 : vector<2x256xf32>
    %98 = tpu.reciprocal %97 {approx = true} : vector<2x256xf32> -> vector<2x256xf32>
    %99 = math.tanh %92 : vector<2x256xf32>
    %100 = vector.extract_strided_slice %98 {offsets = [0, 32], sizes = [2, 32], strides = [1, 1]} : vector<2x256xf32> to vector<2x32xf32>
    %101 = arith.mulf %100, %72 : vector<2x32xf32>
    %102 = vector.extract_strided_slice %98 {offsets = [0, 0], sizes = [2, 32], strides = [1, 1]} : vector<2x256xf32> to vector<2x32xf32>
    %103 = vector.extract_strided_slice %99 {offsets = [0, 64], sizes = [2, 32], strides = [1, 1]} : vector<2x256xf32> to vector<2x32xf32>
    %104 = arith.mulf %102, %103 : vector<2x32xf32>
    %105 = arith.addf %101, %104 : vector<2x32xf32>
    %106 = vector.extract_strided_slice %98 {offsets = [0, 96], sizes = [2, 32], strides = [1, 1]} : vector<2x256xf32> to vector<2x32xf32>
    %107 = math.tanh %105 : vector<2x32xf32>
    %108 = arith.mulf %106, %107 : vector<2x32xf32>
    %109 = vector.extract_strided_slice %98 {offsets = [0, 160], sizes = [2, 32], strides = [1, 1]} : vector<2x256xf32> to vector<2x32xf32>
    %110 = arith.mulf %109, %81 : vector<2x32xf32>
    %111 = vector.extract_strided_slice %98 {offsets = [0, 128], sizes = [2, 32], strides = [1, 1]} : vector<2x256xf32> to vector<2x32xf32>
    %112 = vector.extract_strided_slice %99 {offsets = [0, 192], sizes = [2, 32], strides = [1, 1]} : vector<2x256xf32> to vector<2x32xf32>
    %113 = arith.mulf %111, %112 : vector<2x32xf32>
    %114 = arith.addf %110, %113 : vector<2x32xf32>
    %115 = vector.extract_strided_slice %98 {offsets = [0, 224], sizes = [2, 32], strides = [1, 1]} : vector<2x256xf32> to vector<2x32xf32>
    %116 = math.tanh %114 : vector<2x32xf32>
    %117 = arith.mulf %115, %116 : vector<2x32xf32>
    %c4 = arith.constant 4 : index
    %c0_34 = arith.constant 0 : index
    %118 = vector.load %arg16[%c4, %c0_34] : memref<12x64xf32, #tpu.memory_space<vmem>>, vector<2x32xf32>
    tpu.vector_store %arg16[%c4, %c0_34], %108 {strides = array<i32>} : memref<12x64xf32, #tpu.memory_space<vmem>>, vector<2x32xf32>,
    %c6 = arith.constant 6 : index
    %c32_35 = arith.constant 32 : index
    %119 = vector.load %arg16[%c6, %c32_35] : memref<12x64xf32, #tpu.memory_space<vmem>>, vector<2x32xf32>
    tpu.vector_store %arg16[%c6, %c32_35], %117 {strides = array<i32>} : memref<12x64xf32, #tpu.memory_space<vmem>>, vector<2x32xf32>,
    %120 = vector.extract_strided_slice %16 {offsets = [6, 0], sizes = [2, 128], strides = [1, 1]} : vector<12x256xf32> to vector<2x128xf32>
    %121 = vector.extract_strided_slice %16 {offsets = [4, 128], sizes = [2, 128], strides = [1, 1]} : vector<12x256xf32> to vector<2x128xf32>
    %122 = tpu.concatenate %120, %121 in 1 : vector<2x128xf32>, vector<2x128xf32> -> vector<2x256xf32>
    %123 = tpu.concatenate %108, %117 in 1 : vector<2x32xf32>, vector<2x32xf32> -> vector<2x64xf32>
    %cst_36 = arith.constant dense<0.000000e+00> : vector<2x256xf32>
    %124 = tpu.matmul %123, %11, %cst_36 {dimension_numbers = #tpu.dot_dimension_numbers<[1], [0], [0], [1], [0, 0, 1, 1], [], []>} : vector<2x64xf32>, vector<64x256xf32>, vector<2x256xf32> -> vector<2x256xf32>
    %125 = arith.addf %122, %124 : vector<2x256xf32>
    %cst_37 = arith.constant 0.000000e+00 : f32
    %126 = vector.broadcast %cst_37 : f32 to vector<2x256xf32>
    %127 = arith.subf %126, %125 : vector<2x256xf32>
    %128 = math.exp %127 : vector<2x256xf32>
    %cst_38 = arith.constant 1.000000e+00 : f32
    %129 = vector.broadcast %cst_38 : f32 to vector<2x256xf32>
    %130 = arith.addf %129, %128 : vector<2x256xf32>
    %131 = tpu.reciprocal %130 {approx = true} : vector<2x256xf32> -> vector<2x256xf32>
    %132 = math.tanh %125 : vector<2x256xf32>
    %133 = vector.extract_strided_slice %131 {offsets = [0, 32], sizes = [2, 32], strides = [1, 1]} : vector<2x256xf32> to vector<2x32xf32>
    %134 = arith.mulf %133, %105 : vector<2x32xf32>
    %135 = vector.extract_strided_slice %131 {offsets = [0, 0], sizes = [2, 32], strides = [1, 1]} : vector<2x256xf32> to vector<2x32xf32>
    %136 = vector.extract_strided_slice %132 {offsets = [0, 64], sizes = [2, 32], strides = [1, 1]} : vector<2x256xf32> to vector<2x32xf32>
    %137 = arith.mulf %135, %136 : vector<2x32xf32>
    %138 = arith.addf %134, %137 : vector<2x32xf32>
    %139 = vector.extract_strided_slice %131 {offsets = [0, 96], sizes = [2, 32], strides = [1, 1]} : vector<2x256xf32> to vector<2x32xf32>
    %140 = math.tanh %138 : vector<2x32xf32>
    %141 = arith.mulf %139, %140 : vector<2x32xf32>
    %142 = vector.extract_strided_slice %131 {offsets = [0, 160], sizes = [2, 32], strides = [1, 1]} : vector<2x256xf32> to vector<2x32xf32>
    %143 = arith.mulf %142, %114 : vector<2x32xf32>
    %144 = vector.extract_strided_slice %131 {offsets = [0, 128], sizes = [2, 32], strides = [1, 1]} : vector<2x256xf32> to vector<2x32xf32>
    %145 = vector.extract_strided_slice %132 {offsets = [0, 192], sizes = [2, 32], strides = [1, 1]} : vector<2x256xf32> to vector<2x32xf32>
    %146 = arith.mulf %144, %145 : vector<2x32xf32>
    %147 = arith.addf %143, %146 : vector<2x32xf32>
    %148 = vector.extract_strided_slice %131 {offsets = [0, 224], sizes = [2, 32], strides = [1, 1]} : vector<2x256xf32> to vector<2x32xf32>
    %149 = math.tanh %147 : vector<2x32xf32>
    %150 = arith.mulf %148, %149 : vector<2x32xf32>
    %c6_39 = arith.constant 6 : index
    %c0_40 = arith.constant 0 : index
    %151 = vector.load %arg16[%c6_39, %c0_40] : memref<12x64xf32, #tpu.memory_space<vmem>>, vector<2x32xf32>
    tpu.vector_store %arg16[%c6_39, %c0_40], %141 {strides = array<i32>} : memref<12x64xf32, #tpu.memory_space<vmem>>, vector<2x32xf32>,
    %c4_41 = arith.constant 4 : index
    %c32_42 = arith.constant 32 : index
    %152 = vector.load %arg16[%c4_41, %c32_42] : memref<12x64xf32, #tpu.memory_space<vmem>>, vector<2x32xf32>
    tpu.vector_store %arg16[%c4_41, %c32_42], %150 {strides = array<i32>} : memref<12x64xf32, #tpu.memory_space<vmem>>, vector<2x32xf32>,
    %153 = vector.extract_strided_slice %16 {offsets = [8, 0], sizes = [2, 128], strides = [1, 1]} : vector<12x256xf32> to vector<2x128xf32>
    %154 = vector.extract_strided_slice %16 {offsets = [2, 128], sizes = [2, 128], strides = [1, 1]} : vector<12x256xf32> to vector<2x128xf32>
    %155 = tpu.concatenate %153, %154 in 1 : vector<2x128xf32>, vector<2x128xf32> -> vector<2x256xf32>
    %156 = tpu.concatenate %141, %150 in 1 : vector<2x32xf32>, vector<2x32xf32> -> vector<2x64xf32>
    %cst_43 = arith.constant dense<0.000000e+00> : vector<2x256xf32>
    %157 = tpu.matmul %156, %11, %cst_43 {dimension_numbers = #tpu.dot_dimension_numbers<[1], [0], [0], [1], [0, 0, 1, 1], [], []>} : vector<2x64xf32>, vector<64x256xf32>, vector<2x256xf32> -> vector<2x256xf32>
    %158 = arith.addf %155, %157 : vector<2x256xf32>
    %cst_44 = arith.constant 0.000000e+00 : f32
    %159 = vector.broadcast %cst_44 : f32 to vector<2x256xf32>
    %160 = arith.subf %159, %158 : vector<2x256xf32>
    %161 = math.exp %160 : vector<2x256xf32>
    %cst_45 = arith.constant 1.000000e+00 : f32
    %162 = vector.broadcast %cst_45 : f32 to vector<2x256xf32>
    %163 = arith.addf %162, %161 : vector<2x256xf32>
    %164 = tpu.reciprocal %163 {approx = true} : vector<2x256xf32> -> vector<2x256xf32>
    %165 = math.tanh %158 : vector<2x256xf32>
    %166 = vector.extract_strided_slice %164 {offsets = [0, 32], sizes = [2, 32], strides = [1, 1]} : vector<2x256xf32> to vector<2x32xf32>
    %167 = arith.mulf %166, %138 : vector<2x32xf32>
    %168 = vector.extract_strided_slice %164 {offsets = [0, 0], sizes = [2, 32], strides = [1, 1]} : vector<2x256xf32> to vector<2x32xf32>
    %169 = vector.extract_strided_slice %165 {offsets = [0, 64], sizes = [2, 32], strides = [1, 1]} : vector<2x256xf32> to vector<2x32xf32>
    %170 = arith.mulf %168, %169 : vector<2x32xf32>
    %171 = arith.addf %167, %170 : vector<2x32xf32>
    %172 = vector.extract_strided_slice %164 {offsets = [0, 96], sizes = [2, 32], strides = [1, 1]} : vector<2x256xf32> to vector<2x32xf32>
    %173 = math.tanh %171 : vector<2x32xf32>
    %174 = arith.mulf %172, %173 : vector<2x32xf32>
    %175 = vector.extract_strided_slice %164 {offsets = [0, 160], sizes = [2, 32], strides = [1, 1]} : vector<2x256xf32> to vector<2x32xf32>
    %176 = arith.mulf %175, %147 : vector<2x32xf32>
    %177 = vector.extract_strided_slice %164 {offsets = [0, 128], sizes = [2, 32], strides = [1, 1]} : vector<2x256xf32> to vector<2x32xf32>
    %178 = vector.extract_strided_slice %165 {offsets = [0, 192], sizes = [2, 32], strides = [1, 1]} : vector<2x256xf32> to vector<2x32xf32>
    %179 = arith.mulf %177, %178 : vector<2x32xf32>
    %180 = arith.addf %176, %179 : vector<2x32xf32>
    %181 = vector.extract_strided_slice %164 {offsets = [0, 224], sizes = [2, 32], strides = [1, 1]} : vector<2x256xf32> to vector<2x32xf32>
    %182 = math.tanh %180 : vector<2x32xf32>
    %183 = arith.mulf %181, %182 : vector<2x32xf32>
    %c8_46 = arith.constant 8 : index
    %c0_47 = arith.constant 0 : index
    %184 = vector.load %arg16[%c8_46, %c0_47] : memref<12x64xf32, #tpu.memory_space<vmem>>, vector<2x32xf32>
    tpu.vector_store %arg16[%c8_46, %c0_47], %174 {strides = array<i32>} : memref<12x64xf32, #tpu.memory_space<vmem>>, vector<2x32xf32>,
    %c2_48 = arith.constant 2 : index
    %c32_49 = arith.constant 32 : index
    %185 = vector.load %arg16[%c2_48, %c32_49] : memref<12x64xf32, #tpu.memory_space<vmem>>, vector<2x32xf32>
    tpu.vector_store %arg16[%c2_48, %c32_49], %183 {strides = array<i32>} : memref<12x64xf32, #tpu.memory_space<vmem>>, vector<2x32xf32>,
    %186 = vector.extract_strided_slice %16 {offsets = [10, 0], sizes = [2, 128], strides = [1, 1]} : vector<12x256xf32> to vector<2x128xf32>
    %187 = vector.extract_strided_slice %16 {offsets = [0, 128], sizes = [2, 128], strides = [1, 1]} : vector<12x256xf32> to vector<2x128xf32>
    %188 = tpu.concatenate %186, %187 in 1 : vector<2x128xf32>, vector<2x128xf32> -> vector<2x256xf32>
    %189 = tpu.concatenate %174, %183 in 1 : vector<2x32xf32>, vector<2x32xf32> -> vector<2x64xf32>
    %cst_50 = arith.constant dense<0.000000e+00> : vector<2x256xf32>
    %190 = tpu.matmul %189, %11, %cst_50 {dimension_numbers = #tpu.dot_dimension_numbers<[1], [0], [0], [1], [0, 0, 1, 1], [], []>} : vector<2x64xf32>, vector<64x256xf32>, vector<2x256xf32> -> vector<2x256xf32>
    %191 = arith.addf %188, %190 : vector<2x256xf32>
    %cst_51 = arith.constant 0.000000e+00 : f32
    %192 = vector.broadcast %cst_51 : f32 to vector<2x256xf32>
    %193 = arith.subf %192, %191 : vector<2x256xf32>
    %194 = math.exp %193 : vector<2x256xf32>
    %cst_52 = arith.constant 1.000000e+00 : f32
    %195 = vector.broadcast %cst_52 : f32 to vector<2x256xf32>
    %196 = arith.addf %195, %194 : vector<2x256xf32>
    %197 = tpu.reciprocal %196 {approx = true} : vector<2x256xf32> -> vector<2x256xf32>
    %198 = math.tanh %191 : vector<2x256xf32>
    %199 = vector.extract_strided_slice %197 {offsets = [0, 32], sizes = [2, 32], strides = [1, 1]} : vector<2x256xf32> to vector<2x32xf32>
    %200 = arith.mulf %199, %171 : vector<2x32xf32>
    %201 = vector.extract_strided_slice %197 {offsets = [0, 0], sizes = [2, 32], strides = [1, 1]} : vector<2x256xf32> to vector<2x32xf32>
    %202 = vector.extract_strided_slice %198 {offsets = [0, 64], sizes = [2, 32], strides = [1, 1]} : vector<2x256xf32> to vector<2x32xf32>
    %203 = arith.mulf %201, %202 : vector<2x32xf32>
    %204 = arith.addf %200, %203 : vector<2x32xf32>
    %205 = vector.extract_strided_slice %197 {offsets = [0, 96], sizes = [2, 32], strides = [1, 1]} : vector<2x256xf32> to vector<2x32xf32>
    %206 = math.tanh %204 : vector<2x32xf32>
    %207 = arith.mulf %205, %206 : vector<2x32xf32>
    %208 = vector.extract_strided_slice %197 {offsets = [0, 160], sizes = [2, 32], strides = [1, 1]} : vector<2x256xf32> to vector<2x32xf32>
    %209 = arith.mulf %208, %180 : vector<2x32xf32>
    %210 = vector.extract_strided_slice %197 {offsets = [0, 128], sizes = [2, 32], strides = [1, 1]} : vector<2x256xf32> to vector<2x32xf32>
    %211 = vector.extract_strided_slice %198 {offsets = [0, 192], sizes = [2, 32], strides = [1, 1]} : vector<2x256xf32> to vector<2x32xf32>
    %212 = arith.mulf %210, %211 : vector<2x32xf32>
    %213 = arith.addf %209, %212 : vector<2x32xf32>
    %214 = vector.extract_strided_slice %197 {offsets = [0, 224], sizes = [2, 32], strides = [1, 1]} : vector<2x256xf32> to vector<2x32xf32>
    %215 = math.tanh %213 : vector<2x32xf32>
    %216 = arith.mulf %214, %215 : vector<2x32xf32>
    %c10_53 = arith.constant 10 : index
    %c0_54 = arith.constant 0 : index
    %217 = vector.load %arg16[%c10_53, %c0_54] : memref<12x64xf32, #tpu.memory_space<vmem>>, vector<2x32xf32>
    tpu.vector_store %arg16[%c10_53, %c0_54], %207 {strides = array<i32>} : memref<12x64xf32, #tpu.memory_space<vmem>>, vector<2x32xf32>,
    %c0_55 = arith.constant 0 : index
    %c32_56 = arith.constant 32 : index
    %218 = vector.load %arg16[%c0_55, %c32_56] : memref<12x64xf32, #tpu.memory_space<vmem>>, vector<2x32xf32>
    tpu.vector_store %arg16[%c0_55, %c32_56], %216 {strides = array<i32>} : memref<12x64xf32, #tpu.memory_space<vmem>>, vector<2x32xf32>,
    %c0_57 = arith.constant 0 : index
    %c0_58 = arith.constant 0 : index
    %219 = vector.load %arg16[%c0_57, %c0_58] : memref<12x64xf32, #tpu.memory_space<vmem>>, vector<12x64xf32>
    %c0_59 = arith.constant 0 : index
    %c0_60 = arith.constant 0 : index
    %220 = vector.load %arg11[%c0_59, %c0_60] : memref<64x256xf32, #tpu.memory_space<vmem>>, vector<64x256xf32>
    %c0_61 = arith.constant 0 : index
    %c0_62 = arith.constant 0 : index
    %221 = vector.load %arg10[%c0_61, %c0_62] : memref<64x256xf32, #tpu.memory_space<vmem>>, vector<64x256xf32>
    %cst_63 = arith.constant dense<0.000000e+00> : vector<12x256xf32>
    %222 = tpu.matmul %219, %221, %cst_63 {dimension_numbers = #tpu.dot_dimension_numbers<[1], [0], [0], [1], [0, 0, 1, 1], [], []>} : vector<12x64xf32>, vector<64x256xf32>, vector<12x256xf32> -> vector<12x256xf32>
    %c0_64 = arith.constant 0 : index
    %c0_65 = arith.constant 0 : index
    %223 = vector.load %arg12[%c0_64, %c0_65] : memref<1x256xf32, #tpu.memory_space<vmem>>, vector<1x256xf32>
    %224 = vector.broadcast %223 : vector<1x256xf32> to vector<12x256xf32>
    %225 = arith.addf %222, %224 : vector<12x256xf32>
    %cst_66 = arith.constant 0.000000e+00 : f32
    %226 = vector.broadcast %cst_66 : f32 to vector<2x32xf32>
    %cst_67 = arith.constant 0.000000e+00 : f32
    %227 = vector.broadcast %cst_67 : f32 to vector<2x32xf32>
    %cst_68 = arith.constant 0.000000e+00 : f32
    %228 = vector.broadcast %cst_68 : f32 to vector<2x32xf32>
    %cst_69 = arith.constant 0.000000e+00 : f32
    %229 = vector.broadcast %cst_69 : f32 to vector<2x32xf32>
    %230 = vector.extract_strided_slice %225 {offsets = [0, 0], sizes = [2, 128], strides = [1, 1]} : vector<12x256xf32> to vector<2x128xf32>
    %231 = vector.extract_strided_slice %225 {offsets = [10, 128], sizes = [2, 128], strides = [1, 1]} : vector<12x256xf32> to vector<2x128xf32>
    %232 = tpu.concatenate %230, %231 in 1 : vector<2x128xf32>, vector<2x128xf32> -> vector<2x256xf32>
    %233 = tpu.concatenate %226, %228 in 1 : vector<2x32xf32>, vector<2x32xf32> -> vector<2x64xf32>
    %cst_70 = arith.constant dense<0.000000e+00> : vector<2x256xf32>
    %234 = tpu.matmul %233, %220, %cst_70 {dimension_numbers = #tpu.dot_dimension_numbers<[1], [0], [0], [1], [0, 0, 1, 1], [], []>} : vector<2x64xf32>, vector<64x256xf32>, vector<2x256xf32> -> vector<2x256xf32>
    %235 = arith.addf %232, %234 : vector<2x256xf32>
    %cst_71 = arith.constant 0.000000e+00 : f32
    %236 = vector.broadcast %cst_71 : f32 to vector<2x256xf32>
    %237 = arith.subf %236, %235 : vector<2x256xf32>
    %238 = math.exp %237 : vector<2x256xf32>
    %cst_72 = arith.constant 1.000000e+00 : f32
    %239 = vector.broadcast %cst_72 : f32 to vector<2x256xf32>
    %240 = arith.addf %239, %238 : vector<2x256xf32>
    %241 = tpu.reciprocal %240 {approx = true} : vector<2x256xf32> -> vector<2x256xf32>
    %242 = math.tanh %235 : vector<2x256xf32>
    %243 = vector.extract_strided_slice %241 {offsets = [0, 32], sizes = [2, 32], strides = [1, 1]} : vector<2x256xf32> to vector<2x32xf32>
    %244 = arith.mulf %243, %227 : vector<2x32xf32>
    %245 = vector.extract_strided_slice %241 {offsets = [0, 0], sizes = [2, 32], strides = [1, 1]} : vector<2x256xf32> to vector<2x32xf32>
    %246 = vector.extract_strided_slice %242 {offsets = [0, 64], sizes = [2, 32], strides = [1, 1]} : vector<2x256xf32> to vector<2x32xf32>
    %247 = arith.mulf %245, %246 : vector<2x32xf32>
    %248 = arith.addf %244, %247 : vector<2x32xf32>
    %249 = vector.extract_strided_slice %241 {offsets = [0, 96], sizes = [2, 32], strides = [1, 1]} : vector<2x256xf32> to vector<2x32xf32>
    %250 = math.tanh %248 : vector<2x32xf32>
    %251 = arith.mulf %249, %250 : vector<2x32xf32>
    %252 = vector.extract_strided_slice %241 {offsets = [0, 160], sizes = [2, 32], strides = [1, 1]} : vector<2x256xf32> to vector<2x32xf32>
    %253 = arith.mulf %252, %229 : vector<2x32xf32>
    %254 = vector.extract_strided_slice %241 {offsets = [0, 128], sizes = [2, 32], strides = [1, 1]} : vector<2x256xf32> to vector<2x32xf32>
    %255 = vector.extract_strided_slice %242 {offsets = [0, 192], sizes = [2, 32], strides = [1, 1]} : vector<2x256xf32> to vector<2x32xf32>
    %256 = arith.mulf %254, %255 : vector<2x32xf32>
    %257 = arith.addf %253, %256 : vector<2x32xf32>
    %258 = vector.extract_strided_slice %241 {offsets = [0, 224], sizes = [2, 32], strides = [1, 1]} : vector<2x256xf32> to vector<2x32xf32>
    %259 = math.tanh %257 : vector<2x32xf32>
    %260 = arith.mulf %258, %259 : vector<2x32xf32>
    %c0_73 = arith.constant 0 : index
    %c0_74 = arith.constant 0 : index
    %261 = vector.load %arg17[%c0_73, %c0_74] : memref<12x64xf32, #tpu.memory_space<vmem>>, vector<2x32xf32>
    tpu.vector_store %arg17[%c0_73, %c0_74], %251 {strides = array<i32>} : memref<12x64xf32, #tpu.memory_space<vmem>>, vector<2x32xf32>,
    %c10_75 = arith.constant 10 : index
    %c32_76 = arith.constant 32 : index
    %262 = vector.load %arg17[%c10_75, %c32_76] : memref<12x64xf32, #tpu.memory_space<vmem>>, vector<2x32xf32>
    tpu.vector_store %arg17[%c10_75, %c32_76], %260 {strides = array<i32>} : memref<12x64xf32, #tpu.memory_space<vmem>>, vector<2x32xf32>,
    %263 = vector.extract_strided_slice %225 {offsets = [2, 0], sizes = [2, 128], strides = [1, 1]} : vector<12x256xf32> to vector<2x128xf32>
    %264 = vector.extract_strided_slice %225 {offsets = [8, 128], sizes = [2, 128], strides = [1, 1]} : vector<12x256xf32> to vector<2x128xf32>
    %265 = tpu.concatenate %263, %264 in 1 : vector<2x128xf32>, vector<2x128xf32> -> vector<2x256xf32>
    %266 = tpu.concatenate %251, %260 in 1 : vector<2x32xf32>, vector<2x32xf32> -> vector<2x64xf32>
    %cst_77 = arith.constant dense<0.000000e+00> : vector<2x256xf32>
    %267 = tpu.matmul %266, %220, %cst_77 {dimension_numbers = #tpu.dot_dimension_numbers<[1], [0], [0], [1], [0, 0, 1, 1], [], []>} : vector<2x64xf32>, vector<64x256xf32>, vector<2x256xf32> -> vector<2x256xf32>
    %268 = arith.addf %265, %267 : vector<2x256xf32>
    %cst_78 = arith.constant 0.000000e+00 : f32
    %269 = vector.broadcast %cst_78 : f32 to vector<2x256xf32>
    %270 = arith.subf %269, %268 : vector<2x256xf32>
    %271 = math.exp %270 : vector<2x256xf32>
    %cst_79 = arith.constant 1.000000e+00 : f32
    %272 = vector.broadcast %cst_79 : f32 to vector<2x256xf32>
    %273 = arith.addf %272, %271 : vector<2x256xf32>
    %274 = tpu.reciprocal %273 {approx = true} : vector<2x256xf32> -> vector<2x256xf32>
    %275 = math.tanh %268 : vector<2x256xf32>
    %276 = vector.extract_strided_slice %274 {offsets = [0, 32], sizes = [2, 32], strides = [1, 1]} : vector<2x256xf32> to vector<2x32xf32>
    %277 = arith.mulf %276, %248 : vector<2x32xf32>
    %278 = vector.extract_strided_slice %274 {offsets = [0, 0], sizes = [2, 32], strides = [1, 1]} : vector<2x256xf32> to vector<2x32xf32>
    %279 = vector.extract_strided_slice %275 {offsets = [0, 64], sizes = [2, 32], strides = [1, 1]} : vector<2x256xf32> to vector<2x32xf32>
    %280 = arith.mulf %278, %279 : vector<2x32xf32>
    %281 = arith.addf %277, %280 : vector<2x32xf32>
    %282 = vector.extract_strided_slice %274 {offsets = [0, 96], sizes = [2, 32], strides = [1, 1]} : vector<2x256xf32> to vector<2x32xf32>
    %283 = math.tanh %281 : vector<2x32xf32>
    %284 = arith.mulf %282, %283 : vector<2x32xf32>
    %285 = vector.extract_strided_slice %274 {offsets = [0, 160], sizes = [2, 32], strides = [1, 1]} : vector<2x256xf32> to vector<2x32xf32>
    %286 = arith.mulf %285, %257 : vector<2x32xf32>
    %287 = vector.extract_strided_slice %274 {offsets = [0, 128], sizes = [2, 32], strides = [1, 1]} : vector<2x256xf32> to vector<2x32xf32>
    %288 = vector.extract_strided_slice %275 {offsets = [0, 192], sizes = [2, 32], strides = [1, 1]} : vector<2x256xf32> to vector<2x32xf32>
    %289 = arith.mulf %287, %288 : vector<2x32xf32>
    %290 = arith.addf %286, %289 : vector<2x32xf32>
    %291 = vector.extract_strided_slice %274 {offsets = [0, 224], sizes = [2, 32], strides = [1, 1]} : vector<2x256xf32> to vector<2x32xf32>
    %292 = math.tanh %290 : vector<2x32xf32>
    %293 = arith.mulf %291, %292 : vector<2x32xf32>
    %c2_80 = arith.constant 2 : index
    %c0_81 = arith.constant 0 : index
    %294 = vector.load %arg17[%c2_80, %c0_81] : memref<12x64xf32, #tpu.memory_space<vmem>>, vector<2x32xf32>
    tpu.vector_store %arg17[%c2_80, %c0_81], %284 {strides = array<i32>} : memref<12x64xf32, #tpu.memory_space<vmem>>, vector<2x32xf32>,
    %c8_82 = arith.constant 8 : index
    %c32_83 = arith.constant 32 : index
    %295 = vector.load %arg17[%c8_82, %c32_83] : memref<12x64xf32, #tpu.memory_space<vmem>>, vector<2x32xf32>
    tpu.vector_store %arg17[%c8_82, %c32_83], %293 {strides = array<i32>} : memref<12x64xf32, #tpu.memory_space<vmem>>, vector<2x32xf32>,
    %296 = vector.extract_strided_slice %225 {offsets = [4, 0], sizes = [2, 128], strides = [1, 1]} : vector<12x256xf32> to vector<2x128xf32>
    %297 = vector.extract_strided_slice %225 {offsets = [6, 128], sizes = [2, 128], strides = [1, 1]} : vector<12x256xf32> to vector<2x128xf32>
    %298 = tpu.concatenate %296, %297 in 1 : vector<2x128xf32>, vector<2x128xf32> -> vector<2x256xf32>
    %299 = tpu.concatenate %284, %293 in 1 : vector<2x32xf32>, vector<2x32xf32> -> vector<2x64xf32>
    %cst_84 = arith.constant dense<0.000000e+00> : vector<2x256xf32>
    %300 = tpu.matmul %299, %220, %cst_84 {dimension_numbers = #tpu.dot_dimension_numbers<[1], [0], [0], [1], [0, 0, 1, 1], [], []>} : vector<2x64xf32>, vector<64x256xf32>, vector<2x256xf32> -> vector<2x256xf32>
    %301 = arith.addf %298, %300 : vector<2x256xf32>
    %cst_85 = arith.constant 0.000000e+00 : f32
    %302 = vector.broadcast %cst_85 : f32 to vector<2x256xf32>
    %303 = arith.subf %302, %301 : vector<2x256xf32>
    %304 = math.exp %303 : vector<2x256xf32>
    %cst_86 = arith.constant 1.000000e+00 : f32
    %305 = vector.broadcast %cst_86 : f32 to vector<2x256xf32>
    %306 = arith.addf %305, %304 : vector<2x256xf32>
    %307 = tpu.reciprocal %306 {approx = true} : vector<2x256xf32> -> vector<2x256xf32>
    %308 = math.tanh %301 : vector<2x256xf32>
    %309 = vector.extract_strided_slice %307 {offsets = [0, 32], sizes = [2, 32], strides = [1, 1]} : vector<2x256xf32> to vector<2x32xf32>
    %310 = arith.mulf %309, %281 : vector<2x32xf32>
    %311 = vector.extract_strided_slice %307 {offsets = [0, 0], sizes = [2, 32], strides = [1, 1]} : vector<2x256xf32> to vector<2x32xf32>
    %312 = vector.extract_strided_slice %308 {offsets = [0, 64], sizes = [2, 32], strides = [1, 1]} : vector<2x256xf32> to vector<2x32xf32>
    %313 = arith.mulf %311, %312 : vector<2x32xf32>
    %314 = arith.addf %310, %313 : vector<2x32xf32>
    %315 = vector.extract_strided_slice %307 {offsets = [0, 96], sizes = [2, 32], strides = [1, 1]} : vector<2x256xf32> to vector<2x32xf32>
    %316 = math.tanh %314 : vector<2x32xf32>
    %317 = arith.mulf %315, %316 : vector<2x32xf32>
    %318 = vector.extract_strided_slice %307 {offsets = [0, 160], sizes = [2, 32], strides = [1, 1]} : vector<2x256xf32> to vector<2x32xf32>
    %319 = arith.mulf %318, %290 : vector<2x32xf32>
    %320 = vector.extract_strided_slice %307 {offsets = [0, 128], sizes = [2, 32], strides = [1, 1]} : vector<2x256xf32> to vector<2x32xf32>
    %321 = vector.extract_strided_slice %308 {offsets = [0, 192], sizes = [2, 32], strides = [1, 1]} : vector<2x256xf32> to vector<2x32xf32>
    %322 = arith.mulf %320, %321 : vector<2x32xf32>
    %323 = arith.addf %319, %322 : vector<2x32xf32>
    %324 = vector.extract_strided_slice %307 {offsets = [0, 224], sizes = [2, 32], strides = [1, 1]} : vector<2x256xf32> to vector<2x32xf32>
    %325 = math.tanh %323 : vector<2x32xf32>
    %326 = arith.mulf %324, %325 : vector<2x32xf32>
    %c4_87 = arith.constant 4 : index
    %c0_88 = arith.constant 0 : index
    %327 = vector.load %arg17[%c4_87, %c0_88] : memref<12x64xf32, #tpu.memory_space<vmem>>, vector<2x32xf32>
    tpu.vector_store %arg17[%c4_87, %c0_88], %317 {strides = array<i32>} : memref<12x64xf32, #tpu.memory_space<vmem>>, vector<2x32xf32>,
    %c6_89 = arith.constant 6 : index
    %c32_90 = arith.constant 32 : index
    %328 = vector.load %arg17[%c6_89, %c32_90] : memref<12x64xf32, #tpu.memory_space<vmem>>, vector<2x32xf32>
    tpu.vector_store %arg17[%c6_89, %c32_90], %326 {strides = array<i32>} : memref<12x64xf32, #tpu.memory_space<vmem>>, vector<2x32xf32>,
    %329 = vector.extract_strided_slice %225 {offsets = [6, 0], sizes = [2, 128], strides = [1, 1]} : vector<12x256xf32> to vector<2x128xf32>
    %330 = vector.extract_strided_slice %225 {offsets = [4, 128], sizes = [2, 128], strides = [1, 1]} : vector<12x256xf32> to vector<2x128xf32>
    %331 = tpu.concatenate %329, %330 in 1 : vector<2x128xf32>, vector<2x128xf32> -> vector<2x256xf32>
    %332 = tpu.concatenate %317, %326 in 1 : vector<2x32xf32>, vector<2x32xf32> -> vector<2x64xf32>
    %cst_91 = arith.constant dense<0.000000e+00> : vector<2x256xf32>
    %333 = tpu.matmul %332, %220, %cst_91 {dimension_numbers = #tpu.dot_dimension_numbers<[1], [0], [0], [1], [0, 0, 1, 1], [], []>} : vector<2x64xf32>, vector<64x256xf32>, vector<2x256xf32> -> vector<2x256xf32>
    %334 = arith.addf %331, %333 : vector<2x256xf32>
    %cst_92 = arith.constant 0.000000e+00 : f32
    %335 = vector.broadcast %cst_92 : f32 to vector<2x256xf32>
    %336 = arith.subf %335, %334 : vector<2x256xf32>
    %337 = math.exp %336 : vector<2x256xf32>
    %cst_93 = arith.constant 1.000000e+00 : f32
    %338 = vector.broadcast %cst_93 : f32 to vector<2x256xf32>
    %339 = arith.addf %338, %337 : vector<2x256xf32>
    %340 = tpu.reciprocal %339 {approx = true} : vector<2x256xf32> -> vector<2x256xf32>
    %341 = math.tanh %334 : vector<2x256xf32>
    %342 = vector.extract_strided_slice %340 {offsets = [0, 32], sizes = [2, 32], strides = [1, 1]} : vector<2x256xf32> to vector<2x32xf32>
    %343 = arith.mulf %342, %314 : vector<2x32xf32>
    %344 = vector.extract_strided_slice %340 {offsets = [0, 0], sizes = [2, 32], strides = [1, 1]} : vector<2x256xf32> to vector<2x32xf32>
    %345 = vector.extract_strided_slice %341 {offsets = [0, 64], sizes = [2, 32], strides = [1, 1]} : vector<2x256xf32> to vector<2x32xf32>
    %346 = arith.mulf %344, %345 : vector<2x32xf32>
    %347 = arith.addf %343, %346 : vector<2x32xf32>
    %348 = vector.extract_strided_slice %340 {offsets = [0, 96], sizes = [2, 32], strides = [1, 1]} : vector<2x256xf32> to vector<2x32xf32>
    %349 = math.tanh %347 : vector<2x32xf32>
    %350 = arith.mulf %348, %349 : vector<2x32xf32>
    %351 = vector.extract_strided_slice %340 {offsets = [0, 160], sizes = [2, 32], strides = [1, 1]} : vector<2x256xf32> to vector<2x32xf32>
    %352 = arith.mulf %351, %323 : vector<2x32xf32>
    %353 = vector.extract_strided_slice %340 {offsets = [0, 128], sizes = [2, 32], strides = [1, 1]} : vector<2x256xf32> to vector<2x32xf32>
    %354 = vector.extract_strided_slice %341 {offsets = [0, 192], sizes = [2, 32], strides = [1, 1]} : vector<2x256xf32> to vector<2x32xf32>
    %355 = arith.mulf %353, %354 : vector<2x32xf32>
    %356 = arith.addf %352, %355 : vector<2x32xf32>
    %357 = vector.extract_strided_slice %340 {offsets = [0, 224], sizes = [2, 32], strides = [1, 1]} : vector<2x256xf32> to vector<2x32xf32>
    %358 = math.tanh %356 : vector<2x32xf32>
    %359 = arith.mulf %357, %358 : vector<2x32xf32>
    %c6_94 = arith.constant 6 : index
    %c0_95 = arith.constant 0 : index
    %360 = vector.load %arg17[%c6_94, %c0_95] : memref<12x64xf32, #tpu.memory_space<vmem>>, vector<2x32xf32>
    tpu.vector_store %arg17[%c6_94, %c0_95], %350 {strides = array<i32>} : memref<12x64xf32, #tpu.memory_space<vmem>>, vector<2x32xf32>,
    %c4_96 = arith.constant 4 : index
    %c32_97 = arith.constant 32 : index
    %361 = vector.load %arg17[%c4_96, %c32_97] : memref<12x64xf32, #tpu.memory_space<vmem>>, vector<2x32xf32>
    tpu.vector_store %arg17[%c4_96, %c32_97], %359 {strides = array<i32>} : memref<12x64xf32, #tpu.memory_space<vmem>>, vector<2x32xf32>,
    %362 = vector.extract_strided_slice %225 {offsets = [8, 0], sizes = [2, 128], strides = [1, 1]} : vector<12x256xf32> to vector<2x128xf32>
    %363 = vector.extract_strided_slice %225 {offsets = [2, 128], sizes = [2, 128], strides = [1, 1]} : vector<12x256xf32> to vector<2x128xf32>
    %364 = tpu.concatenate %362, %363 in 1 : vector<2x128xf32>, vector<2x128xf32> -> vector<2x256xf32>
    %365 = tpu.concatenate %350, %359 in 1 : vector<2x32xf32>, vector<2x32xf32> -> vector<2x64xf32>
    %cst_98 = arith.constant dense<0.000000e+00> : vector<2x256xf32>
    %366 = tpu.matmul %365, %220, %cst_98 {dimension_numbers = #tpu.dot_dimension_numbers<[1], [0], [0], [1], [0, 0, 1, 1], [], []>} : vector<2x64xf32>, vector<64x256xf32>, vector<2x256xf32> -> vector<2x256xf32>
    %367 = arith.addf %364, %366 : vector<2x256xf32>
    %cst_99 = arith.constant 0.000000e+00 : f32
    %368 = vector.broadcast %cst_99 : f32 to vector<2x256xf32>
    %369 = arith.subf %368, %367 : vector<2x256xf32>
    %370 = math.exp %369 : vector<2x256xf32>
    %cst_100 = arith.constant 1.000000e+00 : f32
    %371 = vector.broadcast %cst_100 : f32 to vector<2x256xf32>
    %372 = arith.addf %371, %370 : vector<2x256xf32>
    %373 = tpu.reciprocal %372 {approx = true} : vector<2x256xf32> -> vector<2x256xf32>
    %374 = math.tanh %367 : vector<2x256xf32>
    %375 = vector.extract_strided_slice %373 {offsets = [0, 32], sizes = [2, 32], strides = [1, 1]} : vector<2x256xf32> to vector<2x32xf32>
    %376 = arith.mulf %375, %347 : vector<2x32xf32>
    %377 = vector.extract_strided_slice %373 {offsets = [0, 0], sizes = [2, 32], strides = [1, 1]} : vector<2x256xf32> to vector<2x32xf32>
    %378 = vector.extract_strided_slice %374 {offsets = [0, 64], sizes = [2, 32], strides = [1, 1]} : vector<2x256xf32> to vector<2x32xf32>
    %379 = arith.mulf %377, %378 : vector<2x32xf32>
    %380 = arith.addf %376, %379 : vector<2x32xf32>
    %381 = vector.extract_strided_slice %373 {offsets = [0, 96], sizes = [2, 32], strides = [1, 1]} : vector<2x256xf32> to vector<2x32xf32>
    %382 = math.tanh %380 : vector<2x32xf32>
    %383 = arith.mulf %381, %382 : vector<2x32xf32>
    %384 = vector.extract_strided_slice %373 {offsets = [0, 160], sizes = [2, 32], strides = [1, 1]} : vector<2x256xf32> to vector<2x32xf32>
    %385 = arith.mulf %384, %356 : vector<2x32xf32>
    %386 = vector.extract_strided_slice %373 {offsets = [0, 128], sizes = [2, 32], strides = [1, 1]} : vector<2x256xf32> to vector<2x32xf32>
    %387 = vector.extract_strided_slice %374 {offsets = [0, 192], sizes = [2, 32], strides = [1, 1]} : vector<2x256xf32> to vector<2x32xf32>
    %388 = arith.mulf %386, %387 : vector<2x32xf32>
    %389 = arith.addf %385, %388 : vector<2x32xf32>
    %390 = vector.extract_strided_slice %373 {offsets = [0, 224], sizes = [2, 32], strides = [1, 1]} : vector<2x256xf32> to vector<2x32xf32>
    %391 = math.tanh %389 : vector<2x32xf32>
    %392 = arith.mulf %390, %391 : vector<2x32xf32>
    %c8_101 = arith.constant 8 : index
    %c0_102 = arith.constant 0 : index
    %393 = vector.load %arg17[%c8_101, %c0_102] : memref<12x64xf32, #tpu.memory_space<vmem>>, vector<2x32xf32>
    tpu.vector_store %arg17[%c8_101, %c0_102], %383 {strides = array<i32>} : memref<12x64xf32, #tpu.memory_space<vmem>>, vector<2x32xf32>,
    %c2_103 = arith.constant 2 : index
    %c32_104 = arith.constant 32 : index
    %394 = vector.load %arg17[%c2_103, %c32_104] : memref<12x64xf32, #tpu.memory_space<vmem>>, vector<2x32xf32>
    tpu.vector_store %arg17[%c2_103, %c32_104], %392 {strides = array<i32>} : memref<12x64xf32, #tpu.memory_space<vmem>>, vector<2x32xf32>,
    %395 = vector.extract_strided_slice %225 {offsets = [10, 0], sizes = [2, 128], strides = [1, 1]} : vector<12x256xf32> to vector<2x128xf32>
    %396 = vector.extract_strided_slice %225 {offsets = [0, 128], sizes = [2, 128], strides = [1, 1]} : vector<12x256xf32> to vector<2x128xf32>
    %397 = tpu.concatenate %395, %396 in 1 : vector<2x128xf32>, vector<2x128xf32> -> vector<2x256xf32>
    %398 = tpu.concatenate %383, %392 in 1 : vector<2x32xf32>, vector<2x32xf32> -> vector<2x64xf32>
    %cst_105 = arith.constant dense<0.000000e+00> : vector<2x256xf32>
    %399 = tpu.matmul %398, %220, %cst_105 {dimension_numbers = #tpu.dot_dimension_numbers<[1], [0], [0], [1], [0, 0, 1, 1], [], []>} : vector<2x64xf32>, vector<64x256xf32>, vector<2x256xf32> -> vector<2x256xf32>
    %400 = arith.addf %397, %399 : vector<2x256xf32>
    %cst_106 = arith.constant 0.000000e+00 : f32
    %401 = vector.broadcast %cst_106 : f32 to vector<2x256xf32>
    %402 = arith.subf %401, %400 : vector<2x256xf32>
    %403 = math.exp %402 : vector<2x256xf32>
    %cst_107 = arith.constant 1.000000e+00 : f32
    %404 = vector.broadcast %cst_107 : f32 to vector<2x256xf32>
    %405 = arith.addf %404, %403 : vector<2x256xf32>
    %406 = tpu.reciprocal %405 {approx = true} : vector<2x256xf32> -> vector<2x256xf32>
    %407 = math.tanh %400 : vector<2x256xf32>
    %408 = vector.extract_strided_slice %406 {offsets = [0, 32], sizes = [2, 32], strides = [1, 1]} : vector<2x256xf32> to vector<2x32xf32>
    %409 = arith.mulf %408, %380 : vector<2x32xf32>
    %410 = vector.extract_strided_slice %406 {offsets = [0, 0], sizes = [2, 32], strides = [1, 1]} : vector<2x256xf32> to vector<2x32xf32>
    %411 = vector.extract_strided_slice %407 {offsets = [0, 64], sizes = [2, 32], strides = [1, 1]} : vector<2x256xf32> to vector<2x32xf32>
    %412 = arith.mulf %410, %411 : vector<2x32xf32>
    %413 = arith.addf %409, %412 : vector<2x32xf32>
    %414 = vector.extract_strided_slice %406 {offsets = [0, 96], sizes = [2, 32], strides = [1, 1]} : vector<2x256xf32> to vector<2x32xf32>
    %415 = math.tanh %413 : vector<2x32xf32>
    %416 = arith.mulf %414, %415 : vector<2x32xf32>
    %417 = vector.extract_strided_slice %406 {offsets = [0, 160], sizes = [2, 32], strides = [1, 1]} : vector<2x256xf32> to vector<2x32xf32>
    %418 = arith.mulf %417, %389 : vector<2x32xf32>
    %419 = vector.extract_strided_slice %406 {offsets = [0, 128], sizes = [2, 32], strides = [1, 1]} : vector<2x256xf32> to vector<2x32xf32>
    %420 = vector.extract_strided_slice %407 {offsets = [0, 192], sizes = [2, 32], strides = [1, 1]} : vector<2x256xf32> to vector<2x32xf32>
    %421 = arith.mulf %419, %420 : vector<2x32xf32>
    %422 = arith.addf %418, %421 : vector<2x32xf32>
    %423 = vector.extract_strided_slice %406 {offsets = [0, 224], sizes = [2, 32], strides = [1, 1]} : vector<2x256xf32> to vector<2x32xf32>
    %424 = math.tanh %422 : vector<2x32xf32>
    %425 = arith.mulf %423, %424 : vector<2x32xf32>
    %c10_108 = arith.constant 10 : index
    %c0_109 = arith.constant 0 : index
    %426 = vector.load %arg17[%c10_108, %c0_109] : memref<12x64xf32, #tpu.memory_space<vmem>>, vector<2x32xf32>
    tpu.vector_store %arg17[%c10_108, %c0_109], %416 {strides = array<i32>} : memref<12x64xf32, #tpu.memory_space<vmem>>, vector<2x32xf32>,
    %c0_110 = arith.constant 0 : index
    %c32_111 = arith.constant 32 : index
    %427 = vector.load %arg17[%c0_110, %c32_111] : memref<12x64xf32, #tpu.memory_space<vmem>>, vector<2x32xf32>
    tpu.vector_store %arg17[%c0_110, %c32_111], %425 {strides = array<i32>} : memref<12x64xf32, #tpu.memory_space<vmem>>, vector<2x32xf32>,
    %c0_112 = arith.constant 0 : index
    %c0_113 = arith.constant 0 : index
    %428 = vector.load %arg17[%c0_112, %c0_113] : memref<12x64xf32, #tpu.memory_space<vmem>>, vector<12x64xf32>
    %c0_114 = arith.constant 0 : index
    %c0_115 = arith.constant 0 : index
    %429 = vector.load %arg2[%c0_114, %c0_115] : memref<2x12xf32, #tpu.memory_space<vmem>>, vector<2x12xf32>
    %cst_116 = arith.constant dense<0.000000e+00> : vector<2x64xf32>
    %430 = tpu.matmul %429, %428, %cst_116 {dimension_numbers = #tpu.dot_dimension_numbers<[1], [0], [0], [1], [0, 0, 1, 1], [], []>} : vector<2x12xf32>, vector<12x64xf32>, vector<2x64xf32> -> vector<2x64xf32>
    %c0_117 = arith.constant 0 : index
    %c0_118 = arith.constant 0 : index
    %431 = vector.load %arg3[%c0_117, %c0_118] : memref<2x16xf32, #tpu.memory_space<vmem>>, vector<2x16xf32>
    %cst_119 = arith.constant dense<0.000000e+00> : vector<2x64xf32>
    %432 = tpu.matmul %431, %6, %cst_119 {dimension_numbers = #tpu.dot_dimension_numbers<[1], [0], [0], [1], [0, 0, 1, 1], [], []>} : vector<2x16xf32>, vector<16x64xf32>, vector<2x64xf32> -> vector<2x64xf32>
    %cst_120 = arith.constant 2.000000e+00 : f32
    %433 = vector.broadcast %cst_120 : f32 to vector<2x64xf32>
    %434 = arith.mulf %433, %432 : vector<2x64xf32>
    %435 = arith.addf %430, %434 : vector<2x64xf32>
    %c0_121 = arith.constant 0 : index
    %c0_122 = arith.constant 0 : index
    %436 = vector.load %arg13[%c0_121, %c0_122] : memref<64x128xf32, #tpu.memory_space<vmem>>, vector<64x128xf32>
    %cst_123 = arith.constant dense<0.000000e+00> : vector<2x128xf32>
    %437 = tpu.matmul %435, %436, %cst_123 {dimension_numbers = #tpu.dot_dimension_numbers<[1], [0], [0], [1], [0, 0, 1, 1], [], []>} : vector<2x64xf32>, vector<64x128xf32>, vector<2x128xf32> -> vector<2x128xf32>
    %c0_124 = arith.constant 0 : index
    %c0_125 = arith.constant 0 : index
    %438 = vector.load %arg14[%c0_124, %c0_125] : memref<1x128xf32, #tpu.memory_space<vmem>>, vector<1x128xf32>
    %439 = vector.broadcast %438 : vector<1x128xf32> to vector<2x128xf32>
    %440 = arith.addf %437, %439 : vector<2x128xf32>
    %c0_126 = arith.constant 0 : index
    %c0_127 = arith.constant 0 : index
    %441 = vector.load %arg15[%c0_126, %c0_127] : memref<2x128xf32, #tpu.memory_space<vmem>>, vector<2x128xf32>
    tpu.vector_store %arg15[%c0_126, %c0_127], %440 {strides = array<i32>} : memref<2x128xf32, #tpu.memory_space<vmem>>, vector<2x128xf32>,
    return
  }
}

</mosaic_0001>

<llo_original>
// kernel: vqa_forward.1
$region0: #{vqa_forward.1}
  #allocation0 [shape = 'u32[]', space=smem, size = 0x4, offset = 0x4, fixed_abs, tag = 'smem constant byte address 0x4 - core index']
  #allocation1 [shape = 'u32[144,128]{1,0:T(1,128)}', space=vmem, size = 0x12000, scoped, tag = 'internal scratch']
  #allocation2 [shape = 'f32[12,64]{1,0:T(8,128)}', space=vmem, size = 0x2000, scoped, tag = 'scratch operand']
  #allocation3 [shape = 'f32[12,64]{1,0:T(8,128)}', space=vmem, size = 0x2000, scoped, tag = 'scratch operand']
  %s0 = inlined_call_operand.vmem [shape: f32[16,512], index: 0, kind: input, shape index: {}]
  %s1 = inlined_call_operand.vmem [shape: f32[12,50], index: 1, kind: input, shape index: {}]
  %s2 = inlined_call_operand.vmem [shape: f32[2,12], index: 2, kind: input, shape index: {}]
  %s3 = inlined_call_operand.vmem [shape: f32[2,16], index: 3, kind: input, shape index: {}]
  %s4 = inlined_call_operand.vmem [shape: f32[512,64], index: 4, kind: input, shape index: {}]
  %s5 = inlined_call_operand.vmem [shape: f32[1,64], index: 5, kind: input, shape index: {}]
  %s6 = inlined_call_operand.vmem [shape: f32[50,64], index: 6, kind: input, shape index: {}]
  %s7 = inlined_call_operand.vmem [shape: f32[64,256], index: 7, kind: input, shape index: {}]
  %s8 = inlined_call_operand.vmem [shape: f32[64,256], index: 8, kind: input, shape index: {}]
  %s9 = inlined_call_operand.vmem [shape: f32[1,256], index: 9, kind: input, shape index: {}]
  %s10 = inlined_call_operand.vmem [shape: f32[64,256], index: 10, kind: input, shape index: {}]
  %s11 = inlined_call_operand.vmem [shape: f32[64,256], index: 11, kind: input, shape index: {}]
  %s12 = inlined_call_operand.vmem [shape: f32[1,256], index: 12, kind: input, shape index: {}]
  %s13 = inlined_call_operand.vmem [shape: f32[64,128], index: 13, kind: input, shape index: {}]
  %s14 = inlined_call_operand.vmem [shape: f32[1,128], index: 14, kind: input, shape index: {}]
  %s15 = inlined_call_operand.hbm [shape: f32[2,128], index: 15, kind: output, shape index: {}]
  %s16 = sld [smem:[#allocation0]]
  $region70: #{vqa_forward.1} parent=0
    _
  %s18 = ssub.s32 1, %s16
  %s19 = scalar_select 0, %s18, %s16
  $region1: #{vqa_forward.1} parent=0
    #allocation4 [shape = 'u8[1024]{0}', space=vmem, size = 0x400, scoped, tag = 'output window, operand 0, single buffered']
    #allocation5 [shape = 's32[1]{0}', space=sflag, size = 0x4, scoped, tag = 'scoped memory for vqa_forward.1']
    %20 = vsyncpa [#allocation5], 0
    // Predicated region
    $region2: #{vqa_forward.1} parent=1 // pred_check
      _
    $region3: #{vqa_forward.1} parent=1 // pred_check_branch
      %22 = sbr.rel (0) target = $region5
    $region4: #{vqa_forward.1} parent=1 // pred_region
      _
    $region5: #{vqa_forward.1} parent=1 // pred_fallthru
      _
    // Predicated region
    $region6: #{vqa_forward.1} parent=1 // pred_check
      _
    $region7: #{vqa_forward.1} parent=1 // pred_check_branch
      %24 = sbr.rel (0) target = $region9
    $region8: #{vqa_forward.1} parent=1 // pred_region
      _
    $region9: #{vqa_forward.1} parent=1 // pred_fallthru
      _
    // Predicated region
    $region10: #{vqa_forward.1} parent=1 // pred_check
      _
    $region11: #{vqa_forward.1} parent=1 // pred_check_branch
      %26 = sbr.rel (0) target = $region13
    $region12: #{vqa_forward.1} parent=1 // pred_region
      _
    $region13: #{vqa_forward.1} parent=1 // pred_fallthru
      _
    // Predicated region
    $region14: #{vqa_forward.1} parent=1 // pred_check
      _
    $region15: #{vqa_forward.1} parent=1 // pred_check_branch
      %28 = sbr.rel (0) target = $region17
    $region16: #{vqa_forward.1} parent=1 // pred_region
      _
    $region17: #{vqa_forward.1} parent=1 // pred_fallthru
      _
    // Predicated region
    $region18: #{vqa_forward.1} parent=1 // pred_check
      _
    $region19: #{vqa_forward.1} parent=1 // pred_check_branch
      %30 = sbr.rel (0) target = $region21
    $region20: #{vqa_forward.1} parent=1 // pred_region
      _
    $region21: #{vqa_forward.1} parent=1 // pred_fallthru
      _
    // Predicated region
    $region22: #{vqa_forward.1} parent=1 // pred_check
      _
    $region23: #{vqa_forward.1} parent=1 // pred_check_branch
      %32 = sbr.rel (0) target = $region25
    $region24: #{vqa_forward.1} parent=1 // pred_region
      _
    $region25: #{vqa_forward.1} parent=1 // pred_fallthru
      _
    // Predicated region
    $region26: #{vqa_forward.1} parent=1 // pred_check
      _
    $region27: #{vqa_forward.1} parent=1 // pred_check_branch
      %34 = sbr.rel (0) target = $region29
    $region28: #{vqa_forward.1} parent=1 // pred_region
      _
    $region29: #{vqa_forward.1} parent=1 // pred_fallthru
      _
    // Predicated region
    $region30: #{vqa_forward.1} parent=1 // pred_check
      _
    $region31: #{vqa_forward.1} parent=1 // pred_check_branch
      %36 = sbr.rel (0) target = $region33
    $region32: #{vqa_forward.1} parent=1 // pred_region
      _
    $region33: #{vqa_forward.1} parent=1 // pred_fallthru
      _
    // Predicated region
    $region34: #{vqa_forward.1} parent=1 // pred_check
      _
    $region35: #{vqa_forward.1} parent=1 // pred_check_branch
      %38 = sbr.rel (0) target = $region37
    $region36: #{vqa_forward.1} parent=1 // pred_region
      _
    $region37: #{vqa_forward.1} parent=1 // pred_fallthru
      _
    // Predicated region
    $region38: #{vqa_forward.1} parent=1 // pred_check
      _
    $region39: #{vqa_forward.1} parent=1 // pred_check_branch
      %40 = sbr.rel (0) target = $region41
    $region40: #{vqa_forward.1} parent=1 // pred_region
      _
    $region41: #{vqa_forward.1} parent=1 // pred_fallthru
      _
    // Predicated region
    $region42: #{vqa_forward.1} parent=1 // pred_check
      _
    $region43: #{vqa_forward.1} parent=1 // pred_check_branch
      %42 = sbr.rel (0) target = $region45
    $region44: #{vqa_forward.1} parent=1 // pred_region
      _
    $region45: #{vqa_forward.1} parent=1 // pred_fallthru
      _
    // Predicated region
    $region46: #{vqa_forward.1} parent=1 // pred_check
      _
    $region47: #{vqa_forward.1} parent=1 // pred_check_branch
      %44 = sbr.rel (0) target = $region49
    $region48: #{vqa_forward.1} parent=1 // pred_region
      _
    $region49: #{vqa_forward.1} parent=1 // pred_fallthru
      _
    // Predicated region
    $region50: #{vqa_forward.1} parent=1 // pred_check
      _
    $region51: #{vqa_forward.1} parent=1 // pred_check_branch
      %46 = sbr.rel (0) target = $region53
    $region52: #{vqa_forward.1} parent=1 // pred_region
      _
    $region53: #{vqa_forward.1} parent=1 // pred_fallthru
      _
    // Predicated region
    $region54: #{vqa_forward.1} parent=1 // pred_check
      _
    $region55: #{vqa_forward.1} parent=1 // pred_check_branch
      %48 = sbr.rel (0) target = $region57
    $region56: #{vqa_forward.1} parent=1 // pred_region
      _
    $region57: #{vqa_forward.1} parent=1 // pred_fallthru
      _
    // Predicated region
    $region58: #{vqa_forward.1} parent=1 // pred_check
      _
    $region59: #{vqa_forward.1} parent=1 // pred_check_branch
      %50 = sbr.rel (0) target = $region61
    $region60: #{vqa_forward.1} parent=1 // pred_region
      _
    $region61: #{vqa_forward.1} parent=1 // pred_fallthru
      _
    %v51 = vld [vmem:[%s0] sm:$0xff]
    %v52 = vld [vmem:[%s0 + $0x8] sm:$0xff]
    %v53 = vld [vmem:[%s0 + $0x10] sm:$0xff]
    %v54 = vld [vmem:[%s0 + $0x18] sm:$0xff]
    %v55 = vld [vmem:[%s0 + $0x20] sm:$0xff]
    %v56 = vld [vmem:[%s0 + $0x28] sm:$0xff]
    %v57 = vld [vmem:[%s0 + $0x30] sm:$0xff]
    %v58 = vld [vmem:[%s0 + $0x38] sm:$0xff]
    %v59 = vld [vmem:[%s4] sm:$0xff]
    %v60 = vld [vmem:[%s4 + $0x8] sm:$0xff]
    %v61 = vld [vmem:[%s4 + $0x10] sm:$0xff]
    %v62 = vld [vmem:[%s4 + $0x18] sm:$0xff]
    %v63 = vld [vmem:[%s4 + $0x20] sm:$0xff]
    %v64 = vld [vmem:[%s4 + $0x28] sm:$0xff]
    %v65 = vld [vmem:[%s4 + $0x30] sm:$0xff]
    %v66 = vld [vmem:[%s4 + $0x38] sm:$0xff]
    %v67 = vld [vmem:[%s4 + $0x40] sm:$0xff]
    %v68 = vld [vmem:[%s4 + $0x48] sm:$0xff]
    %v69 = vld [vmem:[%s4 + $0x50] sm:$0xff]
    %v70 = vld [vmem:[%s4 + $0x58] sm:$0xff]
    %v71 = vld [vmem:[%s4 + $0x60] sm:$0xff]
    %v72 = vld [vmem:[%s4 + $0x68] sm:$0xff]
    %v73 = vld [vmem:[%s4 + $0x70] sm:$0xff]
    %v74 = vld [vmem:[%s4 + $0x78] sm:$0xff]
    %v75 = vld [vmem:[%s4 + $0x80] sm:$0xff]
    %v76 = vld [vmem:[%s4 + $0x88] sm:$0xff]
    %v77 = vld [vmem:[%s4 + $0x90] sm:$0xff]
    %v78 = vld [vmem:[%s4 + $0x98] sm:$0xff]
    %v79 = vld [vmem:[%s4 + $0xa0] sm:$0xff]
    %v80 = vld [vmem:[%s4 + $0xa8] sm:$0xff]
    %v81 = vld [vmem:[%s4 + $0xb0] sm:$0xff]
    %v82 = vld [vmem:[%s4 + $0xb8] sm:$0xff]
    %v83 = vld [vmem:[%s4 + $0xc0] sm:$0xff]
    %v84 = vld [vmem:[%s4 + $0xc8] sm:$0xff]
    %v85 = vld [vmem:[%s4 + $0xd0] sm:$0xff]
    %v86 = vld [vmem:[%s4 + $0xd8] sm:$0xff]
    %v87 = vld [vmem:[%s4 + $0xe0] sm:$0xff]
    %v88 = vld [vmem:[%s4 + $0xe8] sm:$0xff]
    %v89 = vld [vmem:[%s4 + $0xf0] sm:$0xff]
    %v90 = vld [vmem:[%s4 + $0xf8] sm:$0xff]
    %v91 = vld [vmem:[%s4 + $0x100] sm:$0xff]
    %v92 = vld [vmem:[%s4 + $0x108] sm:$0xff]
    %v93 = vld [vmem:[%s4 + $0x110] sm:$0xff]
    %v94 = vld [vmem:[%s4 + $0x118] sm:$0xff]
    %v95 = vld [vmem:[%s4 + $0x120] sm:$0xff]
    %v96 = vld [vmem:[%s4 + $0x128] sm:$0xff]
    %v97 = vld [vmem:[%s4 + $0x130] sm:$0xff]
    %v98 = vld [vmem:[%s4 + $0x138] sm:$0xff]
    %v99 = vld [vmem:[%s4 + $0x140] sm:$0xff]
    %v100 = vld [vmem:[%s4 + $0x148] sm:$0xff]
    %v101 = vld [vmem:[%s4 + $0x150] sm:$0xff]
    %v102 = vld [vmem:[%s4 + $0x158] sm:$0xff]
    %v103 = vld [vmem:[%s4 + $0x160] sm:$0xff]
    %v104 = vld [vmem:[%s4 + $0x168] sm:$0xff]
    %v105 = vld [vmem:[%s4 + $0x170] sm:$0xff]
    %v106 = vld [vmem:[%s4 + $0x178] sm:$0xff]
    %v107 = vld [vmem:[%s4 + $0x180] sm:$0xff]
    %v108 = vld [vmem:[%s4 + $0x188] sm:$0xff]
    %v109 = vld [vmem:[%s4 + $0x190] sm:$0xff]
    %v110 = vld [vmem:[%s4 + $0x198] sm:$0xff]
    %v111 = vld [vmem:[%s4 + $0x1a0] sm:$0xff]
    %v112 = vld [vmem:[%s4 + $0x1a8] sm:$0xff]
    %v113 = vld [vmem:[%s4 + $0x1b0] sm:$0xff]
    %v114 = vld [vmem:[%s4 + $0x1b8] sm:$0xff]
    %v115 = vld [vmem:[%s4 + $0x1c0] sm:$0xff]
    %v116 = vld [vmem:[%s4 + $0x1c8] sm:$0xff]
    %v117 = vld [vmem:[%s4 + $0x1d0] sm:$0xff]
    %v118 = vld [vmem:[%s4 + $0x1d8] sm:$0xff]
    %v119 = vld [vmem:[%s4 + $0x1e0] sm:$0xff]
    %v120 = vld [vmem:[%s4 + $0x1e8] sm:$0xff]
    %v121 = vld [vmem:[%s4 + $0x1f0] sm:$0xff]
    %v122 = vld [vmem:[%s4 + $0x1f8] sm:$0xff]
    %v123 = vld [vmem:[%s5] sm:$0x1]
    %v125 = vlaneseq
    %v126 = vshrl.u32 %v125, 7
    %v127 = vsub.s32 0, %v126
    %v128 = vrot.slane %v123, %v127
    %130 = vmatprep.subr.mxu0 0.0
    %131 = vmatpush1.msra.mxu0 %v59
    %132 = vmatprep.subr.mxu0 0.0
    %133 = vmatpush1.msra.mxu0 %v60
    %134 = vmatprep.subr.mxu0 0.0
    %135 = vmatpush1.msra.mxu0 %v61
    %136 = vmatprep.subr.mxu0 0.0
    %137 = vmatpush1.msra.mxu0 %v62
    %138 = vmatprep.subr.mxu0 0.0
    %139 = vmatpush1.msra.mxu0 %v63
    %140 = vmatprep.subr.mxu0 0.0
    %141 = vmatpush1.msra.mxu0 %v64
    %142 = vmatprep.subr.mxu0 0.0
    %143 = vmatpush1.msra.mxu0 %v65
    %144 = vmatprep.subr.mxu0 0.0
    %145 = vmatpush1.msra.mxu0 %v66
    %146 = vmatprep.subr.mxu0 0.0
    %147 = vmatpush1.msra.mxu0 %v67
    %148 = vmatprep.subr.mxu0 0.0
    %149 = vmatpush1.msra.mxu0 %v68
    %150 = vmatprep.subr.mxu0 0.0
    %151 = vmatpush1.msra.mxu0 %v69
    %152 = vmatprep.subr.mxu0 0.0
    %153 = vmatpush1.msra.mxu0 %v70
    %154 = vmatprep.subr.mxu0 0.0
    %155 = vmatpush1.msra.mxu0 %v71
    %156 = vmatprep.subr.mxu0 0.0
    %157 = vmatpush1.msra.mxu0 %v72
    %158 = vmatprep.subr.mxu0 0.0
    %159 = vmatpush1.msra.mxu0 %v73
    %160 = vmatprep.subr.mxu0 0.0
    %161 = vmatpush1.msra.mxu0 %v74
    %162 = vmatprep.subr.mxu0 0.0
    %163 = vmatpush1.msra.mxu0 %v75
    %164 = vmatprep.subr.mxu0 0.0
    %165 = vmatpush1.msra.mxu0 %v76
    %166 = vmatprep.subr.mxu0 0.0
    %167 = vmatpush1.msra.mxu0 %v77
    %168 = vmatprep.subr.mxu0 0.0
    %169 = vmatpush1.msra.mxu0 %v78
    %170 = vmatprep.subr.mxu0 0.0
    %171 = vmatpush1.msra.mxu0 %v79
    %172 = vmatprep.subr.mxu0 0.0
    %173 = vmatpush1.msra.mxu0 %v80
    %174 = vmatprep.subr.mxu0 0.0
    %175 = vmatpush1.msra.mxu0 %v81
    %176 = vmatprep.subr.mxu0 0.0
    %177 = vmatpush1.msra.mxu0 %v82
    %178 = vmatprep.subr.mxu0 0.0
    %179 = vmatpush1.msra.mxu0 %v83
    %180 = vmatprep.subr.mxu0 0.0
    %181 = vmatpush1.msra.mxu0 %v84
    %182 = vmatprep.subr.mxu0 0.0
    %183 = vmatpush1.msra.mxu0 %v85
    %184 = vmatprep.subr.mxu0 0.0
    %185 = vmatpush1.msra.mxu0 %v86
    %186 = vmatprep.subr.mxu0 0.0
    %187 = vmatpush1.msra.mxu0 %v87
    %188 = vmatprep.subr.mxu0 0.0
    %189 = vmatpush1.msra.mxu0 %v88
    %190 = vmatprep.subr.mxu0 0.0
    %191 = vmatpush1.msra.mxu0 %v89
    %192 = vmatprep.subr.mxu0 0.0
    %193 = vmatpush1.msra.mxu0 %v90
    %194 = vmatprep.mubr.f32.mxu0 %v52
    %195 = vmatmul.mubr.f32.gmra.mrb[0].mxu0 %v51
    %v196 = vpop.f32.mrb[0].mxu0
    %v197 = vadd.f32 %v128, %v196
    %v198 = vpop.f32.mrb[0].mxu0
    %199 = vmatprep.mubr.f32.mxu0 %v56
    %200 = vmatmul.mubr.f32.gmra.mrb[0].mxu0 %v55
    %v201 = vpop.f32.mrb[0].mxu0
    %v202 = vadd.f32 %v128, %v201
    %v203 = vpop.f32.mrb[0].mxu0
    %204 = vdwg.mxu0
    %205 = vmatprep.subr.mxu0 0.0
    %206 = vmatpush1.msra.mxu0 %v91
    %207 = vmatprep.subr.mxu0 0.0
    %208 = vmatpush1.msra.mxu0 %v92
    %209 = vmatprep.subr.mxu0 0.0
    %210 = vmatpush1.msra.mxu0 %v93
    %211 = vmatprep.subr.mxu0 0.0
    %212 = vmatpush1.msra.mxu0 %v94
    %213 = vmatprep.subr.mxu0 0.0
    %214 = vmatpush1.msra.mxu0 %v95
    %215 = vmatprep.subr.mxu0 0.0
    %216 = vmatpush1.msra.mxu0 %v96
    %217 = vmatprep.subr.mxu0 0.0
    %218 = vmatpush1.msra.mxu0 %v97
    %219 = vmatprep.subr.mxu0 0.0
    %220 = vmatpush1.msra.mxu0 %v98
    %221 = vmatprep.subr.mxu0 0.0
    %222 = vmatpush1.msra.mxu0 %v99
    %223 = vmatprep.subr.mxu0 0.0
    %224 = vmatpush1.msra.mxu0 %v100
    %225 = vmatprep.subr.mxu0 0.0
    %226 = vmatpush1.msra.mxu0 %v101
    %227 = vmatprep.subr.mxu0 0.0
    %228 = vmatpush1.msra.mxu0 %v102
    %229 = vmatprep.subr.mxu0 0.0
    %230 = vmatpush1.msra.mxu0 %v103
    %231 = vmatprep.subr.mxu0 0.0
    %232 = vmatpush1.msra.mxu0 %v104
    %233 = vmatprep.subr.mxu0 0.0
    %234 = vmatpush1.msra.mxu0 %v105
    %235 = vmatprep.subr.mxu0 0.0
    %236 = vmatpush1.msra.mxu0 %v106
    %237 = vmatprep.subr.mxu0 0.0
    %238 = vmatpush1.msra.mxu0 %v107
    %239 = vmatprep.subr.mxu0 0.0
    %240 = vmatpush1.msra.mxu0 %v108
    %241 = vmatprep.subr.mxu0 0.0
    %242 = vmatpush1.msra.mxu0 %v109
    %243 = vmatprep.subr.mxu0 0.0
    %244 = vmatpush1.msra.mxu0 %v110
    %245 = vmatprep.subr.mxu0 0.0
    %246 = vmatpush1.msra.mxu0 %v111
    %247 = vmatprep.subr.mxu0 0.0
    %248 = vmatpush1.msra.mxu0 %v112
    %249 = vmatprep.subr.mxu0 0.0
    %250 = vmatpush1.msra.mxu0 %v113
    %251 = vmatprep.subr.mxu0 0.0
    %252 = vmatpush1.msra.mxu0 %v114
    %253 = vmatprep.subr.mxu0 0.0
    %254 = vmatpush1.msra.mxu0 %v115
    %255 = vmatprep.subr.mxu0 0.0
    %256 = vmatpush1.msra.mxu0 %v116
    %257 = vmatprep.subr.mxu0 0.0
    %258 = vmatpush1.msra.mxu0 %v117
    %259 = vmatprep.subr.mxu0 0.0
    %260 = vmatpush1.msra.mxu0 %v118
    %261 = vmatprep.subr.mxu0 0.0
    %262 = vmatpush1.msra.mxu0 %v119
    %263 = vmatprep.subr.mxu0 0.0
    %264 = vmatpush1.msra.mxu0 %v120
    %265 = vmatprep.subr.mxu0 0.0
    %266 = vmatpush1.msra.mxu0 %v121
    %267 = vmatprep.subr.mxu0 0.0
    %268 = vmatpush1.msra.mxu0 %v122
    %269 = vmatprep.mubr.f32.mxu0 %v54
    %270 = vmatmul.mubr.f32.gmra.mrb[0].mxu0 %v53
    %v271 = vpop.f32.mrb[0].mxu0
    %v272 = vadd.f32 %v197, %v271
    %v273 = vpop.f32.mrb[0].mxu0
    %274 = vmatprep.mubr.f32.mxu0 %v58
    %275 = vmatmul.mubr.f32.gmra.mrb[0].mxu0 %v57
    %v276 = vpop.f32.mrb[0].mxu0
    %v277 = vadd.f32 %v202, %v276
    %v278 = vpop.f32.mrb[0].mxu0
    %279 = vdwg.mxu0
    %v280 = vtanh.pop %v272
    %v281 = vtanh.pop %v277
    %v282 = vld [vmem:[%s1] sm:$0xff]
    %v283 = vld [vmem:[%s1 + $0x8] sm:$0xf]
    %v284 = vld [vmem:[%s6] sm:$0xff]
    %v285 = vld [vmem:[%s6 + $0x8] sm:$0xff]
    %v286 = vld [vmem:[%s6 + $0x10] sm:$0xff]
    %v287 = vld [vmem:[%s6 + $0x18] sm:$0xff]
    %v288 = vld [vmem:[%s6 + $0x20] sm:$0xff]
    %v289 = vld [vmem:[%s6 + $0x28] sm:$0xff]
    %v290 = vld [vmem:[%s6 + $0x30] sm:$0x3]
    %vm291 = vcmask 408576
    %v293 = vsel %vm291, %v282, 0
    %v296 = vsel %vm291, %v283, 0
    %vm298 = vcmask 1041408
    %v300 = vsel %vm298, %v290, 0
    %302 = vmatprep.subr.mxu0 0.0
    %303 = vmatpush1.msra.mxu0 %v284
    %304 = vmatprep.subr.mxu0 0.0
    %305 = vmatpush1.msra.mxu0 %v285
    %306 = vmatprep.subr.mxu0 0.0
    %307 = vmatpush1.msra.mxu0 %v286
    %308 = vmatprep.subr.mxu0 0.0
    %309 = vmatpush1.msra.mxu0 %v287
    %310 = vmatprep.subr.mxu0 0.0
    %311 = vmatpush1.msra.mxu0 %v288
    %312 = vmatprep.subr.mxu0 0.0
    %313 = vmatpush1.msra.mxu0 %v289
    %314 = vmatprep.subr.mxu0 0.0
    %315 = vmatpush1.msra.mxu0 %v300
    %316 = vmatprep.subr.mxu0 0.0
    %317 = vmatpush1.msra.mxu0 0.0
    %318 = vmatprep.subr.mxu0 0.0
    %319 = vmatpush1.msra.mxu0 0.0
    %320 = vmatprep.subr.mxu0 0.0
    %321 = vmatpush1.msra.mxu0 0.0
    %322 = vmatprep.subr.mxu0 0.0
    %323 = vmatpush1.msra.mxu0 0.0
    %324 = vmatprep.subr.mxu0 0.0
    %325 = vmatpush1.msra.mxu0 0.0
    %326 = vmatprep.subr.mxu0 0.0
    %327 = vmatpush1.msra.mxu0 0.0
    %328 = vmatprep.subr.mxu0 0.0
    %329 = vmatpush1.msra.mxu0 0.0
    %330 = vmatprep.subr.mxu0 0.0
    %331 = vmatpush1.msra.mxu0 0.0
    %332 = vmatprep.subr.mxu0 0.0
    %333 = vmatpush1.msra.mxu0 0.0
    %334 = vmatprep.subr.mxu0 0.0
    %335 = vmatpush1.msra.mxu0 0.0
    %336 = vmatprep.subr.mxu0 0.0
    %337 = vmatpush1.msra.mxu0 0.0
    %338 = vmatprep.subr.mxu0 0.0
    %339 = vmatpush1.msra.mxu0 0.0
    %340 = vmatprep.subr.mxu0 0.0
    %341 = vmatpush1.msra.mxu0 0.0
    %342 = vmatprep.subr.mxu0 0.0
    %343 = vmatpush1.msra.mxu0 0.0
    %344 = vmatprep.subr.mxu0 0.0
    %345 = vmatpush1.msra.mxu0 0.0
    %346 = vmatprep.subr.mxu0 0.0
    %347 = vmatpush1.msra.mxu0 0.0
    %348 = vmatprep.subr.mxu0 0.0
    %349 = vmatpush1.msra.mxu0 0.0
    %350 = vmatprep.subr.mxu0 0.0
    %351 = vmatpush1.msra.mxu0 0.0
    %352 = vmatprep.subr.mxu0 0.0
    %353 = vmatpush1.msra.mxu0 0.0
    %354 = vmatprep.subr.mxu0 0.0
    %355 = vmatpush1.msra.mxu0 0.0
    %356 = vmatprep.subr.mxu0 0.0
    %357 = vmatpush1.msra.mxu0 0.0
    %358 = vmatprep.subr.mxu0 0.0
    %359 = vmatpush1.msra.mxu0 0.0
    %360 = vmatprep.subr.mxu0 0.0
    %361 = vmatpush1.msra.mxu0 0.0
    %362 = vmatprep.subr.mxu0 0.0
    %363 = vmatpush1.msra.mxu0 0.0
    %364 = vmatprep.subr.mxu0 0.0
    %365 = vmatpush1.msra.mxu0 0.0
    %366 = vmatprep.mubr.f32.mxu0 0.0
    %367 = vmatmul.mubr.f32.gmra.mrb[0].mxu0 %v293
    %v368 = vpop.f32.mrb[0].mxu0
    %v369 = vadd.f32 0.0, %v368
    %v370 = vpop.f32.mrb[0].mxu0
    %371 = vmatprep.mubr.f32.mxu0 0.0
    %372 = vmatmul.mubr.f32.gmra.mrb[0].mxu0 %v296
    %v373 = vpop.f32.mrb[0].mxu0
    %v374 = vadd.f32 0.0, %v373
    %v375 = vpop.f32.mrb[0].mxu0
    %376 = vdwg.mxu0
    %v377 = vtanh.pop %v369
    %v378 = vtanh.pop %v374
    %v379 = vld [vmem:[%s8] sm:$0xff]
    %v380 = vld [vmem:[%s8 + $0x8] sm:$0xff]
    %v381 = vld [vmem:[%s8 + $0x10] sm:$0xff]
    %v382 = vld [vmem:[%s8 + $0x18] sm:$0xff]
    %v383 = vld [vmem:[%s8 + $0x20] sm:$0xff]
    %v384 = vld [vmem:[%s8 + $0x28] sm:$0xff]
    %v385 = vld [vmem:[%s8 + $0x30] sm:$0xff]
    %v386 = vld [vmem:[%s8 + $0x38] sm:$0xff]
    %v387 = vld [vmem:[%s8 + $0x40] sm:$0xff]
    %v388 = vld [vmem:[%s8 + $0x48] sm:$0xff]
    %v389 = vld [vmem:[%s8 + $0x50] sm:$0xff]
    %v390 = vld [vmem:[%s8 + $0x58] sm:$0xff]
    %v391 = vld [vmem:[%s8 + $0x60] sm:$0xff]
    %v392 = vld [vmem:[%s8 + $0x68] sm:$0xff]
    %v393 = vld [vmem:[%s8 + $0x70] sm:$0xff]
    %v394 = vld [vmem:[%s8 + $0x78] sm:$0xff]
    %v395 = vld [vmem:[%s7] sm:$0xff]
    %v396 = vld [vmem:[%s7 + $0x8] sm:$0xff]
    %v397 = vld [vmem:[%s7 + $0x10] sm:$0xff]
    %v398 = vld [vmem:[%s7 + $0x18] sm:$0xff]
    %v399 = vld [vmem:[%s7 + $0x20] sm:$0xff]
    %v400 = vld [vmem:[%s7 + $0x28] sm:$0xff]
    %v401 = vld [vmem:[%s7 + $0x30] sm:$0xff]
    %v402 = vld [vmem:[%s7 + $0x38] sm:$0xff]
    %v403 = vld [vmem:[%s7 + $0x40] sm:$0xff]
    %v404 = vld [vmem:[%s7 + $0x48] sm:$0xff]
    %v405 = vld [vmem:[%s7 + $0x50] sm:$0xff]
    %v406 = vld [vmem:[%s7 + $0x58] sm:$0xff]
    %v407 = vld [vmem:[%s7 + $0x60] sm:$0xff]
    %v408 = vld [vmem:[%s7 + $0x68] sm:$0xff]
    %v409 = vld [vmem:[%s7 + $0x70] sm:$0xff]
    %v410 = vld [vmem:[%s7 + $0x78] sm:$0xff]
    %v411 = vld [vmem:[%s9] sm:$0x3]
    %v413 = vlaneseq
    %v414 = vshrl.u32 %v413, 7
    %v415 = vsub.s32 0, %v414
    %v416 = vrot.slane %v411, %v415
    %v417 = vlaneseq
    %v418 = vshrl.u32 %v417, 7
    %v419 = vsub.s32 1, %v418
    %v420 = vrot.slane %v411, %v419
    %vm423 = vcmask 523264
    %v425 = vsel %vm423, %v377, 0
    %v428 = vsel %vm423, %v378, 0
    %430 = vmatprep.subr.mxu0 %v396
    %431 = vmatpush1.msra.mxu0 %v395
    %432 = vmatprep.subr.mxu0 %v398
    %433 = vmatpush1.msra.mxu0 %v397
    %434 = vmatprep.subr.mxu0 %v400
    %435 = vmatpush1.msra.mxu0 %v399
    %436 = vmatprep.subr.mxu0 %v402
    %437 = vmatpush1.msra.mxu0 %v401
    %438 = vmatprep.subr.mxu0 %v404
    %439 = vmatpush1.msra.mxu0 %v403
    %440 = vmatprep.subr.mxu0 %v406
    %441 = vmatpush1.msra.mxu0 %v405
    %442 = vmatprep.subr.mxu0 %v408
    %443 = vmatpush1.msra.mxu0 %v407
    %444 = vmatprep.subr.mxu0 %v410
    %445 = vmatpush1.msra.mxu0 %v409
    %446 = vmatprep.subr.mxu0 0.0
    %447 = vmatpush1.msra.mxu0 0.0
    %448 = vmatprep.subr.mxu0 0.0
    %449 = vmatpush1.msra.mxu0 0.0
    %450 = vmatprep.subr.mxu0 0.0
    %451 = vmatpush1.msra.mxu0 0.0
    %452 = vmatprep.subr.mxu0 0.0
    %453 = vmatpush1.msra.mxu0 0.0
    %454 = vmatprep.subr.mxu0 0.0
    %455 = vmatpush1.msra.mxu0 0.0
    %456 = vmatprep.subr.mxu0 0.0
    %457 = vmatpush1.msra.mxu0 0.0
    %458 = vmatprep.subr.mxu0 0.0
    %459 = vmatpush1.msra.mxu0 0.0
    %460 = vmatprep.subr.mxu0 0.0
    %461 = vmatpush1.msra.mxu0 0.0
    %462 = vmatprep.subr.mxu0 0.0
    %463 = vmatpush1.msra.mxu0 0.0
    %464 = vmatprep.subr.mxu0 0.0
    %465 = vmatpush1.msra.mxu0 0.0
    %466 = vmatprep.subr.mxu0 0.0
    %467 = vmatpush1.msra.mxu0 0.0
    %468 = vmatprep.subr.mxu0 0.0
    %469 = vmatpush1.msra.mxu0 0.0
    %470 = vmatprep.subr.mxu0 0.0
    %471 = vmatpush1.msra.mxu0 0.0
    %472 = vmatprep.subr.mxu0 0.0
    %473 = vmatpush1.msra.mxu0 0.0
    %474 = vmatprep.subr.mxu0 0.0
    %475 = vmatpush1.msra.mxu0 0.0
    %476 = vmatprep.subr.mxu0 0.0
    %477 = vmatpush1.msra.mxu0 0.0
    %478 = vmatprep.subr.mxu0 0.0
    %479 = vmatpush1.msra.mxu0 0.0
    %480 = vmatprep.subr.mxu0 0.0
    %481 = vmatpush1.msra.mxu0 0.0
    %482 = vmatprep.subr.mxu0 0.0
    %483 = vmatpush1.msra.mxu0 0.0
    %484 = vmatprep.subr.mxu0 0.0
    %485 = vmatpush1.msra.mxu0 0.0
    %486 = vmatprep.subr.mxu0 0.0
    %487 = vmatpush1.msra.mxu0 0.0
    %488 = vmatprep.subr.mxu0 0.0
    %489 = vmatpush1.msra.mxu0 0.0
    %490 = vmatprep.subr.mxu0 0.0
    %491 = vmatpush1.msra.mxu0 0.0
    %492 = vmatprep.subr.mxu0 0.0
    %493 = vmatpush1.msra.mxu0 0.0
    %494 = vmatprep.mubr.f32.mxu0 0.0
    %495 = vmatmul.mubr.f32.gmra.mrb[0].mxu0 %v425
    %v496 = vpop.f32.mrb[0].mxu0
    %v497 = vadd.f32 %v416, %v496
    %v498 = vpop.f32.mrb[0].mxu0
    %v499 = vadd.f32 %v420, %v498
    %500 = vmatprep.mubr.f32.mxu0 0.0
    %501 = vmatmul.mubr.f32.gmra.mrb[0].mxu0 %v428
    %v502 = vpop.f32.mrb[0].mxu0
    %v503 = vadd.f32 %v416, %v502
    %v504 = vpop.f32.mrb[0].mxu0
    %v505 = vadd.f32 %v420, %v504
    %506 = vdwg.mxu0
    %v508 = vrot.slane %v505, 2
    %v511 = vsel %vm423, 0.0, 0
    %513 = vmatprep.subr.mxu0 %v380
    %514 = vmatpush1.msra.mxu0 %v379
    %515 = vmatprep.subr.mxu0 %v382
    %516 = vmatpush1.msra.mxu0 %v381
    %517 = vmatprep.subr.mxu0 %v384
    %518 = vmatpush1.msra.mxu0 %v383
    %519 = vmatprep.subr.mxu0 %v386
    %520 = vmatpush1.msra.mxu0 %v385
    %521 = vmatprep.subr.mxu0 %v388
    %522 = vmatpush1.msra.mxu0 %v387
    %523 = vmatprep.subr.mxu0 %v390
    %524 = vmatpush1.msra.mxu0 %v389
    %525 = vmatprep.subr.mxu0 %v392
    %526 = vmatpush1.msra.mxu0 %v391
    %527 = vmatprep.subr.mxu0 %v394
    %528 = vmatpush1.msra.mxu0 %v393
    %529 = vmatprep.subr.mxu0 0.0
    %530 = vmatpush1.msra.mxu0 0.0
    %531 = vmatprep.subr.mxu0 0.0
    %532 = vmatpush1.msra.mxu0 0.0
    %533 = vmatprep.subr.mxu0 0.0
    %534 = vmatpush1.msra.mxu0 0.0
    %535 = vmatprep.subr.mxu0 0.0
    %536 = vmatpush1.msra.mxu0 0.0
    %537 = vmatprep.subr.mxu0 0.0
    %538 = vmatpush1.msra.mxu0 0.0
    %539 = vmatprep.subr.mxu0 0.0
    %540 = vmatpush1.msra.mxu0 0.0
    %541 = vmatprep.subr.mxu0 0.0
    %542 = vmatpush1.msra.mxu0 0.0
    %543 = vmatprep.subr.mxu0 0.0
    %544 = vmatpush1.msra.mxu0 0.0
    %545 = vmatprep.subr.mxu0 0.0
    %546 = vmatpush1.msra.mxu0 0.0
    %547 = vmatprep.subr.mxu0 0.0
    %548 = vmatpush1.msra.mxu0 0.0
    %549 = vmatprep.subr.mxu0 0.0
    %550 = vmatpush1.msra.mxu0 0.0
    %551 = vmatprep.subr.mxu0 0.0
    %552 = vmatpush1.msra.mxu0 0.0
    %553 = vmatprep.subr.mxu0 0.0
    %554 = vmatpush1.msra.mxu0 0.0
    %555 = vmatprep.subr.mxu0 0.0
    %556 = vmatpush1.msra.mxu0 0.0
    %557 = vmatprep.subr.mxu0 0.0
    %558 = vmatpush1.msra.mxu0 0.0
    %559 = vmatprep.subr.mxu0 0.0
    %560 = vmatpush1.msra.mxu0 0.0
    %561 = vmatprep.subr.mxu0 0.0
    %562 = vmatpush1.msra.mxu0 0.0
    %563 = vmatprep.subr.mxu0 0.0
    %564 = vmatpush1.msra.mxu0 0.0
    %565 = vmatprep.subr.mxu0 0.0
    %566 = vmatpush1.msra.mxu0 0.0
    %567 = vmatprep.subr.mxu0 0.0
    %568 = vmatpush1.msra.mxu0 0.0
    %569 = vmatprep.subr.mxu0 0.0
    %570 = vmatpush1.msra.mxu0 0.0
    %571 = vmatprep.subr.mxu0 0.0
    %572 = vmatpush1.msra.mxu0 0.0
    %573 = vmatprep.subr.mxu0 0.0
    %574 = vmatpush1.msra.mxu0 0.0
    %575 = vmatprep.subr.mxu0 0.0
    %576 = vmatpush1.msra.mxu0 0.0
    %577 = vmatprep.mubr.f32.mxu0 0.0
    %578 = vmatmul.mubr.f32.gmra.mrb[0].mxu0 %v511
    %v579 = vpop.f32.mrb[0].mxu0
    %v580 = vadd.f32 0.0, %v579
    %v581 = vpop.f32.mrb[0].mxu0
    %v582 = vadd.f32 0.0, %v581
    %583 = vdwg.mxu0
    %v584 = vadd.f32 %v497, %v580
    %v585 = vadd.f32 %v508, %v582
    %v586 = vsub.f32 0.0, %v584
    %v587 = vsub.f32 0.0, %v585
    %v588 = vmul.f32 %v586, 1.442695
    %v589 = vpow.pop %v588
    %v590 = vmul.f32 %v587, 1.442695
    %v591 = vpow.pop %v590
    %v592 = vadd.f32 %v589, 1.0
    %v593 = vadd.f32 %v591, 1.0
    %v594 = vrcp.pop %v592
    %v595 = vrcp.pop %v593
    %v596 = vtanh.pop %v584
    %v597 = vtanh.pop %v585
    %v598 = vmul.f32 %v594, 0.0
    %600 = vrot.lane.b32.xlu0 %v596, 64
    %v601 = vpop.permute.xlu0 %600
    %v603 = vmul.f32 %v594, %v601
    %605 = vrot.lane.b32.xlu0 %v603, 32
    %v606 = vpop.permute.xlu0 %605
    %v608 = vadd.f32 %v598, %v606
    %v609 = vtanh.pop %v608
    %611 = vrot.lane.b32.xlu0 %v609, 64
    %v612 = vpop.permute.xlu0 %611
    %v614 = vmul.f32 %v594, %v612
    %v615 = vmul.f32 %v595, 0.0
    %617 = vrot.lane.b32.xlu0 %v597, 64
    %v618 = vpop.permute.xlu0 %617
    %v620 = vmul.f32 %v595, %v618
    %622 = vrot.lane.b32.xlu0 %v620, 32
    %v623 = vpop.permute.xlu0 %622
    %v625 = vadd.f32 %v615, %v623
    %v626 = vtanh.pop %v625
    %628 = vrot.lane.b32.xlu0 %v626, 64
    %v629 = vpop.permute.xlu0 %628
    %v631 = vmul.f32 %v595, %v629
    %633 = vrot.lane.b32.xlu0 %v614, 32
    %v634 = vpop.permute.xlu0 %633
    %vm636 = vcmask 254976
    %637 = vst.msk [vmem:[#allocation2] sm:$0x3] %vm636, %v634
    %639 = vrot.lane.b32.xlu0 %v631, 64
    %v640 = vpop.permute.xlu0 %639
    %vm642 = vcmask 517376
    %643 = vst.msk [vmem:[#allocation2 + $0xa] sm:$0x3] %vm642, %v640
    %v644 = vrot.slane %v505, 6
    %vm646 = vcmask 261120
    %v647 = vsel %vm646, %v634, %v640
    %v649 = vsel %vm423, %v647, 0
    %651 = vmatprep.subr.mxu0 %v380
    %652 = vmatpush1.msra.mxu0 %v379
    %653 = vmatprep.subr.mxu0 %v382
    %654 = vmatpush1.msra.mxu0 %v381
    %655 = vmatprep.subr.mxu0 %v384
    %656 = vmatpush1.msra.mxu0 %v383
    %657 = vmatprep.subr.mxu0 %v386
    %658 = vmatpush1.msra.mxu0 %v385
    %659 = vmatprep.subr.mxu0 %v388
    %660 = vmatpush1.msra.mxu0 %v387
    %661 = vmatprep.subr.mxu0 %v390
    %662 = vmatpush1.msra.mxu0 %v389
    %663 = vmatprep.subr.mxu0 %v392
    %664 = vmatpush1.msra.mxu0 %v391
    %665 = vmatprep.subr.mxu0 %v394
    %666 = vmatpush1.msra.mxu0 %v393
    %667 = vmatprep.subr.mxu0 0.0
    %668 = vmatpush1.msra.mxu0 0.0
    %669 = vmatprep.subr.mxu0 0.0
    %670 = vmatpush1.msra.mxu0 0.0
    %671 = vmatprep.subr.mxu0 0.0
    %672 = vmatpush1.msra.mxu0 0.0
    %673 = vmatprep.subr.mxu0 0.0
    %674 = vmatpush1.msra.mxu0 0.0
    %675 = vmatprep.subr.mxu0 0.0
    %676 = vmatpush1.msra.mxu0 0.0
    %677 = vmatprep.subr.mxu0 0.0
    %678 = vmatpush1.msra.mxu0 0.0
    %679 = vmatprep.subr.mxu0 0.0
    %680 = vmatpush1.msra.mxu0 0.0
    %681 = vmatprep.subr.mxu0 0.0
    %682 = vmatpush1.msra.mxu0 0.0
    %683 = vmatprep.subr.mxu0 0.0
    %684 = vmatpush1.msra.mxu0 0.0
    %685 = vmatprep.subr.mxu0 0.0
    %686 = vmatpush1.msra.mxu0 0.0
    %687 = vmatprep.subr.mxu0 0.0
    %688 = vmatpush1.msra.mxu0 0.0
    %689 = vmatprep.subr.mxu0 0.0
    %690 = vmatpush1.msra.mxu0 0.0
    %691 = vmatprep.subr.mxu0 0.0
    %692 = vmatpush1.msra.mxu0 0.0
    %693 = vmatprep.subr.mxu0 0.0
    %694 = vmatpush1.msra.mxu0 0.0
    %695 = vmatprep.subr.mxu0 0.0
    %696 = vmatpush1.msra.mxu0 0.0
    %697 = vmatprep.subr.mxu0 0.0
    %698 = vmatpush1.msra.mxu0 0.0
    %699 = vmatprep.subr.mxu0 0.0
    %700 = vmatpush1.msra.mxu0 0.0
    %701 = vmatprep.subr.mxu0 0.0
    %702 = vmatpush1.msra.mxu0 0.0
    %703 = vmatprep.subr.mxu0 0.0
    %704 = vmatpush1.msra.mxu0 0.0
    %705 = vmatprep.subr.mxu0 0.0
    %706 = vmatpush1.msra.mxu0 0.0
    %707 = vmatprep.subr.mxu0 0.0
    %708 = vmatpush1.msra.mxu0 0.0
    %709 = vmatprep.subr.mxu0 0.0
    %710 = vmatpush1.msra.mxu0 0.0
    %711 = vmatprep.subr.mxu0 0.0
    %712 = vmatpush1.msra.mxu0 0.0
    %713 = vmatprep.subr.mxu0 0.0
    %714 = vmatpush1.msra.mxu0 0.0
    %715 = vmatprep.mubr.f32.mxu0 0.0
    %716 = vmatmul.mubr.f32.gmra.mrb[0].mxu0 %v649
    %v717 = vpop.f32.mrb[0].mxu0
    %v718 = vadd.f32 0.0, %v717
    %v719 = vpop.f32.mrb[0].mxu0
    %v720 = vadd.f32 0.0, %v719
    %721 = vdwg.mxu0
    %v724 = vrot.slane %v718, 6
    %v725 = vrot.slane %v720, 6
    %v728 = vadd.f32 %v497, %v724
    %v729 = vadd.f32 %v644, %v725
    %v730 = vsub.f32 0.0, %v728
    %v731 = vsub.f32 0.0, %v729
    %v732 = vmul.f32 %v730, 1.442695
    %v733 = vpow.pop %v732
    %v734 = vmul.f32 %v731, 1.442695
    %v735 = vpow.pop %v734
    %v736 = vadd.f32 %v733, 1.0
    %v737 = vadd.f32 %v735, 1.0
    %v738 = vrcp.pop %v736
    %v739 = vrcp.pop %v737
    %v740 = vtanh.pop %v728
    %v741 = vtanh.pop %v729
    %v743 = vrot.slane %v608, 6
    %v745 = vmul.f32 %v738, %v743
    %747 = vrot.lane.b32.xlu0 %v740, 64
    %v748 = vpop.permute.xlu0 %747
    %v750 = vmul.f32 %v738, %v748
    %752 = vrot.lane.b32.xlu0 %v750, 32
    %v753 = vpop.permute.xlu0 %752
    %v755 = vadd.f32 %v745, %v753
    %v756 = vtanh.pop %v755
    %758 = vrot.lane.b32.xlu0 %v756, 64
    %v759 = vpop.permute.xlu0 %758
    %v761 = vmul.f32 %v738, %v759
    %v763 = vrot.slane %v625, 6
    %v765 = vmul.f32 %v739, %v763
    %767 = vrot.lane.b32.xlu0 %v741, 64
    %v768 = vpop.permute.xlu0 %767
    %v770 = vmul.f32 %v739, %v768
    %772 = vrot.lane.b32.xlu0 %v770, 32
    %v773 = vpop.permute.xlu0 %772
    %v775 = vadd.f32 %v765, %v773
    %v776 = vtanh.pop %v775
    %778 = vrot.lane.b32.xlu0 %v776, 64
    %v779 = vpop.permute.xlu0 %778
    %v781 = vmul.f32 %v739, %v779
    %783 = vrot.lane.b32.xlu0 %v761, 32
    %v784 = vpop.permute.xlu0 %783
    %vm786 = vcmask 257026
    %787 = vst.msk [vmem:[#allocation2] sm:$0xc] %vm786, %v784
    %789 = vrot.lane.b32.xlu0 %v781, 64
    %v790 = vpop.permute.xlu0 %789
    %vm792 = vcmask 519426
    %793 = vst.msk [vmem:[#allocation2 + $0x6] sm:$0xc] %vm792, %v790
    %v795 = vrot.slane %v499, 2
    %v797 = vsel %vm646, %v784, %v790
    %v799 = vrot.slane %v797, 2
    %v800 = vsel %vm423, %v799, 0
    %802 = vmatprep.subr.mxu0 %v380
    %803 = vmatpush1.msra.mxu0 %v379
    %804 = vmatprep.subr.mxu0 %v382
    %805 = vmatpush1.msra.mxu0 %v381
    %806 = vmatprep.subr.mxu0 %v384
    %807 = vmatpush1.msra.mxu0 %v383
    %808 = vmatprep.subr.mxu0 %v386
    %809 = vmatpush1.msra.mxu0 %v385
    %810 = vmatprep.subr.mxu0 %v388
    %811 = vmatpush1.msra.mxu0 %v387
    %812 = vmatprep.subr.mxu0 %v390
    %813 = vmatpush1.msra.mxu0 %v389
    %814 = vmatprep.subr.mxu0 %v392
    %815 = vmatpush1.msra.mxu0 %v391
    %816 = vmatprep.subr.mxu0 %v394
    %817 = vmatpush1.msra.mxu0 %v393
    %818 = vmatprep.subr.mxu0 0.0
    %819 = vmatpush1.msra.mxu0 0.0
    %820 = vmatprep.subr.mxu0 0.0
    %821 = vmatpush1.msra.mxu0 0.0
    %822 = vmatprep.subr.mxu0 0.0
    %823 = vmatpush1.msra.mxu0 0.0
    %824 = vmatprep.subr.mxu0 0.0
    %825 = vmatpush1.msra.mxu0 0.0
    %826 = vmatprep.subr.mxu0 0.0
    %827 = vmatpush1.msra.mxu0 0.0
    %828 = vmatprep.subr.mxu0 0.0
    %829 = vmatpush1.msra.mxu0 0.0
    %830 = vmatprep.subr.mxu0 0.0
    %831 = vmatpush1.msra.mxu0 0.0
    %832 = vmatprep.subr.mxu0 0.0
    %833 = vmatpush1.msra.mxu0 0.0
    %834 = vmatprep.subr.mxu0 0.0
    %835 = vmatpush1.msra.mxu0 0.0
    %836 = vmatprep.subr.mxu0 0.0
    %837 = vmatpush1.msra.mxu0 0.0
    %838 = vmatprep.subr.mxu0 0.0
    %839 = vmatpush1.msra.mxu0 0.0
    %840 = vmatprep.subr.mxu0 0.0
    %841 = vmatpush1.msra.mxu0 0.0
    %842 = vmatprep.subr.mxu0 0.0
    %843 = vmatpush1.msra.mxu0 0.0
    %844 = vmatprep.subr.mxu0 0.0
    %845 = vmatpush1.msra.mxu0 0.0
    %846 = vmatprep.subr.mxu0 0.0
    %847 = vmatpush1.msra.mxu0 0.0
    %848 = vmatprep.subr.mxu0 0.0
    %849 = vmatpush1.msra.mxu0 0.0
    %850 = vmatprep.subr.mxu0 0.0
    %851 = vmatpush1.msra.mxu0 0.0
    %852 = vmatprep.subr.mxu0 0.0
    %853 = vmatpush1.msra.mxu0 0.0
    %854 = vmatprep.subr.mxu0 0.0
    %855 = vmatpush1.msra.mxu0 0.0
    %856 = vmatprep.subr.mxu0 0.0
    %857 = vmatpush1.msra.mxu0 0.0
    %858 = vmatprep.subr.mxu0 0.0
    %859 = vmatpush1.msra.mxu0 0.0
    %860 = vmatprep.subr.mxu0 0.0
    %861 = vmatpush1.msra.mxu0 0.0
    %862 = vmatprep.subr.mxu0 0.0
    %863 = vmatpush1.msra.mxu0 0.0
    %864 = vmatprep.subr.mxu0 0.0
    %865 = vmatpush1.msra.mxu0 0.0
    %866 = vmatprep.mubr.f32.mxu0 0.0
    %867 = vmatmul.mubr.f32.gmra.mrb[0].mxu0 %v800
    %v868 = vpop.f32.mrb[0].mxu0
    %v869 = vadd.f32 0.0, %v868
    %v870 = vpop.f32.mrb[0].mxu0
    %v871 = vadd.f32 0.0, %v870
    %872 = vdwg.mxu0
    %v875 = vrot.slane %v869, 4
    %v876 = vrot.slane %v871, 4
    %v879 = vadd.f32 %v497, %v875
    %v880 = vadd.f32 %v795, %v876
    %v881 = vsub.f32 0.0, %v879
    %v882 = vsub.f32 0.0, %v880
    %v883 = vmul.f32 %v881, 1.442695
    %v884 = vpow.pop %v883
    %v885 = vmul.f32 %v882, 1.442695
    %v886 = vpow.pop %v885
    %v887 = vadd.f32 %v884, 1.0
    %v888 = vadd.f32 %v886, 1.0
    %v889 = vrcp.pop %v887
    %v890 = vrcp.pop %v888
    %v891 = vtanh.pop %v879
    %v892 = vtanh.pop %v880
    %v894 = vrot.slane %v755, 6
    %v896 = vmul.f32 %v889, %v894
    %898 = vrot.lane.b32.xlu0 %v891, 64
    %v899 = vpop.permute.xlu0 %898
    %v901 = vmul.f32 %v889, %v899
    %903 = vrot.lane.b32.xlu0 %v901, 32
    %v904 = vpop.permute.xlu0 %903
    %v906 = vadd.f32 %v896, %v904
    %v907 = vtanh.pop %v906
    %909 = vrot.lane.b32.xlu0 %v907, 64
    %v910 = vpop.permute.xlu0 %909
    %v912 = vmul.f32 %v889, %v910
    %v914 = vrot.slane %v775, 6
    %v916 = vmul.f32 %v890, %v914
    %918 = vrot.lane.b32.xlu0 %v892, 64
    %v919 = vpop.permute.xlu0 %918
    %v921 = vmul.f32 %v890, %v919
    %923 = vrot.lane.b32.xlu0 %v921, 32
    %v924 = vpop.permute.xlu0 %923
    %v926 = vadd.f32 %v916, %v924
    %v927 = vtanh.pop %v926
    %929 = vrot.lane.b32.xlu0 %v927, 64
    %v930 = vpop.permute.xlu0 %929
    %v932 = vmul.f32 %v890, %v930
    %934 = vrot.lane.b32.xlu0 %v912, 32
    %v935 = vpop.permute.xlu0 %934
    %vm937 = vcmask 259076
    %938 = vst.msk [vmem:[#allocation2] sm:$0x30] %vm937, %v935
    %940 = vrot.lane.b32.xlu0 %v932, 64
    %v941 = vpop.permute.xlu0 %940
    %vm943 = vcmask 521476
    %944 = vst.msk [vmem:[#allocation2 + $0x2] sm:$0x30] %vm943, %v941
    %v945 = vrot.slane %v499, 6
    %v947 = vsel %vm646, %v935, %v941
    %v949 = vrot.slane %v947, 4
    %v950 = vsel %vm423, %v949, 0
    %952 = vmatprep.subr.mxu0 %v380
    %953 = vmatpush1.msra.mxu0 %v379
    %954 = vmatprep.subr.mxu0 %v382
    %955 = vmatpush1.msra.mxu0 %v381
    %956 = vmatprep.subr.mxu0 %v384
    %957 = vmatpush1.msra.mxu0 %v383
    %958 = vmatprep.subr.mxu0 %v386
    %959 = vmatpush1.msra.mxu0 %v385
    %960 = vmatprep.subr.mxu0 %v388
    %961 = vmatpush1.msra.mxu0 %v387
    %962 = vmatprep.subr.mxu0 %v390
    %963 = vmatpush1.msra.mxu0 %v389
    %964 = vmatprep.subr.mxu0 %v392
    %965 = vmatpush1.msra.mxu0 %v391
    %966 = vmatprep.subr.mxu0 %v394
    %967 = vmatpush1.msra.mxu0 %v393
    %968 = vmatprep.subr.mxu0 0.0
    %969 = vmatpush1.msra.mxu0 0.0
    %970 = vmatprep.subr.mxu0 0.0
    %971 = vmatpush1.msra.mxu0 0.0
    %972 = vmatprep.subr.mxu0 0.0
    %973 = vmatpush1.msra.mxu0 0.0
    %974 = vmatprep.subr.mxu0 0.0
    %975 = vmatpush1.msra.mxu0 0.0
    %976 = vmatprep.subr.mxu0 0.0
    %977 = vmatpush1.msra.mxu0 0.0
    %978 = vmatprep.subr.mxu0 0.0
    %979 = vmatpush1.msra.mxu0 0.0
    %980 = vmatprep.subr.mxu0 0.0
    %981 = vmatpush1.msra.mxu0 0.0
    %982 = vmatprep.subr.mxu0 0.0
    %983 = vmatpush1.msra.mxu0 0.0
    %984 = vmatprep.subr.mxu0 0.0
    %985 = vmatpush1.msra.mxu0 0.0
    %986 = vmatprep.subr.mxu0 0.0
    %987 = vmatpush1.msra.mxu0 0.0
    %988 = vmatprep.subr.mxu0 0.0
    %989 = vmatpush1.msra.mxu0 0.0
    %990 = vmatprep.subr.mxu0 0.0
    %991 = vmatpush1.msra.mxu0 0.0
    %992 = vmatprep.subr.mxu0 0.0
    %993 = vmatpush1.msra.mxu0 0.0
    %994 = vmatprep.subr.mxu0 0.0
    %995 = vmatpush1.msra.mxu0 0.0
    %996 = vmatprep.subr.mxu0 0.0
    %997 = vmatpush1.msra.mxu0 0.0
    %998 = vmatprep.subr.mxu0 0.0
    %999 = vmatpush1.msra.mxu0 0.0
    %1000 = vmatprep.subr.mxu0 0.0
    %1001 = vmatpush1.msra.mxu0 0.0
    %1002 = vmatprep.subr.mxu0 0.0
    %1003 = vmatpush1.msra.mxu0 0.0
    %1004 = vmatprep.subr.mxu0 0.0
    %1005 = vmatpush1.msra.mxu0 0.0
    %1006 = vmatprep.subr.mxu0 0.0
    %1007 = vmatpush1.msra.mxu0 0.0
    %1008 = vmatprep.subr.mxu0 0.0
    %1009 = vmatpush1.msra.mxu0 0.0
    %1010 = vmatprep.subr.mxu0 0.0
    %1011 = vmatpush1.msra.mxu0 0.0
    %1012 = vmatprep.subr.mxu0 0.0
    %1013 = vmatpush1.msra.mxu0 0.0
    %1014 = vmatprep.subr.mxu0 0.0
    %1015 = vmatpush1.msra.mxu0 0.0
    %1016 = vmatprep.mubr.f32.mxu0 0.0
    %1017 = vmatmul.mubr.f32.gmra.mrb[0].mxu0 %v950
    %v1018 = vpop.f32.mrb[0].mxu0
    %v1019 = vadd.f32 0.0, %v1018
    %v1020 = vpop.f32.mrb[0].mxu0
    %v1021 = vadd.f32 0.0, %v1020
    %1022 = vdwg.mxu0
    %v1025 = vrot.slane %v1019, 2
    %v1026 = vrot.slane %v1021, 2
    %v1029 = vadd.f32 %v497, %v1025
    %v1030 = vadd.f32 %v945, %v1026
    %v1031 = vsub.f32 0.0, %v1029
    %v1032 = vsub.f32 0.0, %v1030
    %v1033 = vmul.f32 %v1031, 1.442695
    %v1034 = vpow.pop %v1033
    %v1035 = vmul.f32 %v1032, 1.442695
    %v1036 = vpow.pop %v1035
    %v1037 = vadd.f32 %v1034, 1.0
    %v1038 = vadd.f32 %v1036, 1.0
    %v1039 = vrcp.pop %v1037
    %v1040 = vrcp.pop %v1038
    %v1041 = vtanh.pop %v1029
    %v1042 = vtanh.pop %v1030
    %v1044 = vrot.slane %v906, 6
    %v1046 = vmul.f32 %v1039, %v1044
    %1048 = vrot.lane.b32.xlu0 %v1041, 64
    %v1049 = vpop.permute.xlu0 %1048
    %v1051 = vmul.f32 %v1039, %v1049
    %1053 = vrot.lane.b32.xlu0 %v1051, 32
    %v1054 = vpop.permute.xlu0 %1053
    %v1056 = vadd.f32 %v1046, %v1054
    %v1057 = vtanh.pop %v1056
    %1059 = vrot.lane.b32.xlu0 %v1057, 64
    %v1060 = vpop.permute.xlu0 %1059
    %v1062 = vmul.f32 %v1039, %v1060
    %v1064 = vrot.slane %v926, 6
    %v1066 = vmul.f32 %v1040, %v1064
    %1068 = vrot.lane.b32.xlu0 %v1042, 64
    %v1069 = vpop.permute.xlu0 %1068
    %v1071 = vmul.f32 %v1040, %v1069
    %1073 = vrot.lane.b32.xlu0 %v1071, 32
    %v1074 = vpop.permute.xlu0 %1073
    %v1076 = vadd.f32 %v1066, %v1074
    %v1077 = vtanh.pop %v1076
    %1079 = vrot.lane.b32.xlu0 %v1077, 64
    %v1080 = vpop.permute.xlu0 %1079
    %v1082 = vmul.f32 %v1040, %v1080
    %1084 = vrot.lane.b32.xlu0 %v1062, 32
    %v1085 = vpop.permute.xlu0 %1084
    %vm1087 = vcmask 261126
    %1088 = vst.msk [vmem:[#allocation2] sm:$0xc0] %vm1087, %v1085
    %1090 = vrot.lane.b32.xlu0 %v1082, 64
    %v1091 = vpop.permute.xlu0 %1090
    %vm1093 = vcmask 523526
    %1094 = vst.msk [vmem:[#allocation2 - $0x2] sm:$0xc0] %vm1093, %v1091
    %v1095 = vsel %vm646, %v1085, %v1091
    %v1097 = vrot.slane %v1095, 6
    %v1098 = vsel %vm423, %v1097, 0
    %1100 = vmatprep.subr.mxu0 %v380
    %1101 = vmatpush1.msra.mxu0 %v379
    %1102 = vmatprep.subr.mxu0 %v382
    %1103 = vmatpush1.msra.mxu0 %v381
    %1104 = vmatprep.subr.mxu0 %v384
    %1105 = vmatpush1.msra.mxu0 %v383
    %1106 = vmatprep.subr.mxu0 %v386
    %1107 = vmatpush1.msra.mxu0 %v385
    %1108 = vmatprep.subr.mxu0 %v388
    %1109 = vmatpush1.msra.mxu0 %v387
    %1110 = vmatprep.subr.mxu0 %v390
    %1111 = vmatpush1.msra.mxu0 %v389
    %1112 = vmatprep.subr.mxu0 %v392
    %1113 = vmatpush1.msra.mxu0 %v391
    %1114 = vmatprep.subr.mxu0 %v394
    %1115 = vmatpush1.msra.mxu0 %v393
    %1116 = vmatprep.subr.mxu0 0.0
    %1117 = vmatpush1.msra.mxu0 0.0
    %1118 = vmatprep.subr.mxu0 0.0
    %1119 = vmatpush1.msra.mxu0 0.0
    %1120 = vmatprep.subr.mxu0 0.0
    %1121 = vmatpush1.msra.mxu0 0.0
    %1122 = vmatprep.subr.mxu0 0.0
    %1123 = vmatpush1.msra.mxu0 0.0
    %1124 = vmatprep.subr.mxu0 0.0
    %1125 = vmatpush1.msra.mxu0 0.0
    %1126 = vmatprep.subr.mxu0 0.0
    %1127 = vmatpush1.msra.mxu0 0.0
    %1128 = vmatprep.subr.mxu0 0.0
    %1129 = vmatpush1.msra.mxu0 0.0
    %1130 = vmatprep.subr.mxu0 0.0
    %1131 = vmatpush1.msra.mxu0 0.0
    %1132 = vmatprep.subr.mxu0 0.0
    %1133 = vmatpush1.msra.mxu0 0.0
    %1134 = vmatprep.subr.mxu0 0.0
    %1135 = vmatpush1.msra.mxu0 0.0
    %1136 = vmatprep.subr.mxu0 0.0
    %1137 = vmatpush1.msra.mxu0 0.0
    %1138 = vmatprep.subr.mxu0 0.0
    %1139 = vmatpush1.msra.mxu0 0.0
    %1140 = vmatprep.subr.mxu0 0.0
    %1141 = vmatpush1.msra.mxu0 0.0
    %1142 = vmatprep.subr.mxu0 0.0
    %1143 = vmatpush1.msra.mxu0 0.0
    %1144 = vmatprep.subr.mxu0 0.0
    %1145 = vmatpush1.msra.mxu0 0.0
    %1146 = vmatprep.subr.mxu0 0.0
    %1147 = vmatpush1.msra.mxu0 0.0
    %1148 = vmatprep.subr.mxu0 0.0
    %1149 = vmatpush1.msra.mxu0 0.0
    %1150 = vmatprep.subr.mxu0 0.0
    %1151 = vmatpush1.msra.mxu0 0.0
    %1152 = vmatprep.subr.mxu0 0.0
    %1153 = vmatpush1.msra.mxu0 0.0
    %1154 = vmatprep.subr.mxu0 0.0
    %1155 = vmatpush1.msra.mxu0 0.0
    %1156 = vmatprep.subr.mxu0 0.0
    %1157 = vmatpush1.msra.mxu0 0.0
    %1158 = vmatprep.subr.mxu0 0.0
    %1159 = vmatpush1.msra.mxu0 0.0
    %1160 = vmatprep.subr.mxu0 0.0
    %1161 = vmatpush1.msra.mxu0 0.0
    %1162 = vmatprep.subr.mxu0 0.0
    %1163 = vmatpush1.msra.mxu0 0.0
    %1164 = vmatprep.mubr.f32.mxu0 0.0
    %1165 = vmatmul.mubr.f32.gmra.mrb[0].mxu0 %v1098
    %v1166 = vpop.f32.mrb[0].mxu0
    %v1167 = vadd.f32 0.0, %v1166
    %v1168 = vpop.f32.mrb[0].mxu0
    %v1169 = vadd.f32 0.0, %v1168
    %1170 = vdwg.mxu0
    %v1171 = vadd.f32 %v503, %v1167
    %v1172 = vadd.f32 %v795, %v1169
    %v1173 = vsub.f32 0.0, %v1171
    %v1174 = vsub.f32 0.0, %v1172
    %v1175 = vmul.f32 %v1173, 1.442695
    %v1176 = vpow.pop %v1175
    %v1177 = vmul.f32 %v1174, 1.442695
    %v1178 = vpow.pop %v1177
    %v1179 = vadd.f32 %v1176, 1.0
    %v1180 = vadd.f32 %v1178, 1.0
    %v1181 = vrcp.pop %v1179
    %v1182 = vrcp.pop %v1180
    %v1183 = vtanh.pop %v1171
    %v1184 = vtanh.pop %v1172
    %v1186 = vrot.slane %v1056, 6
    %v1188 = vmul.f32 %v1181, %v1186
    %1190 = vrot.lane.b32.xlu0 %v1183, 64
    %v1191 = vpop.permute.xlu0 %1190
    %v1193 = vmul.f32 %v1181, %v1191
    %1195 = vrot.lane.b32.xlu0 %v1193, 32
    %v1196 = vpop.permute.xlu0 %1195
    %v1198 = vadd.f32 %v1188, %v1196
    %v1199 = vtanh.pop %v1198
    %1201 = vrot.lane.b32.xlu0 %v1199, 64
    %v1202 = vpop.permute.xlu0 %1201
    %v1204 = vmul.f32 %v1181, %v1202
    %v1206 = vrot.slane %v1076, 6
    %v1208 = vmul.f32 %v1182, %v1206
    %1210 = vrot.lane.b32.xlu0 %v1184, 64
    %v1211 = vpop.permute.xlu0 %1210
    %v1213 = vmul.f32 %v1182, %v1211
    %1215 = vrot.lane.b32.xlu0 %v1213, 32
    %v1216 = vpop.permute.xlu0 %1215
    %v1218 = vadd.f32 %v1208, %v1216
    %v1219 = vtanh.pop %v1218
    %1221 = vrot.lane.b32.xlu0 %v1219, 64
    %v1222 = vpop.permute.xlu0 %1221
    %v1224 = vmul.f32 %v1182, %v1222
    %1226 = vrot.lane.b32.xlu0 %v1204, 32
    %v1227 = vpop.permute.xlu0 %1226
    %1229 = vst.msk [vmem:[#allocation2 + $0x8] sm:$0x3] %vm636, %v1227
    %1231 = vrot.lane.b32.xlu0 %v1224, 64
    %v1232 = vpop.permute.xlu0 %1231
    %1234 = vst.msk [vmem:[#allocation2 + $0x2] sm:$0x3] %vm642, %v1232
    %v1235 = vsel %vm646, %v1227, %v1232
    %v1237 = vsel %vm423, %v1235, 0
    %1239 = vmatprep.subr.mxu0 %v380
    %1240 = vmatpush1.msra.mxu0 %v379
    %1241 = vmatprep.subr.mxu0 %v382
    %1242 = vmatpush1.msra.mxu0 %v381
    %1243 = vmatprep.subr.mxu0 %v384
    %1244 = vmatpush1.msra.mxu0 %v383
    %1245 = vmatprep.subr.mxu0 %v386
    %1246 = vmatpush1.msra.mxu0 %v385
    %1247 = vmatprep.subr.mxu0 %v388
    %1248 = vmatpush1.msra.mxu0 %v387
    %1249 = vmatprep.subr.mxu0 %v390
    %1250 = vmatpush1.msra.mxu0 %v389
    %1251 = vmatprep.subr.mxu0 %v392
    %1252 = vmatpush1.msra.mxu0 %v391
    %1253 = vmatprep.subr.mxu0 %v394
    %1254 = vmatpush1.msra.mxu0 %v393
    %1255 = vmatprep.subr.mxu0 0.0
    %1256 = vmatpush1.msra.mxu0 0.0
    %1257 = vmatprep.subr.mxu0 0.0
    %1258 = vmatpush1.msra.mxu0 0.0
    %1259 = vmatprep.subr.mxu0 0.0
    %1260 = vmatpush1.msra.mxu0 0.0
    %1261 = vmatprep.subr.mxu0 0.0
    %1262 = vmatpush1.msra.mxu0 0.0
    %1263 = vmatprep.subr.mxu0 0.0
    %1264 = vmatpush1.msra.mxu0 0.0
    %1265 = vmatprep.subr.mxu0 0.0
    %1266 = vmatpush1.msra.mxu0 0.0
    %1267 = vmatprep.subr.mxu0 0.0
    %1268 = vmatpush1.msra.mxu0 0.0
    %1269 = vmatprep.subr.mxu0 0.0
    %1270 = vmatpush1.msra.mxu0 0.0
    %1271 = vmatprep.subr.mxu0 0.0
    %1272 = vmatpush1.msra.mxu0 0.0
    %1273 = vmatprep.subr.mxu0 0.0
    %1274 = vmatpush1.msra.mxu0 0.0
    %1275 = vmatprep.subr.mxu0 0.0
    %1276 = vmatpush1.msra.mxu0 0.0
    %1277 = vmatprep.subr.mxu0 0.0
    %1278 = vmatpush1.msra.mxu0 0.0
    %1279 = vmatprep.subr.mxu0 0.0
    %1280 = vmatpush1.msra.mxu0 0.0
    %1281 = vmatprep.subr.mxu0 0.0
    %1282 = vmatpush1.msra.mxu0 0.0
    %1283 = vmatprep.subr.mxu0 0.0
    %1284 = vmatpush1.msra.mxu0 0.0
    %1285 = vmatprep.subr.mxu0 0.0
    %1286 = vmatpush1.msra.mxu0 0.0
    %1287 = vmatprep.subr.mxu0 0.0
    %1288 = vmatpush1.msra.mxu0 0.0
    %1289 = vmatprep.subr.mxu0 0.0
    %1290 = vmatpush1.msra.mxu0 0.0
    %1291 = vmatprep.subr.mxu0 0.0
    %1292 = vmatpush1.msra.mxu0 0.0
    %1293 = vmatprep.subr.mxu0 0.0
    %1294 = vmatpush1.msra.mxu0 0.0
    %1295 = vmatprep.subr.mxu0 0.0
    %1296 = vmatpush1.msra.mxu0 0.0
    %1297 = vmatprep.subr.mxu0 0.0
    %1298 = vmatpush1.msra.mxu0 0.0
    %1299 = vmatprep.subr.mxu0 0.0
    %1300 = vmatpush1.msra.mxu0 0.0
    %1301 = vmatprep.subr.mxu0 0.0
    %1302 = vmatpush1.msra.mxu0 0.0
    %1303 = vmatprep.mubr.f32.mxu0 0.0
    %1304 = vmatmul.mubr.f32.gmra.mrb[0].mxu0 %v1237
    %v1305 = vpop.f32.mrb[0].mxu0
    %v1306 = vadd.f32 0.0, %v1305
    %v1307 = vpop.f32.mrb[0].mxu0
    %v1308 = vadd.f32 0.0, %v1307
    %1309 = vdwg.mxu0
    %v1312 = vrot.slane %v1306, 6
    %v1313 = vrot.slane %v1308, 6
    %v1316 = vadd.f32 %v503, %v1312
    %v1317 = vadd.f32 %v945, %v1313
    %v1318 = vsub.f32 0.0, %v1316
    %v1319 = vsub.f32 0.0, %v1317
    %v1320 = vmul.f32 %v1318, 1.442695
    %v1321 = vpow.pop %v1320
    %v1322 = vmul.f32 %v1319, 1.442695
    %v1323 = vpow.pop %v1322
    %v1324 = vadd.f32 %v1321, 1.0
    %v1325 = vadd.f32 %v1323, 1.0
    %v1326 = vrcp.pop %v1324
    %v1327 = vrcp.pop %v1325
    %v1328 = vtanh.pop %v1316
    %v1329 = vtanh.pop %v1317
    %v1331 = vrot.slane %v1198, 6
    %v1333 = vmul.f32 %v1326, %v1331
    %1335 = vrot.lane.b32.xlu0 %v1328, 64
    %v1336 = vpop.permute.xlu0 %1335
    %v1338 = vmul.f32 %v1326, %v1336
    %1340 = vrot.lane.b32.xlu0 %v1338, 32
    %v1341 = vpop.permute.xlu0 %1340
    %v1343 = vadd.f32 %v1333, %v1341
    %v1344 = vtanh.pop %v1343
    %1346 = vrot.lane.b32.xlu0 %v1344, 64
    %v1347 = vpop.permute.xlu0 %1346
    %v1349 = vmul.f32 %v1326, %v1347
    %v1351 = vrot.slane %v1218, 6
    %v1353 = vmul.f32 %v1327, %v1351
    %1355 = vrot.lane.b32.xlu0 %v1329, 64
    %v1356 = vpop.permute.xlu0 %1355
    %v1358 = vmul.f32 %v1327, %v1356
    %1360 = vrot.lane.b32.xlu0 %v1358, 32
    %v1361 = vpop.permute.xlu0 %1360
    %v1363 = vadd.f32 %v1353, %v1361
    %v1364 = vtanh.pop %v1363
    %1366 = vrot.lane.b32.xlu0 %v1364, 64
    %v1367 = vpop.permute.xlu0 %1366
    %v1369 = vmul.f32 %v1327, %v1367
    %1371 = vrot.lane.b32.xlu0 %v1349, 32
    %v1372 = vpop.permute.xlu0 %1371
    %1374 = vst.msk [vmem:[#allocation2 + $0x8] sm:$0xc] %vm786, %v1372
    %1376 = vrot.lane.b32.xlu0 %v1369, 64
    %v1377 = vpop.permute.xlu0 %1376
    %1379 = vst.msk [vmem:[#allocation2 - $0x2] sm:$0xc] %vm792, %v1377
    %v1380 = vld [vmem:[#allocation2] sm:$0xff]
    %v1381 = vld [vmem:[#allocation2 + $0x8] sm:$0xf]
    %v1382 = vld [vmem:[%s11] sm:$0xff]
    %v1383 = vld [vmem:[%s11 + $0x8] sm:$0xff]
    %v1384 = vld [vmem:[%s11 + $0x10] sm:$0xff]
    %v1385 = vld [vmem:[%s11 + $0x18] sm:$0xff]
    %v1386 = vld [vmem:[%s11 + $0x20] sm:$0xff]
    %v1387 = vld [vmem:[%s11 + $0x28] sm:$0xff]
    %v1388 = vld [vmem:[%s11 + $0x30] sm:$0xff]
    %v1389 = vld [vmem:[%s11 + $0x38] sm:$0xff]
    %v1390 = vld [vmem:[%s11 + $0x40] sm:$0xff]
    %v1391 = vld [vmem:[%s11 + $0x48] sm:$0xff]
    %v1392 = vld [vmem:[%s11 + $0x50] sm:$0xff]
    %v1393 = vld [vmem:[%s11 + $0x58] sm:$0xff]
    %v1394 = vld [vmem:[%s11 + $0x60] sm:$0xff]
    %v1395 = vld [vmem:[%s11 + $0x68] sm:$0xff]
    %v1396 = vld [vmem:[%s11 + $0x70] sm:$0xff]
    %v1397 = vld [vmem:[%s11 + $0x78] sm:$0xff]
    %v1398 = vld [vmem:[%s10] sm:$0xff]
    %v1399 = vld [vmem:[%s10 + $0x8] sm:$0xff]
    %v1400 = vld [vmem:[%s10 + $0x10] sm:$0xff]
    %v1401 = vld [vmem:[%s10 + $0x18] sm:$0xff]
    %v1402 = vld [vmem:[%s10 + $0x20] sm:$0xff]
    %v1403 = vld [vmem:[%s10 + $0x28] sm:$0xff]
    %v1404 = vld [vmem:[%s10 + $0x30] sm:$0xff]
    %v1405 = vld [vmem:[%s10 + $0x38] sm:$0xff]
    %v1406 = vld [vmem:[%s10 + $0x40] sm:$0xff]
    %v1407 = vld [vmem:[%s10 + $0x48] sm:$0xff]
    %v1408 = vld [vmem:[%s10 + $0x50] sm:$0xff]
    %v1409 = vld [vmem:[%s10 + $0x58] sm:$0xff]
    %v1410 = vld [vmem:[%s10 + $0x60] sm:$0xff]
    %v1411 = vld [vmem:[%s10 + $0x68] sm:$0xff]
    %v1412 = vld [vmem:[%s10 + $0x70] sm:$0xff]
    %v1413 = vld [vmem:[%s10 + $0x78] sm:$0xff]
    %v1414 = vld [vmem:[%s12] sm:$0x3]
    %v1416 = vlaneseq
    %v1417 = vshrl.u32 %v1416, 7
    %v1418 = vsub.s32 0, %v1417
    %v1419 = vrot.slane %v1414, %v1418
    %v1420 = vlaneseq
    %v1421 = vshrl.u32 %v1420, 7
    %v1422 = vsub.s32 1, %v1421
    %v1423 = vrot.slane %v1414, %v1422
    %v1427 = vsel %vm423, %v1380, 0
    %v1430 = vsel %vm423, %v1381, 0
    %1432 = vmatprep.subr.mxu0 %v1399
    %1433 = vmatpush1.msra.mxu0 %v1398
    %1434 = vmatprep.subr.mxu0 %v1401
    %1435 = vmatpush1.msra.mxu0 %v1400
    %1436 = vmatprep.subr.mxu0 %v1403
    %1437 = vmatpush1.msra.mxu0 %v1402
    %1438 = vmatprep.subr.mxu0 %v1405
    %1439 = vmatpush1.msra.mxu0 %v1404
    %1440 = vmatprep.subr.mxu0 %v1407
    %1441 = vmatpush1.msra.mxu0 %v1406
    %1442 = vmatprep.subr.mxu0 %v1409
    %1443 = vmatpush1.msra.mxu0 %v1408
    %1444 = vmatprep.subr.mxu0 %v1411
    %1445 = vmatpush1.msra.mxu0 %v1410
    %1446 = vmatprep.subr.mxu0 %v1413
    %1447 = vmatpush1.msra.mxu0 %v1412
    %1448 = vmatprep.subr.mxu0 0.0
    %1449 = vmatpush1.msra.mxu0 0.0
    %1450 = vmatprep.subr.mxu0 0.0
    %1451 = vmatpush1.msra.mxu0 0.0
    %1452 = vmatprep.subr.mxu0 0.0
    %1453 = vmatpush1.msra.mxu0 0.0
    %1454 = vmatprep.subr.mxu0 0.0
    %1455 = vmatpush1.msra.mxu0 0.0
    %1456 = vmatprep.subr.mxu0 0.0
    %1457 = vmatpush1.msra.mxu0 0.0
    %1458 = vmatprep.subr.mxu0 0.0
    %1459 = vmatpush1.msra.mxu0 0.0
    %1460 = vmatprep.subr.mxu0 0.0
    %1461 = vmatpush1.msra.mxu0 0.0
    %1462 = vmatprep.subr.mxu0 0.0
    %1463 = vmatpush1.msra.mxu0 0.0
    %1464 = vmatprep.subr.mxu0 0.0
    %1465 = vmatpush1.msra.mxu0 0.0
    %1466 = vmatprep.subr.mxu0 0.0
    %1467 = vmatpush1.msra.mxu0 0.0
    %1468 = vmatprep.subr.mxu0 0.0
    %1469 = vmatpush1.msra.mxu0 0.0
    %1470 = vmatprep.subr.mxu0 0.0
    %1471 = vmatpush1.msra.mxu0 0.0
    %1472 = vmatprep.subr.mxu0 0.0
    %1473 = vmatpush1.msra.mxu0 0.0
    %1474 = vmatprep.subr.mxu0 0.0
    %1475 = vmatpush1.msra.mxu0 0.0
    %1476 = vmatprep.subr.mxu0 0.0
    %1477 = vmatpush1.msra.mxu0 0.0
    %1478 = vmatprep.subr.mxu0 0.0
    %1479 = vmatpush1.msra.mxu0 0.0
    %1480 = vmatprep.subr.mxu0 0.0
    %1481 = vmatpush1.msra.mxu0 0.0
    %1482 = vmatprep.subr.mxu0 0.0
    %1483 = vmatpush1.msra.mxu0 0.0
    %1484 = vmatprep.subr.mxu0 0.0
    %1485 = vmatpush1.msra.mxu0 0.0
    %1486 = vmatprep.subr.mxu0 0.0
    %1487 = vmatpush1.msra.mxu0 0.0
    %1488 = vmatprep.subr.mxu0 0.0
    %1489 = vmatpush1.msra.mxu0 0.0
    %1490 = vmatprep.subr.mxu0 0.0
    %1491 = vmatpush1.msra.mxu0 0.0
    %1492 = vmatprep.subr.mxu0 0.0
    %1493 = vmatpush1.msra.mxu0 0.0
    %1494 = vmatprep.subr.mxu0 0.0
    %1495 = vmatpush1.msra.mxu0 0.0
    %1496 = vmatprep.mubr.f32.mxu0 0.0
    %1497 = vmatmul.mubr.f32.gmra.mrb[0].mxu0 %v1427
    %v1498 = vpop.f32.mrb[0].mxu0
    %v1499 = vadd.f32 %v1419, %v1498
    %v1500 = vpop.f32.mrb[0].mxu0
    %v1501 = vadd.f32 %v1423, %v1500
    %1502 = vmatprep.mubr.f32.mxu0 0.0
    %1503 = vmatmul.mubr.f32.gmra.mrb[0].mxu0 %v1430
    %v1504 = vpop.f32.mrb[0].mxu0
    %v1505 = vadd.f32 %v1419, %v1504
    %v1506 = vpop.f32.mrb[0].mxu0
    %v1507 = vadd.f32 %v1423, %v1506
    %1508 = vdwg.mxu0
    %v1510 = vrot.slane %v1507, 2
    %1512 = vmatprep.subr.mxu0 %v1383
    %1513 = vmatpush1.msra.mxu0 %v1382
    %1514 = vmatprep.subr.mxu0 %v1385
    %1515 = vmatpush1.msra.mxu0 %v1384
    %1516 = vmatprep.subr.mxu0 %v1387
    %1517 = vmatpush1.msra.mxu0 %v1386
    %1518 = vmatprep.subr.mxu0 %v1389
    %1519 = vmatpush1.msra.mxu0 %v1388
    %1520 = vmatprep.subr.mxu0 %v1391
    %1521 = vmatpush1.msra.mxu0 %v1390
    %1522 = vmatprep.subr.mxu0 %v1393
    %1523 = vmatpush1.msra.mxu0 %v1392
    %1524 = vmatprep.subr.mxu0 %v1395
    %1525 = vmatpush1.msra.mxu0 %v1394
    %1526 = vmatprep.subr.mxu0 %v1397
    %1527 = vmatpush1.msra.mxu0 %v1396
    %1528 = vmatprep.subr.mxu0 0.0
    %1529 = vmatpush1.msra.mxu0 0.0
    %1530 = vmatprep.subr.mxu0 0.0
    %1531 = vmatpush1.msra.mxu0 0.0
    %1532 = vmatprep.subr.mxu0 0.0
    %1533 = vmatpush1.msra.mxu0 0.0
    %1534 = vmatprep.subr.mxu0 0.0
    %1535 = vmatpush1.msra.mxu0 0.0
    %1536 = vmatprep.subr.mxu0 0.0
    %1537 = vmatpush1.msra.mxu0 0.0
    %1538 = vmatprep.subr.mxu0 0.0
    %1539 = vmatpush1.msra.mxu0 0.0
    %1540 = vmatprep.subr.mxu0 0.0
    %1541 = vmatpush1.msra.mxu0 0.0
    %1542 = vmatprep.subr.mxu0 0.0
    %1543 = vmatpush1.msra.mxu0 0.0
    %1544 = vmatprep.subr.mxu0 0.0
    %1545 = vmatpush1.msra.mxu0 0.0
    %1546 = vmatprep.subr.mxu0 0.0
    %1547 = vmatpush1.msra.mxu0 0.0
    %1548 = vmatprep.subr.mxu0 0.0
    %1549 = vmatpush1.msra.mxu0 0.0
    %1550 = vmatprep.subr.mxu0 0.0
    %1551 = vmatpush1.msra.mxu0 0.0
    %1552 = vmatprep.subr.mxu0 0.0
    %1553 = vmatpush1.msra.mxu0 0.0
    %1554 = vmatprep.subr.mxu0 0.0
    %1555 = vmatpush1.msra.mxu0 0.0
    %1556 = vmatprep.subr.mxu0 0.0
    %1557 = vmatpush1.msra.mxu0 0.0
    %1558 = vmatprep.subr.mxu0 0.0
    %1559 = vmatpush1.msra.mxu0 0.0
    %1560 = vmatprep.subr.mxu0 0.0
    %1561 = vmatpush1.msra.mxu0 0.0
    %1562 = vmatprep.subr.mxu0 0.0
    %1563 = vmatpush1.msra.mxu0 0.0
    %1564 = vmatprep.subr.mxu0 0.0
    %1565 = vmatpush1.msra.mxu0 0.0
    %1566 = vmatprep.subr.mxu0 0.0
    %1567 = vmatpush1.msra.mxu0 0.0
    %1568 = vmatprep.subr.mxu0 0.0
    %1569 = vmatpush1.msra.mxu0 0.0
    %1570 = vmatprep.subr.mxu0 0.0
    %1571 = vmatpush1.msra.mxu0 0.0
    %1572 = vmatprep.subr.mxu0 0.0
    %1573 = vmatpush1.msra.mxu0 0.0
    %1574 = vmatprep.subr.mxu0 0.0
    %1575 = vmatpush1.msra.mxu0 0.0
    %1576 = vmatprep.mubr.f32.mxu0 0.0
    %1577 = vmatmul.mubr.f32.gmra.mrb[0].mxu0 %v511
    %v1578 = vpop.f32.mrb[0].mxu0
    %v1579 = vadd.f32 0.0, %v1578
    %v1580 = vpop.f32.mrb[0].mxu0
    %v1581 = vadd.f32 0.0, %v1580
    %1582 = vdwg.mxu0
    %v1583 = vadd.f32 %v1499, %v1579
    %v1584 = vadd.f32 %v1510, %v1581
    %v1585 = vsub.f32 0.0, %v1583
    %v1586 = vsub.f32 0.0, %v1584
    %v1587 = vmul.f32 %v1585, 1.442695
    %v1588 = vpow.pop %v1587
    %v1589 = vmul.f32 %v1586, 1.442695
    %v1590 = vpow.pop %v1589
    %v1591 = vadd.f32 %v1588, 1.0
    %v1592 = vadd.f32 %v1590, 1.0
    %v1593 = vrcp.pop %v1591
    %v1594 = vrcp.pop %v1592
    %v1595 = vtanh.pop %v1583
    %v1596 = vtanh.pop %v1584
    %v1597 = vmul.f32 %v1593, 0.0
    %1599 = vrot.lane.b32.xlu0 %v1595, 64
    %v1600 = vpop.permute.xlu0 %1599
    %v1602 = vmul.f32 %v1593, %v1600
    %1604 = vrot.lane.b32.xlu0 %v1602, 32
    %v1605 = vpop.permute.xlu0 %1604
    %v1607 = vadd.f32 %v1597, %v1605
    %v1608 = vtanh.pop %v1607
    %1610 = vrot.lane.b32.xlu0 %v1608, 64
    %v1611 = vpop.permute.xlu0 %1610
    %v1613 = vmul.f32 %v1593, %v1611
    %v1614 = vmul.f32 %v1594, 0.0
    %1616 = vrot.lane.b32.xlu0 %v1596, 64
    %v1617 = vpop.permute.xlu0 %1616
    %v1619 = vmul.f32 %v1594, %v1617
    %1621 = vrot.lane.b32.xlu0 %v1619, 32
    %v1622 = vpop.permute.xlu0 %1621
    %v1624 = vadd.f32 %v1614, %v1622
    %v1625 = vtanh.pop %v1624
    %1627 = vrot.lane.b32.xlu0 %v1625, 64
    %v1628 = vpop.permute.xlu0 %1627
    %v1630 = vmul.f32 %v1594, %v1628
    %1632 = vrot.lane.b32.xlu0 %v1613, 32
    %v1633 = vpop.permute.xlu0 %1632
    %1635 = vst.msk [vmem:[#allocation3] sm:$0x3] %vm636, %v1633
    %1637 = vrot.lane.b32.xlu0 %v1630, 64
    %v1638 = vpop.permute.xlu0 %1637
    %1640 = vst.msk [vmem:[#allocation3 + $0xa] sm:$0x3] %vm642, %v1638
    %v1641 = vrot.slane %v1507, 6
    %v1643 = vsel %vm646, %v1633, %v1638
    %v1645 = vsel %vm423, %v1643, 0
    %1647 = vmatprep.subr.mxu0 %v1383
    %1648 = vmatpush1.msra.mxu0 %v1382
    %1649 = vmatprep.subr.mxu0 %v1385
    %1650 = vmatpush1.msra.mxu0 %v1384
    %1651 = vmatprep.subr.mxu0 %v1387
    %1652 = vmatpush1.msra.mxu0 %v1386
    %1653 = vmatprep.subr.mxu0 %v1389
    %1654 = vmatpush1.msra.mxu0 %v1388
    %1655 = vmatprep.subr.mxu0 %v1391
    %1656 = vmatpush1.msra.mxu0 %v1390
    %1657 = vmatprep.subr.mxu0 %v1393
    %1658 = vmatpush1.msra.mxu0 %v1392
    %1659 = vmatprep.subr.mxu0 %v1395
    %1660 = vmatpush1.msra.mxu0 %v1394
    %1661 = vmatprep.subr.mxu0 %v1397
    %1662 = vmatpush1.msra.mxu0 %v1396
    %1663 = vmatprep.subr.mxu0 0.0
    %1664 = vmatpush1.msra.mxu0 0.0
    %1665 = vmatprep.subr.mxu0 0.0
    %1666 = vmatpush1.msra.mxu0 0.0
    %1667 = vmatprep.subr.mxu0 0.0
    %1668 = vmatpush1.msra.mxu0 0.0
    %1669 = vmatprep.subr.mxu0 0.0
    %1670 = vmatpush1.msra.mxu0 0.0
    %1671 = vmatprep.subr.mxu0 0.0
    %1672 = vmatpush1.msra.mxu0 0.0
    %1673 = vmatprep.subr.mxu0 0.0
    %1674 = vmatpush1.msra.mxu0 0.0
    %1675 = vmatprep.subr.mxu0 0.0
    %1676 = vmatpush1.msra.mxu0 0.0
    %1677 = vmatprep.subr.mxu0 0.0
    %1678 = vmatpush1.msra.mxu0 0.0
    %1679 = vmatprep.subr.mxu0 0.0
    %1680 = vmatpush1.msra.mxu0 0.0
    %1681 = vmatprep.subr.mxu0 0.0
    %1682 = vmatpush1.msra.mxu0 0.0
    %1683 = vmatprep.subr.mxu0 0.0
    %1684 = vmatpush1.msra.mxu0 0.0
    %1685 = vmatprep.subr.mxu0 0.0
    %1686 = vmatpush1.msra.mxu0 0.0
    %1687 = vmatprep.subr.mxu0 0.0
    %1688 = vmatpush1.msra.mxu0 0.0
    %1689 = vmatprep.subr.mxu0 0.0
    %1690 = vmatpush1.msra.mxu0 0.0
    %1691 = vmatprep.subr.mxu0 0.0
    %1692 = vmatpush1.msra.mxu0 0.0
    %1693 = vmatprep.subr.mxu0 0.0
    %1694 = vmatpush1.msra.mxu0 0.0
    %1695 = vmatprep.subr.mxu0 0.0
    %1696 = vmatpush1.msra.mxu0 0.0
    %1697 = vmatprep.subr.mxu0 0.0
    %1698 = vmatpush1.msra.mxu0 0.0
    %1699 = vmatprep.subr.mxu0 0.0
    %1700 = vmatpush1.msra.mxu0 0.0
    %1701 = vmatprep.subr.mxu0 0.0
    %1702 = vmatpush1.msra.mxu0 0.0
    %1703 = vmatprep.subr.mxu0 0.0
    %1704 = vmatpush1.msra.mxu0 0.0
    %1705 = vmatprep.subr.mxu0 0.0
    %1706 = vmatpush1.msra.mxu0 0.0
    %1707 = vmatprep.subr.mxu0 0.0
    %1708 = vmatpush1.msra.mxu0 0.0
    %1709 = vmatprep.subr.mxu0 0.0
    %1710 = vmatpush1.msra.mxu0 0.0
    %1711 = vmatprep.mubr.f32.mxu0 0.0
    %1712 = vmatmul.mubr.f32.gmra.mrb[0].mxu0 %v1645
    %v1713 = vpop.f32.mrb[0].mxu0
    %v1714 = vadd.f32 0.0, %v1713
    %v1715 = vpop.f32.mrb[0].mxu0
    %v1716 = vadd.f32 0.0, %v1715
    %1717 = vdwg.mxu0
    %v1720 = vrot.slane %v1714, 6
    %v1721 = vrot.slane %v1716, 6
    %v1724 = vadd.f32 %v1499, %v1720
    %v1725 = vadd.f32 %v1641, %v1721
    %v1726 = vsub.f32 0.0, %v1724
    %v1727 = vsub.f32 0.0, %v1725
    %v1728 = vmul.f32 %v1726, 1.442695
    %v1729 = vpow.pop %v1728
    %v1730 = vmul.f32 %v1727, 1.442695
    %v1731 = vpow.pop %v1730
    %v1732 = vadd.f32 %v1729, 1.0
    %v1733 = vadd.f32 %v1731, 1.0
    %v1734 = vrcp.pop %v1732
    %v1735 = vrcp.pop %v1733
    %v1736 = vtanh.pop %v1724
    %v1737 = vtanh.pop %v1725
    %v1739 = vrot.slane %v1607, 6
    %v1741 = vmul.f32 %v1734, %v1739
    %1743 = vrot.lane.b32.xlu0 %v1736, 64
    %v1744 = vpop.permute.xlu0 %1743
    %v1746 = vmul.f32 %v1734, %v1744
    %1748 = vrot.lane.b32.xlu0 %v1746, 32
    %v1749 = vpop.permute.xlu0 %1748
    %v1751 = vadd.f32 %v1741, %v1749
    %v1752 = vtanh.pop %v1751
    %1754 = vrot.lane.b32.xlu0 %v1752, 64
    %v1755 = vpop.permute.xlu0 %1754
    %v1757 = vmul.f32 %v1734, %v1755
    %v1759 = vrot.slane %v1624, 6
    %v1761 = vmul.f32 %v1735, %v1759
    %1763 = vrot.lane.b32.xlu0 %v1737, 64
    %v1764 = vpop.permute.xlu0 %1763
    %v1766 = vmul.f32 %v1735, %v1764
    %1768 = vrot.lane.b32.xlu0 %v1766, 32
    %v1769 = vpop.permute.xlu0 %1768
    %v1771 = vadd.f32 %v1761, %v1769
    %v1772 = vtanh.pop %v1771
    %1774 = vrot.lane.b32.xlu0 %v1772, 64
    %v1775 = vpop.permute.xlu0 %1774
    %v1777 = vmul.f32 %v1735, %v1775
    %1779 = vrot.lane.b32.xlu0 %v1757, 32
    %v1780 = vpop.permute.xlu0 %1779
    %1782 = vst.msk [vmem:[#allocation3] sm:$0xc] %vm786, %v1780
    %1784 = vrot.lane.b32.xlu0 %v1777, 64
    %v1785 = vpop.permute.xlu0 %1784
    %1787 = vst.msk [vmem:[#allocation3 + $0x6] sm:$0xc] %vm792, %v1785
    %v1789 = vrot.slane %v1501, 2
    %v1791 = vsel %vm646, %v1780, %v1785
    %v1793 = vrot.slane %v1791, 2
    %v1794 = vsel %vm423, %v1793, 0
    %1796 = vmatprep.subr.mxu0 %v1383
    %1797 = vmatpush1.msra.mxu0 %v1382
    %1798 = vmatprep.subr.mxu0 %v1385
    %1799 = vmatpush1.msra.mxu0 %v1384
    %1800 = vmatprep.subr.mxu0 %v1387
    %1801 = vmatpush1.msra.mxu0 %v1386
    %1802 = vmatprep.subr.mxu0 %v1389
    %1803 = vmatpush1.msra.mxu0 %v1388
    %1804 = vmatprep.subr.mxu0 %v1391
    %1805 = vmatpush1.msra.mxu0 %v1390
    %1806 = vmatprep.subr.mxu0 %v1393
    %1807 = vmatpush1.msra.mxu0 %v1392
    %1808 = vmatprep.subr.mxu0 %v1395
    %1809 = vmatpush1.msra.mxu0 %v1394
    %1810 = vmatprep.subr.mxu0 %v1397
    %1811 = vmatpush1.msra.mxu0 %v1396
    %1812 = vmatprep.subr.mxu0 0.0
    %1813 = vmatpush1.msra.mxu0 0.0
    %1814 = vmatprep.subr.mxu0 0.0
    %1815 = vmatpush1.msra.mxu0 0.0
    %1816 = vmatprep.subr.mxu0 0.0
    %1817 = vmatpush1.msra.mxu0 0.0
    %1818 = vmatprep.subr.mxu0 0.0
    %1819 = vmatpush1.msra.mxu0 0.0
    %1820 = vmatprep.subr.mxu0 0.0
    %1821 = vmatpush1.msra.mxu0 0.0
    %1822 = vmatprep.subr.mxu0 0.0
    %1823 = vmatpush1.msra.mxu0 0.0
    %1824 = vmatprep.subr.mxu0 0.0
    %1825 = vmatpush1.msra.mxu0 0.0
    %1826 = vmatprep.subr.mxu0 0.0
    %1827 = vmatpush1.msra.mxu0 0.0
    %1828 = vmatprep.subr.mxu0 0.0
    %1829 = vmatpush1.msra.mxu0 0.0
    %1830 = vmatprep.subr.mxu0 0.0
    %1831 = vmatpush1.msra.mxu0 0.0
    %1832 = vmatprep.subr.mxu0 0.0
    %1833 = vmatpush1.msra.mxu0 0.0
    %1834 = vmatprep.subr.mxu0 0.0
    %1835 = vmatpush1.msra.mxu0 0.0
    %1836 = vmatprep.subr.mxu0 0.0
    %1837 = vmatpush1.msra.mxu0 0.0
    %1838 = vmatprep.subr.mxu0 0.0
    %1839 = vmatpush1.msra.mxu0 0.0
    %1840 = vmatprep.subr.mxu0 0.0
    %1841 = vmatpush1.msra.mxu0 0.0
    %1842 = vmatprep.subr.mxu0 0.0
    %1843 = vmatpush1.msra.mxu0 0.0
    %1844 = vmatprep.subr.mxu0 0.0
    %1845 = vmatpush1.msra.mxu0 0.0
    %1846 = vmatprep.subr.mxu0 0.0
    %1847 = vmatpush1.msra.mxu0 0.0
    %1848 = vmatprep.subr.mxu0 0.0
    %1849 = vmatpush1.msra.mxu0 0.0
    %1850 = vmatprep.subr.mxu0 0.0
    %1851 = vmatpush1.msra.mxu0 0.0
    %1852 = vmatprep.subr.mxu0 0.0
    %1853 = vmatpush1.msra.mxu0 0.0
    %1854 = vmatprep.subr.mxu0 0.0
    %1855 = vmatpush1.msra.mxu0 0.0
    %1856 = vmatprep.subr.mxu0 0.0
    %1857 = vmatpush1.msra.mxu0 0.0
    %1858 = vmatprep.subr.mxu0 0.0
    %1859 = vmatpush1.msra.mxu0 0.0
    %1860 = vmatprep.mubr.f32.mxu0 0.0
    %1861 = vmatmul.mubr.f32.gmra.mrb[0].mxu0 %v1794
    %v1862 = vpop.f32.mrb[0].mxu0
    %v1863 = vadd.f32 0.0, %v1862
    %v1864 = vpop.f32.mrb[0].mxu0
    %v1865 = vadd.f32 0.0, %v1864
    %1866 = vdwg.mxu0
    %v1869 = vrot.slane %v1863, 4
    %v1870 = vrot.slane %v1865, 4
    %v1873 = vadd.f32 %v1499, %v1869
    %v1874 = vadd.f32 %v1789, %v1870
    %v1875 = vsub.f32 0.0, %v1873
    %v1876 = vsub.f32 0.0, %v1874
    %v1877 = vmul.f32 %v1875, 1.442695
    %v1878 = vpow.pop %v1877
    %v1879 = vmul.f32 %v1876, 1.442695
    %v1880 = vpow.pop %v1879
    %v1881 = vadd.f32 %v1878, 1.0
    %v1882 = vadd.f32 %v1880, 1.0
    %v1883 = vrcp.pop %v1881
    %v1884 = vrcp.pop %v1882
    %v1885 = vtanh.pop %v1873
    %v1886 = vtanh.pop %v1874
    %v1888 = vrot.slane %v1751, 6
    %v1890 = vmul.f32 %v1883, %v1888
    %1892 = vrot.lane.b32.xlu0 %v1885, 64
    %v1893 = vpop.permute.xlu0 %1892
    %v1895 = vmul.f32 %v1883, %v1893
    %1897 = vrot.lane.b32.xlu0 %v1895, 32
    %v1898 = vpop.permute.xlu0 %1897
    %v1900 = vadd.f32 %v1890, %v1898
    %v1901 = vtanh.pop %v1900
    %1903 = vrot.lane.b32.xlu0 %v1901, 64
    %v1904 = vpop.permute.xlu0 %1903
    %v1906 = vmul.f32 %v1883, %v1904
    %v1908 = vrot.slane %v1771, 6
    %v1910 = vmul.f32 %v1884, %v1908
    %1912 = vrot.lane.b32.xlu0 %v1886, 64
    %v1913 = vpop.permute.xlu0 %1912
    %v1915 = vmul.f32 %v1884, %v1913
    %1917 = vrot.lane.b32.xlu0 %v1915, 32
    %v1918 = vpop.permute.xlu0 %1917
    %v1920 = vadd.f32 %v1910, %v1918
    %v1921 = vtanh.pop %v1920
    %1923 = vrot.lane.b32.xlu0 %v1921, 64
    %v1924 = vpop.permute.xlu0 %1923
    %v1926 = vmul.f32 %v1884, %v1924
    %1928 = vrot.lane.b32.xlu0 %v1906, 32
    %v1929 = vpop.permute.xlu0 %1928
    %1931 = vst.msk [vmem:[#allocation3] sm:$0x30] %vm937, %v1929
    %1933 = vrot.lane.b32.xlu0 %v1926, 64
    %v1934 = vpop.permute.xlu0 %1933
    %1936 = vst.msk [vmem:[#allocation3 + $0x2] sm:$0x30] %vm943, %v1934
    %v1937 = vrot.slane %v1501, 6
    %v1939 = vsel %vm646, %v1929, %v1934
    %v1941 = vrot.slane %v1939, 4
    %v1942 = vsel %vm423, %v1941, 0
    %1944 = vmatprep.subr.mxu0 %v1383
    %1945 = vmatpush1.msra.mxu0 %v1382
    %1946 = vmatprep.subr.mxu0 %v1385
    %1947 = vmatpush1.msra.mxu0 %v1384
    %1948 = vmatprep.subr.mxu0 %v1387
    %1949 = vmatpush1.msra.mxu0 %v1386
    %1950 = vmatprep.subr.mxu0 %v1389
    %1951 = vmatpush1.msra.mxu0 %v1388
    %1952 = vmatprep.subr.mxu0 %v1391
    %1953 = vmatpush1.msra.mxu0 %v1390
    %1954 = vmatprep.subr.mxu0 %v1393
    %1955 = vmatpush1.msra.mxu0 %v1392
    %1956 = vmatprep.subr.mxu0 %v1395
    %1957 = vmatpush1.msra.mxu0 %v1394
    %1958 = vmatprep.subr.mxu0 %v1397
    %1959 = vmatpush1.msra.mxu0 %v1396
    %1960 = vmatprep.subr.mxu0 0.0
    %1961 = vmatpush1.msra.mxu0 0.0
    %1962 = vmatprep.subr.mxu0 0.0
    %1963 = vmatpush1.msra.mxu0 0.0
    %1964 = vmatprep.subr.mxu0 0.0
    %1965 = vmatpush1.msra.mxu0 0.0
    %1966 = vmatprep.subr.mxu0 0.0
    %1967 = vmatpush1.msra.mxu0 0.0
    %1968 = vmatprep.subr.mxu0 0.0
    %1969 = vmatpush1.msra.mxu0 0.0
    %1970 = vmatprep.subr.mxu0 0.0
    %1971 = vmatpush1.msra.mxu0 0.0
    %1972 = vmatprep.subr.mxu0 0.0
    %1973 = vmatpush1.msra.mxu0 0.0
    %1974 = vmatprep.subr.mxu0 0.0
    %1975 = vmatpush1.msra.mxu0 0.0
    %1976 = vmatprep.subr.mxu0 0.0
    %1977 = vmatpush1.msra.mxu0 0.0
    %1978 = vmatprep.subr.mxu0 0.0
    %1979 = vmatpush1.msra.mxu0 0.0
    %1980 = vmatprep.subr.mxu0 0.0
    %1981 = vmatpush1.msra.mxu0 0.0
    %1982 = vmatprep.subr.mxu0 0.0
    %1983 = vmatpush1.msra.mxu0 0.0
    %1984 = vmatprep.subr.mxu0 0.0
    %1985 = vmatpush1.msra.mxu0 0.0
    %1986 = vmatprep.subr.mxu0 0.0
    %1987 = vmatpush1.msra.mxu0 0.0
    %1988 = vmatprep.subr.mxu0 0.0
    %1989 = vmatpush1.msra.mxu0 0.0
    %1990 = vmatprep.subr.mxu0 0.0
    %1991 = vmatpush1.msra.mxu0 0.0
    %1992 = vmatprep.subr.mxu0 0.0
    %1993 = vmatpush1.msra.mxu0 0.0
    %1994 = vmatprep.subr.mxu0 0.0
    %1995 = vmatpush1.msra.mxu0 0.0
    %1996 = vmatprep.subr.mxu0 0.0
    %1997 = vmatpush1.msra.mxu0 0.0
    %1998 = vmatprep.subr.mxu0 0.0
    %1999 = vmatpush1.msra.mxu0 0.0
    %2000 = vmatprep.subr.mxu0 0.0
    %2001 = vmatpush1.msra.mxu0 0.0
    %2002 = vmatprep.subr.mxu0 0.0
    %2003 = vmatpush1.msra.mxu0 0.0
    %2004 = vmatprep.subr.mxu0 0.0
    %2005 = vmatpush1.msra.mxu0 0.0
    %2006 = vmatprep.subr.mxu0 0.0
    %2007 = vmatpush1.msra.mxu0 0.0
    %2008 = vmatprep.mubr.f32.mxu0 0.0
    %2009 = vmatmul.mubr.f32.gmra.mrb[0].mxu0 %v1942
    %v2010 = vpop.f32.mrb[0].mxu0
    %v2011 = vadd.f32 0.0, %v2010
    %v2012 = vpop.f32.mrb[0].mxu0
    %v2013 = vadd.f32 0.0, %v2012
    %2014 = vdwg.mxu0
    %v2017 = vrot.slane %v2011, 2
    %v2018 = vrot.slane %v2013, 2
    %v2021 = vadd.f32 %v1499, %v2017
    %v2022 = vadd.f32 %v1937, %v2018
    %v2023 = vsub.f32 0.0, %v2021
    %v2024 = vsub.f32 0.0, %v2022
    %v2025 = vmul.f32 %v2023, 1.442695
    %v2026 = vpow.pop %v2025
    %v2027 = vmul.f32 %v2024, 1.442695
    %v2028 = vpow.pop %v2027
    %v2029 = vadd.f32 %v2026, 1.0
    %v2030 = vadd.f32 %v2028, 1.0
    %v2031 = vrcp.pop %v2029
    %v2032 = vrcp.pop %v2030
    %v2033 = vtanh.pop %v2021
    %v2034 = vtanh.pop %v2022
    %v2036 = vrot.slane %v1900, 6
    %v2038 = vmul.f32 %v2031, %v2036
    %2040 = vrot.lane.b32.xlu0 %v2033, 64
    %v2041 = vpop.permute.xlu0 %2040
    %v2043 = vmul.f32 %v2031, %v2041
    %2045 = vrot.lane.b32.xlu0 %v2043, 32
    %v2046 = vpop.permute.xlu0 %2045
    %v2048 = vadd.f32 %v2038, %v2046
    %v2049 = vtanh.pop %v2048
    %2051 = vrot.lane.b32.xlu0 %v2049, 64
    %v2052 = vpop.permute.xlu0 %2051
    %v2054 = vmul.f32 %v2031, %v2052
    %v2056 = vrot.slane %v1920, 6
    %v2058 = vmul.f32 %v2032, %v2056
    %2060 = vrot.lane.b32.xlu0 %v2034, 64
    %v2061 = vpop.permute.xlu0 %2060
    %v2063 = vmul.f32 %v2032, %v2061
    %2065 = vrot.lane.b32.xlu0 %v2063, 32
    %v2066 = vpop.permute.xlu0 %2065
    %v2068 = vadd.f32 %v2058, %v2066
    %v2069 = vtanh.pop %v2068
    %2071 = vrot.lane.b32.xlu0 %v2069, 64
    %v2072 = vpop.permute.xlu0 %2071
    %v2074 = vmul.f32 %v2032, %v2072
    %2076 = vrot.lane.b32.xlu0 %v2054, 32
    %v2077 = vpop.permute.xlu0 %2076
    %2079 = vst.msk [vmem:[#allocation3] sm:$0xc0] %vm1087, %v2077
    %2081 = vrot.lane.b32.xlu0 %v2074, 64
    %v2082 = vpop.permute.xlu0 %2081
    %2084 = vst.msk [vmem:[#allocation3 - $0x2] sm:$0xc0] %vm1093, %v2082
    %v2085 = vsel %vm646, %v2077, %v2082
    %v2087 = vrot.slane %v2085, 6
    %v2088 = vsel %vm423, %v2087, 0
    %2090 = vmatprep.subr.mxu0 %v1383
    %2091 = vmatpush1.msra.mxu0 %v1382
    %2092 = vmatprep.subr.mxu0 %v1385
    %2093 = vmatpush1.msra.mxu0 %v1384
    %2094 = vmatprep.subr.mxu0 %v1387
    %2095 = vmatpush1.msra.mxu0 %v1386
    %2096 = vmatprep.subr.mxu0 %v1389
    %2097 = vmatpush1.msra.mxu0 %v1388
    %2098 = vmatprep.subr.mxu0 %v1391
    %2099 = vmatpush1.msra.mxu0 %v1390
    %2100 = vmatprep.subr.mxu0 %v1393
    %2101 = vmatpush1.msra.mxu0 %v1392
    %2102 = vmatprep.subr.mxu0 %v1395
    %2103 = vmatpush1.msra.mxu0 %v1394
    %2104 = vmatprep.subr.mxu0 %v1397
    %2105 = vmatpush1.msra.mxu0 %v1396
    %2106 = vmatprep.subr.mxu0 0.0
    %2107 = vmatpush1.msra.mxu0 0.0
    %2108 = vmatprep.subr.mxu0 0.0
    %2109 = vmatpush1.msra.mxu0 0.0
    %2110 = vmatprep.subr.mxu0 0.0
    %2111 = vmatpush1.msra.mxu0 0.0
    %2112 = vmatprep.subr.mxu0 0.0
    %2113 = vmatpush1.msra.mxu0 0.0
    %2114 = vmatprep.subr.mxu0 0.0
    %2115 = vmatpush1.msra.mxu0 0.0
    %2116 = vmatprep.subr.mxu0 0.0
    %2117 = vmatpush1.msra.mxu0 0.0
    %2118 = vmatprep.subr.mxu0 0.0
    %2119 = vmatpush1.msra.mxu0 0.0
    %2120 = vmatprep.subr.mxu0 0.0
    %2121 = vmatpush1.msra.mxu0 0.0
    %2122 = vmatprep.subr.mxu0 0.0
    %2123 = vmatpush1.msra.mxu0 0.0
    %2124 = vmatprep.subr.mxu0 0.0
    %2125 = vmatpush1.msra.mxu0 0.0
    %2126 = vmatprep.subr.mxu0 0.0
    %2127 = vmatpush1.msra.mxu0 0.0
    %2128 = vmatprep.subr.mxu0 0.0
    %2129 = vmatpush1.msra.mxu0 0.0
    %2130 = vmatprep.subr.mxu0 0.0
    %2131 = vmatpush1.msra.mxu0 0.0
    %2132 = vmatprep.subr.mxu0 0.0
    %2133 = vmatpush1.msra.mxu0 0.0
    %2134 = vmatprep.subr.mxu0 0.0
    %2135 = vmatpush1.msra.mxu0 0.0
    %2136 = vmatprep.subr.mxu0 0.0
    %2137 = vmatpush1.msra.mxu0 0.0
    %2138 = vmatprep.subr.mxu0 0.0
    %2139 = vmatpush1.msra.mxu0 0.0
    %2140 = vmatprep.subr.mxu0 0.0
    %2141 = vmatpush1.msra.mxu0 0.0
    %2142 = vmatprep.subr.mxu0 0.0
    %2143 = vmatpush1.msra.mxu0 0.0
    %2144 = vmatprep.subr.mxu0 0.0
    %2145 = vmatpush1.msra.mxu0 0.0
    %2146 = vmatprep.subr.mxu0 0.0
    %2147 = vmatpush1.msra.mxu0 0.0
    %2148 = vmatprep.subr.mxu0 0.0
    %2149 = vmatpush1.msra.mxu0 0.0
    %2150 = vmatprep.subr.mxu0 0.0
    %2151 = vmatpush1.msra.mxu0 0.0
    %2152 = vmatprep.subr.mxu0 0.0
    %2153 = vmatpush1.msra.mxu0 0.0
    %2154 = vmatprep.mubr.f32.mxu0 0.0
    %2155 = vmatmul.mubr.f32.gmra.mrb[0].mxu0 %v2088
    %v2156 = vpop.f32.mrb[0].mxu0
    %v2157 = vadd.f32 0.0, %v2156
    %v2158 = vpop.f32.mrb[0].mxu0
    %v2159 = vadd.f32 0.0, %v2158
    %2160 = vdwg.mxu0
    %v2161 = vadd.f32 %v1505, %v2157
    %v2162 = vadd.f32 %v1789, %v2159
    %v2163 = vsub.f32 0.0, %v2161
    %v2164 = vsub.f32 0.0, %v2162
    %v2165 = vmul.f32 %v2163, 1.442695
    %v2166 = vpow.pop %v2165
    %v2167 = vmul.f32 %v2164, 1.442695
    %v2168 = vpow.pop %v2167
    %v2169 = vadd.f32 %v2166, 1.0
    %v2170 = vadd.f32 %v2168, 1.0
    %v2171 = vrcp.pop %v2169
    %v2172 = vrcp.pop %v2170
    %v2173 = vtanh.pop %v2161
    %v2174 = vtanh.pop %v2162
    %v2176 = vrot.slane %v2048, 6
    %v2178 = vmul.f32 %v2171, %v2176
    %2180 = vrot.lane.b32.xlu0 %v2173, 64
    %v2181 = vpop.permute.xlu0 %2180
    %v2183 = vmul.f32 %v2171, %v2181
    %2185 = vrot.lane.b32.xlu0 %v2183, 32
    %v2186 = vpop.permute.xlu0 %2185
    %v2188 = vadd.f32 %v2178, %v2186
    %v2189 = vtanh.pop %v2188
    %2191 = vrot.lane.b32.xlu0 %v2189, 64
    %v2192 = vpop.permute.xlu0 %2191
    %v2194 = vmul.f32 %v2171, %v2192
    %v2196 = vrot.slane %v2068, 6
    %v2198 = vmul.f32 %v2172, %v2196
    %2200 = vrot.lane.b32.xlu0 %v2174, 64
    %v2201 = vpop.permute.xlu0 %2200
    %v2203 = vmul.f32 %v2172, %v2201
    %2205 = vrot.lane.b32.xlu0 %v2203, 32
    %v2206 = vpop.permute.xlu0 %2205
    %v2208 = vadd.f32 %v2198, %v2206
    %v2209 = vtanh.pop %v2208
    %2211 = vrot.lane.b32.xlu0 %v2209, 64
    %v2212 = vpop.permute.xlu0 %2211
    %v2214 = vmul.f32 %v2172, %v2212
    %2216 = vrot.lane.b32.xlu0 %v2194, 32
    %v2217 = vpop.permute.xlu0 %2216
    %2219 = vst.msk [vmem:[#allocation3 + $0x8] sm:$0x3] %vm636, %v2217
    %2221 = vrot.lane.b32.xlu0 %v2214, 64
    %v2222 = vpop.permute.xlu0 %2221
    %2224 = vst.msk [vmem:[#allocation3 + $0x2] sm:$0x3] %vm642, %v2222
    %v2225 = vsel %vm646, %v2217, %v2222
    %v2227 = vsel %vm423, %v2225, 0
    %2229 = vmatprep.subr.mxu0 %v1383
    %2230 = vmatpush1.msra.mxu0 %v1382
    %2231 = vmatprep.subr.mxu0 %v1385
    %2232 = vmatpush1.msra.mxu0 %v1384
    %2233 = vmatprep.subr.mxu0 %v1387
    %2234 = vmatpush1.msra.mxu0 %v1386
    %2235 = vmatprep.subr.mxu0 %v1389
    %2236 = vmatpush1.msra.mxu0 %v1388
    %2237 = vmatprep.subr.mxu0 %v1391
    %2238 = vmatpush1.msra.mxu0 %v1390
    %2239 = vmatprep.subr.mxu0 %v1393
    %2240 = vmatpush1.msra.mxu0 %v1392
    %2241 = vmatprep.subr.mxu0 %v1395
    %2242 = vmatpush1.msra.mxu0 %v1394
    %2243 = vmatprep.subr.mxu0 %v1397
    %2244 = vmatpush1.msra.mxu0 %v1396
    %2245 = vmatprep.subr.mxu0 0.0
    %2246 = vmatpush1.msra.mxu0 0.0
    %2247 = vmatprep.subr.mxu0 0.0
    %2248 = vmatpush1.msra.mxu0 0.0
    %2249 = vmatprep.subr.mxu0 0.0
    %2250 = vmatpush1.msra.mxu0 0.0
    %2251 = vmatprep.subr.mxu0 0.0
    %2252 = vmatpush1.msra.mxu0 0.0
    %2253 = vmatprep.subr.mxu0 0.0
    %2254 = vmatpush1.msra.mxu0 0.0
    %2255 = vmatprep.subr.mxu0 0.0
    %2256 = vmatpush1.msra.mxu0 0.0
    %2257 = vmatprep.subr.mxu0 0.0
    %2258 = vmatpush1.msra.mxu0 0.0
    %2259 = vmatprep.subr.mxu0 0.0
    %2260 = vmatpush1.msra.mxu0 0.0
    %2261 = vmatprep.subr.mxu0 0.0
    %2262 = vmatpush1.msra.mxu0 0.0
    %2263 = vmatprep.subr.mxu0 0.0
    %2264 = vmatpush1.msra.mxu0 0.0
    %2265 = vmatprep.subr.mxu0 0.0
    %2266 = vmatpush1.msra.mxu0 0.0
    %2267 = vmatprep.subr.mxu0 0.0
    %2268 = vmatpush1.msra.mxu0 0.0
    %2269 = vmatprep.subr.mxu0 0.0
    %2270 = vmatpush1.msra.mxu0 0.0
    %2271 = vmatprep.subr.mxu0 0.0
    %2272 = vmatpush1.msra.mxu0 0.0
    %2273 = vmatprep.subr.mxu0 0.0
    %2274 = vmatpush1.msra.mxu0 0.0
    %2275 = vmatprep.subr.mxu0 0.0
    %2276 = vmatpush1.msra.mxu0 0.0
    %2277 = vmatprep.subr.mxu0 0.0
    %2278 = vmatpush1.msra.mxu0 0.0
    %2279 = vmatprep.subr.mxu0 0.0
    %2280 = vmatpush1.msra.mxu0 0.0
    %2281 = vmatprep.subr.mxu0 0.0
    %2282 = vmatpush1.msra.mxu0 0.0
    %2283 = vmatprep.subr.mxu0 0.0
    %2284 = vmatpush1.msra.mxu0 0.0
    %2285 = vmatprep.subr.mxu0 0.0
    %2286 = vmatpush1.msra.mxu0 0.0
    %2287 = vmatprep.subr.mxu0 0.0
    %2288 = vmatpush1.msra.mxu0 0.0
    %2289 = vmatprep.subr.mxu0 0.0
    %2290 = vmatpush1.msra.mxu0 0.0
    %2291 = vmatprep.subr.mxu0 0.0
    %2292 = vmatpush1.msra.mxu0 0.0
    %2293 = vmatprep.mubr.f32.mxu0 0.0
    %2294 = vmatmul.mubr.f32.gmra.mrb[0].mxu0 %v2227
    %v2295 = vpop.f32.mrb[0].mxu0
    %v2296 = vadd.f32 0.0, %v2295
    %v2297 = vpop.f32.mrb[0].mxu0
    %v2298 = vadd.f32 0.0, %v2297
    %2299 = vdwg.mxu0
    %v2302 = vrot.slane %v2296, 6
    %v2303 = vrot.slane %v2298, 6
    %v2306 = vadd.f32 %v1505, %v2302
    %v2307 = vadd.f32 %v1937, %v2303
    %v2308 = vsub.f32 0.0, %v2306
    %v2309 = vsub.f32 0.0, %v2307
    %v2310 = vmul.f32 %v2308, 1.442695
    %v2311 = vpow.pop %v2310
    %v2312 = vmul.f32 %v2309, 1.442695
    %v2313 = vpow.pop %v2312
    %v2314 = vadd.f32 %v2311, 1.0
    %v2315 = vadd.f32 %v2313, 1.0
    %v2316 = vrcp.pop %v2314
    %v2317 = vrcp.pop %v2315
    %v2318 = vtanh.pop %v2306
    %v2319 = vtanh.pop %v2307
    %v2321 = vrot.slane %v2188, 6
    %v2323 = vmul.f32 %v2316, %v2321
    %2325 = vrot.lane.b32.xlu0 %v2318, 64
    %v2326 = vpop.permute.xlu0 %2325
    %v2328 = vmul.f32 %v2316, %v2326
    %2330 = vrot.lane.b32.xlu0 %v2328, 32
    %v2331 = vpop.permute.xlu0 %2330
    %v2333 = vadd.f32 %v2323, %v2331
    %v2334 = vtanh.pop %v2333
    %2336 = vrot.lane.b32.xlu0 %v2334, 64
    %v2337 = vpop.permute.xlu0 %2336
    %v2339 = vmul.f32 %v2316, %v2337
    %v2341 = vrot.slane %v2208, 6
    %v2343 = vmul.f32 %v2317, %v2341
    %2345 = vrot.lane.b32.xlu0 %v2319, 64
    %v2346 = vpop.permute.xlu0 %2345
    %v2348 = vmul.f32 %v2317, %v2346
    %2350 = vrot.lane.b32.xlu0 %v2348, 32
    %v2351 = vpop.permute.xlu0 %2350
    %v2353 = vadd.f32 %v2343, %v2351
    %v2354 = vtanh.pop %v2353
    %2356 = vrot.lane.b32.xlu0 %v2354, 64
    %v2357 = vpop.permute.xlu0 %2356
    %v2359 = vmul.f32 %v2317, %v2357
    %2361 = vrot.lane.b32.xlu0 %v2339, 32
    %v2362 = vpop.permute.xlu0 %2361
    %2364 = vst.msk [vmem:[#allocation3 + $0x8] sm:$0xc] %vm786, %v2362
    %2366 = vrot.lane.b32.xlu0 %v2359, 64
    %v2367 = vpop.permute.xlu0 %2366
    %2369 = vst.msk [vmem:[#allocation3 - $0x2] sm:$0xc] %vm792, %v2367
    %v2370 = vld [vmem:[#allocation3] sm:$0xff]
    %v2371 = vld [vmem:[#allocation3 + $0x8] sm:$0xf]
    %v2372 = vld [vmem:[%s2] sm:$0x3]
    %v2373 = vld [vmem:[%s3] sm:$0x3]
    %vm2374 = vcmask 130048
    %v2376 = vsel %vm2374, %v2373, 0
    %2378 = vmatprep.subr.mxu0 0.0
    %2379 = vmatpush1.msra.mxu0 %v280
    %2380 = vmatprep.subr.mxu0 0.0
    %2381 = vmatpush1.msra.mxu0 %v281
    %2382 = vmatprep.subr.mxu0 0.0
    %2383 = vmatpush1.msra.mxu0 0.0
    %2384 = vmatprep.subr.mxu0 0.0
    %2385 = vmatpush1.msra.mxu0 0.0
    %2386 = vmatprep.subr.mxu0 0.0
    %2387 = vmatpush1.msra.mxu0 0.0
    %2388 = vmatprep.subr.mxu0 0.0
    %2389 = vmatpush1.msra.mxu0 0.0
    %2390 = vmatprep.subr.mxu0 0.0
    %2391 = vmatpush1.msra.mxu0 0.0
    %2392 = vmatprep.subr.mxu0 0.0
    %2393 = vmatpush1.msra.mxu0 0.0
    %2394 = vmatprep.subr.mxu0 0.0
    %2395 = vmatpush1.msra.mxu0 0.0
    %2396 = vmatprep.subr.mxu0 0.0
    %2397 = vmatpush1.msra.mxu0 0.0
    %2398 = vmatprep.subr.mxu0 0.0
    %2399 = vmatpush1.msra.mxu0 0.0
    %2400 = vmatprep.subr.mxu0 0.0
    %2401 = vmatpush1.msra.mxu0 0.0
    %2402 = vmatprep.subr.mxu0 0.0
    %2403 = vmatpush1.msra.mxu0 0.0
    %2404 = vmatprep.subr.mxu0 0.0
    %2405 = vmatpush1.msra.mxu0 0.0
    %2406 = vmatprep.subr.mxu0 0.0
    %2407 = vmatpush1.msra.mxu0 0.0
    %2408 = vmatprep.subr.mxu0 0.0
    %2409 = vmatpush1.msra.mxu0 0.0
    %2410 = vmatprep.subr.mxu0 0.0
    %2411 = vmatpush1.msra.mxu0 0.0
    %2412 = vmatprep.subr.mxu0 0.0
    %2413 = vmatpush1.msra.mxu0 0.0
    %2414 = vmatprep.subr.mxu0 0.0
    %2415 = vmatpush1.msra.mxu0 0.0
    %2416 = vmatprep.subr.mxu0 0.0
    %2417 = vmatpush1.msra.mxu0 0.0
    %2418 = vmatprep.subr.mxu0 0.0
    %2419 = vmatpush1.msra.mxu0 0.0
    %2420 = vmatprep.subr.mxu0 0.0
    %2421 = vmatpush1.msra.mxu0 0.0
    %2422 = vmatprep.subr.mxu0 0.0
    %2423 = vmatpush1.msra.mxu0 0.0
    %2424 = vmatprep.subr.mxu0 0.0
    %2425 = vmatpush1.msra.mxu0 0.0
    %2426 = vmatprep.subr.mxu0 0.0
    %2427 = vmatpush1.msra.mxu0 0.0
    %2428 = vmatprep.subr.mxu0 0.0
    %2429 = vmatpush1.msra.mxu0 0.0
    %2430 = vmatprep.subr.mxu0 0.0
    %2431 = vmatpush1.msra.mxu0 0.0
    %2432 = vmatprep.subr.mxu0 0.0
    %2433 = vmatpush1.msra.mxu0 0.0
    %2434 = vmatprep.subr.mxu0 0.0
    %2435 = vmatpush1.msra.mxu0 0.0
    %2436 = vmatprep.subr.mxu0 0.0
    %2437 = vmatpush1.msra.mxu0 0.0
    %2438 = vmatprep.subr.mxu0 0.0
    %2439 = vmatpush1.msra.mxu0 0.0
    %2440 = vmatprep.subr.mxu0 0.0
    %2441 = vmatpush1.msra.mxu0 0.0
    %2442 = vmatprep.mubr.f32.mxu0 0.0
    %2443 = vmatmul.mubr.f32.gmra.mrb[0].mxu0 %v2376
    %v2444 = vpop.f32.mrb[0].mxu0
    %v2445 = vadd.f32 0.0, %v2444
    %v2446 = vpop.f32.mrb[0].mxu0
    %2447 = vdwg.mxu0
    %v2448 = vmul.f32 %v2445, 2.0
    %vm2449 = vcmask 97280
    %v2451 = vsel %vm2449, %v2372, 0
    %vm2453 = vcmask 1043456
    %v2455 = vsel %vm2453, %v2371, 0
    %2457 = vmatprep.subr.mxu0 0.0
    %2458 = vmatpush1.msra.mxu0 %v2370
    %2459 = vmatprep.subr.mxu0 0.0
    %2460 = vmatpush1.msra.mxu0 %v2455
    %2461 = vmatprep.subr.mxu0 0.0
    %2462 = vmatpush1.msra.mxu0 0.0
    %2463 = vmatprep.subr.mxu0 0.0
    %2464 = vmatpush1.msra.mxu0 0.0
    %2465 = vmatprep.subr.mxu0 0.0
    %2466 = vmatpush1.msra.mxu0 0.0
    %2467 = vmatprep.subr.mxu0 0.0
    %2468 = vmatpush1.msra.mxu0 0.0
    %2469 = vmatprep.subr.mxu0 0.0
    %2470 = vmatpush1.msra.mxu0 0.0
    %2471 = vmatprep.subr.mxu0 0.0
    %2472 = vmatpush1.msra.mxu0 0.0
    %2473 = vmatprep.subr.mxu0 0.0
    %2474 = vmatpush1.msra.mxu0 0.0
    %2475 = vmatprep.subr.mxu0 0.0
    %2476 = vmatpush1.msra.mxu0 0.0
    %2477 = vmatprep.subr.mxu0 0.0
    %2478 = vmatpush1.msra.mxu0 0.0
    %2479 = vmatprep.subr.mxu0 0.0
    %2480 = vmatpush1.msra.mxu0 0.0
    %2481 = vmatprep.subr.mxu0 0.0
    %2482 = vmatpush1.msra.mxu0 0.0
    %2483 = vmatprep.subr.mxu0 0.0
    %2484 = vmatpush1.msra.mxu0 0.0
    %2485 = vmatprep.subr.mxu0 0.0
    %2486 = vmatpush1.msra.mxu0 0.0
    %2487 = vmatprep.subr.mxu0 0.0
    %2488 = vmatpush1.msra.mxu0 0.0
    %2489 = vmatprep.subr.mxu0 0.0
    %2490 = vmatpush1.msra.mxu0 0.0
    %2491 = vmatprep.subr.mxu0 0.0
    %2492 = vmatpush1.msra.mxu0 0.0
    %2493 = vmatprep.subr.mxu0 0.0
    %2494 = vmatpush1.msra.mxu0 0.0
    %2495 = vmatprep.subr.mxu0 0.0
    %2496 = vmatpush1.msra.mxu0 0.0
    %2497 = vmatprep.subr.mxu0 0.0
    %2498 = vmatpush1.msra.mxu0 0.0
    %2499 = vmatprep.subr.mxu0 0.0
    %2500 = vmatpush1.msra.mxu0 0.0
    %2501 = vmatprep.subr.mxu0 0.0
    %2502 = vmatpush1.msra.mxu0 0.0
    %2503 = vmatprep.subr.mxu0 0.0
    %2504 = vmatpush1.msra.mxu0 0.0
    %2505 = vmatprep.subr.mxu0 0.0
    %2506 = vmatpush1.msra.mxu0 0.0
    %2507 = vmatprep.subr.mxu0 0.0
    %2508 = vmatpush1.msra.mxu0 0.0
    %2509 = vmatprep.subr.mxu0 0.0
    %2510 = vmatpush1.msra.mxu0 0.0
    %2511 = vmatprep.subr.mxu0 0.0
    %2512 = vmatpush1.msra.mxu0 0.0
    %2513 = vmatprep.subr.mxu0 0.0
    %2514 = vmatpush1.msra.mxu0 0.0
    %2515 = vmatprep.subr.mxu0 0.0
    %2516 = vmatpush1.msra.mxu0 0.0
    %2517 = vmatprep.subr.mxu0 0.0
    %2518 = vmatpush1.msra.mxu0 0.0
    %2519 = vmatprep.subr.mxu0 0.0
    %2520 = vmatpush1.msra.mxu0 0.0
    %2521 = vmatprep.mubr.f32.mxu0 0.0
    %2522 = vmatmul.mubr.f32.gmra.mrb[0].mxu0 %v2451
    %v2523 = vpop.f32.mrb[0].mxu0
    %v2524 = vadd.f32 %v2448, %v2523
    %v2525 = vpop.f32.mrb[0].mxu0
    %2526 = vdwg.mxu0
    %v2527 = vld [vmem:[%s13] sm:$0xff]
    %v2528 = vld [vmem:[%s13 + $0x8] sm:$0xff]
    %v2529 = vld [vmem:[%s13 + $0x10] sm:$0xff]
    %v2530 = vld [vmem:[%s13 + $0x18] sm:$0xff]
    %v2531 = vld [vmem:[%s13 + $0x20] sm:$0xff]
    %v2532 = vld [vmem:[%s13 + $0x28] sm:$0xff]
    %v2533 = vld [vmem:[%s13 + $0x30] sm:$0xff]
    %v2534 = vld [vmem:[%s13 + $0x38] sm:$0xff]
    %v2535 = vld [vmem:[%s14] sm:$0x1]
    %v2537 = vlaneseq
    %v2538 = vshrl.u32 %v2537, 7
    %v2539 = vsub.s32 0, %v2538
    %v2540 = vrot.slane %v2535, %v2539
    %v2543 = vsel %vm423, %v2524, 0
    %2545 = vmatprep.subr.mxu0 0.0
    %2546 = vmatpush1.msra.mxu0 %v2527
    %2547 = vmatprep.subr.mxu0 0.0
    %2548 = vmatpush1.msra.mxu0 %v2528
    %2549 = vmatprep.subr.mxu0 0.0
    %2550 = vmatpush1.msra.mxu0 %v2529
    %2551 = vmatprep.subr.mxu0 0.0
    %2552 = vmatpush1.msra.mxu0 %v2530
    %2553 = vmatprep.subr.mxu0 0.0
    %2554 = vmatpush1.msra.mxu0 %v2531
    %2555 = vmatprep.subr.mxu0 0.0
    %2556 = vmatpush1.msra.mxu0 %v2532
    %2557 = vmatprep.subr.mxu0 0.0
    %2558 = vmatpush1.msra.mxu0 %v2533
    %2559 = vmatprep.subr.mxu0 0.0
    %2560 = vmatpush1.msra.mxu0 %v2534
    %2561 = vmatprep.subr.mxu0 0.0
    %2562 = vmatpush1.msra.mxu0 0.0
    %2563 = vmatprep.subr.mxu0 0.0
    %2564 = vmatpush1.msra.mxu0 0.0
    %2565 = vmatprep.subr.mxu0 0.0
    %2566 = vmatpush1.msra.mxu0 0.0
    %2567 = vmatprep.subr.mxu0 0.0
    %2568 = vmatpush1.msra.mxu0 0.0
    %2569 = vmatprep.subr.mxu0 0.0
    %2570 = vmatpush1.msra.mxu0 0.0
    %2571 = vmatprep.subr.mxu0 0.0
    %2572 = vmatpush1.msra.mxu0 0.0
    %2573 = vmatprep.subr.mxu0 0.0
    %2574 = vmatpush1.msra.mxu0 0.0
    %2575 = vmatprep.subr.mxu0 0.0
    %2576 = vmatpush1.msra.mxu0 0.0
    %2577 = vmatprep.subr.mxu0 0.0
    %2578 = vmatpush1.msra.mxu0 0.0
    %2579 = vmatprep.subr.mxu0 0.0
    %2580 = vmatpush1.msra.mxu0 0.0
    %2581 = vmatprep.subr.mxu0 0.0
    %2582 = vmatpush1.msra.mxu0 0.0
    %2583 = vmatprep.subr.mxu0 0.0
    %2584 = vmatpush1.msra.mxu0 0.0
    %2585 = vmatprep.subr.mxu0 0.0
    %2586 = vmatpush1.msra.mxu0 0.0
    %2587 = vmatprep.subr.mxu0 0.0
    %2588 = vmatpush1.msra.mxu0 0.0
    %2589 = vmatprep.subr.mxu0 0.0
    %2590 = vmatpush1.msra.mxu0 0.0
    %2591 = vmatprep.subr.mxu0 0.0
    %2592 = vmatpush1.msra.mxu0 0.0
    %2593 = vmatprep.subr.mxu0 0.0
    %2594 = vmatpush1.msra.mxu0 0.0
    %2595 = vmatprep.subr.mxu0 0.0
    %2596 = vmatpush1.msra.mxu0 0.0
    %2597 = vmatprep.subr.mxu0 0.0
    %2598 = vmatpush1.msra.mxu0 0.0
    %2599 = vmatprep.subr.mxu0 0.0
    %2600 = vmatpush1.msra.mxu0 0.0
    %2601 = vmatprep.subr.mxu0 0.0
    %2602 = vmatpush1.msra.mxu0 0.0
    %2603 = vmatprep.subr.mxu0 0.0
    %2604 = vmatpush1.msra.mxu0 0.0
    %2605 = vmatprep.subr.mxu0 0.0
    %2606 = vmatpush1.msra.mxu0 0.0
    %2607 = vmatprep.subr.mxu0 0.0
    %2608 = vmatpush1.msra.mxu0 0.0
    %2609 = vmatprep.mubr.f32.mxu0 0.0
    %2610 = vmatmul.mubr.f32.gmra.mrb[0].mxu0 %v2543
    %v2611 = vpop.f32.mrb[0].mxu0
    %v2612 = vadd.f32 %v2540, %v2611
    %v2613 = vpop.f32.mrb[0].mxu0
    %2614 = vdwg.mxu0
    %2615 = vst [vmem:[#allocation4] sm:$0x3] %v2612
    // Predicated region
    $region62: #{vqa_forward.1} parent=1 // pred_check
      _
    $region63: #{vqa_forward.1} parent=1 // pred_check_branch
      %2617 = sbr.rel (0) target = $region65
    $region64: #{vqa_forward.1} parent=1 // pred_region
      %s2619 = ssub.s32 32, 32
      %2620 = vsyncadd [#allocation5], %s2619
      %s2622 = sshll.u32 [#allocation4], 4
      %s2623 = int_to_ptr.vmem [resolvable:$true] %s2622
      %2625 = dma.vmem_to_hbm [thread:$0]  %s2623, 32, %s15, [#allocation5]
    $region65: #{vqa_forward.1} parent=1 // pred_fallthru
      _
    // Predicated region
    $region66: #{vqa_forward.1} parent=1 // pred_check
      _
    $region67: #{vqa_forward.1} parent=1 // pred_check_branch
      %2627 = sbr.rel (0) target = $region69
    $region68: #{vqa_forward.1} parent=1 // pred_region
      %2628 = dma.done [#allocation5], 32
    $region69: #{vqa_forward.1} parent=1 // pred_fallthru
      _
    %2629 = vsyncpa [#allocation5], 1

</llo_original>
